<compile_context>
chip_gen: v7x
topology: tpu7x:2x2x1
jax: 0.10.0
libtpu: 0.0.40
codegen_flags: <defaults>
</compile_context>

<pallas_src>
import math

import jax
import jax.numpy as jnp
from jax.experimental import pallas as pl
from jax.experimental.pallas import tpu as pltpu

# Full-precision f32 matmuls (kernel and reference) so the 1e-4 check is real.
jax.config.update("jax_default_matmul_precision", "highest")

LN_EPS = 1e-6


# ---------------------------------------------------------------------------
# Kernel
# ---------------------------------------------------------------------------
def _mha_kernel(ln_ref, wv_ref, wfc_ref, xq_ref, xv_ref, out_ref):
    f32 = jnp.float32

    def layernorm(x, g, b):
        n = x.shape[-1]
        mean = jnp.mean(x, axis=-1, keepdims=True)
        # torch .std(): unbiased (ddof=1); eps is added to the std.
        var = jnp.sum((x - mean) ** 2, axis=-1, keepdims=True) * (1.0 / (n - 1))
        denom = jnp.sqrt(var) + LN_EPS
        # EUP approximate reciprocal + one Newton-Raphson refinement: keeps the
        # divide off the VALU while restoring ~f32 accuracy.
        r = pl.reciprocal(denom, approx=True)
        inv = r * (2.0 - denom * r)
        return g * (x - mean) * inv + b

    gamma = ln_ref[0:1, :]
    beta = ln_ref[1:2, :]

    # seq_len == 1: softmax(scores) == 1.0 exactly, dropout is identity in
    # eval mode, so context == V; the Q/K projections never reach the output.
    xv_n = layernorm(xv_ref[...].astype(f32), gamma, beta)
    ctx = jnp.dot(xv_n.astype(wv_ref.dtype), wv_ref[...],
                  preferred_element_type=f32)              # context == V
    out = jnp.dot(ctx.astype(wfc_ref.dtype), wfc_ref[...],
                  preferred_element_type=f32)              # fc(context)
    out_ref[...] = (xq_ref[...].astype(f32) + out).astype(out_ref.dtype)


# ---------------------------------------------------------------------------
# Wrapper
# ---------------------------------------------------------------------------
def _pick_batch_tile(batch):
    """Largest tile <= 256 that divides B and leaves >= 2 grid steps (v7x)."""
    if batch <= 8:
        return batch
    for tb in (256, 128, 64, 32, 16, 8):
        if batch % tb == 0 and batch // tb >= 2:
            return tb
    return batch


def multi_head_attention_forward(params, input_Q, input_K, input_V, *,
                                 batch_tile=None, dot_dtype=jnp.float32):
    # Guard: the softmax==1 / context==V fold is only valid for the module's
    # actual usage — rank-2 inputs (implicit seq_len == 1), eval-mode dropout,
    # no attention mask.
    assert input_Q.ndim == 2 and input_K.ndim == 2 and input_V.ndim == 2, \
        "kernel assumes 2-D [batch, d_model] inputs (seq_len == 1)"
    del input_K  # mathematically cancels from the output for seq_len == 1

    B, d_model = input_Q.shape
    nheads = params["nheads"]
    hd = params["wv"].shape[1]

    tb = _pick_batch_tile(B) if batch_tile is None else batch_tile
    assert B % tb == 0 and (tb == B or tb % 8 == 0), \
        "batch tile must divide B and be a multiple of 8"
    grid = (B // tb,)

    ln_slab = params["ln_slab"]                      # [2, d_model]: gamma | beta
    wv = params["wv"].astype(dot_dtype)              # [d_model, nheads*d_k]
    wfc = params["wfc"].astype(dot_dtype)            # [nheads*d_k, d_model]

    row_spec = pl.BlockSpec((tb, d_model), lambda i: (i, 0))
    # Constant-index weight blocks: DMA'd once, reused every grid step.
    # TODO(synk): mark these pipeline_mode=pl.Buffered(1) (single-buffered)
    # once weight residency matters (large d_model under v7x's 64 MiB VMEM).
    ln_spec = pl.BlockSpec(ln_slab.shape, lambda i: (0, 0))
    wv_spec = pl.BlockSpec(wv.shape, lambda i: (0, 0))
    wfc_spec = pl.BlockSpec(wfc.shape, lambda i: (0, 0))

    flops = 2 * B * (d_model * hd + hd * d_model) + 10 * B * d_model
    bytes_accessed = (3 * B * d_model + ln_slab.size) * 4 \
        + (wv.size + wfc.size) * jnp.dtype(dot_dtype).itemsize
    cost = pl.CostEstimate(flops=int(flops), transcendentals=int(2 * B),
                           bytes_accessed=int(bytes_accessed))

    out = pl.pallas_call(
        _mha_kernel,
        grid=grid,
        in_specs=[ln_spec, wv_spec, wfc_spec, row_spec, row_spec],
        out_specs=row_spec,
        out_shape=jax.ShapeDtypeStruct((B, d_model), jnp.float32),
        compiler_params=pltpu.CompilerParams(
            dimension_semantics=("parallel",),
            vmem_limit_bytes=32 * 1024 * 1024,
        ),
        cost_estimate=cost,
    )(ln_slab, wv, wfc, input_Q, input_V)

    # Attention weights: softmax over a single key position is identically 1.0
    # (shape [B, nheads, 1, 1]); produced on the host, not in the kernel.
    attn = jnp.ones((B, nheads, 1, 1), jnp.float32)
    return out, attn


# ---------------------------------------------------------------------------
# Parameters (deterministic, synthetic), torch-layout pre-transposed to [in,out]
# ---------------------------------------------------------------------------
def init_params(key, *, d_model, d_k, nheads):
    hd = nheads * d_k
    kg, kb, kq, kk, kv, kf = jax.random.split(key, 6)
    scale = 0.05
    gamma = 1.0 + 0.1 * jax.random.normal(kg, (d_model,), jnp.float32)
    beta = 0.1 * jax.random.normal(kb, (d_model,), jnp.float32)
    params = dict(
        nheads=nheads, d_k=d_k,
        gamma=gamma, beta=beta,
        wq=jax.random.normal(kq, (d_model, hd), jnp.float32) * scale,
        wk=jax.random.normal(kk, (d_model, hd), jnp.float32) * scale,
        wv=jax.random.normal(kv, (d_model, hd), jnp.float32) * scale,
        wfc=jax.random.normal(kf, (hd, d_model), jnp.float32) * scale,
    )
    # Pack tiny LN vectors into one lane-dense slab (single DMA / VMEM tile).
    params["ln_slab"] = jnp.stack([gamma, beta], axis=0)
    return params


# ---------------------------------------------------------------------------
# Pure-JAX reference: the full, unfolded module math (LN on Q/K/V, per-head
# reshape, scores, softmax, context, fc, residual) for correctness.
# ---------------------------------------------------------------------------
def reference_forward(params, input_Q, input_K, input_V):
    d_k = params["d_k"]
    nheads = params["nheads"]
    B, _ = input_Q.shape

    def ln(x):
        n = x.shape[-1]
        mean = jnp.mean(x, axis=-1, keepdims=True)
        var = jnp.sum((x - mean) ** 2, axis=-1, keepdims=True) / (n - 1)
        std = jnp.sqrt(var)
        return params["gamma"] * (x - mean) / (std + LN_EPS) + params["beta"]

    def heads(x, w):
        return (x @ w).reshape(B, 1, nheads, d_k).transpose(0, 2, 1, 3)

    Q = heads(ln(input_Q), params["wq"])
    K = heads(ln(input_K), params["wk"])
    V = heads(ln(input_V), params["wv"])
    scores = jnp.einsum("bhqd,bhkd->bhqk", Q, K) / math.sqrt(d_k)
    attn = jax.nn.softmax(scores, axis=-1)                 # [B, H, 1, 1]
    context = jnp.einsum("bhqk,bhkd->bhqd", attn, V)
    context = context.transpose(0, 2, 1, 3).reshape(B, nheads * d_k)
    output = context @ params["wfc"]
    return input_Q + output, attn                          # eval dropout = id


# ---------------------------------------------------------------------------
if __name__ == "__main__":
    # Sized so the batch tile fills MXU rows and the grid has >= 2 steps
    # (batch_tile=128, grid=(2,)) while staying small.
    B = 256
    D_MODEL = 128
    D_K = 16
    NHEADS = 8        # nheads * d_k == d_model

    key = jax.random.PRNGKey(0)
    kp, kq, kk, kv = jax.random.split(key, 4)
    params = init_params(kp, d_model=D_MODEL, d_k=D_K, nheads=NHEADS)

    input_Q = jax.random.normal(kq, (B, D_MODEL), jnp.float32)
    input_K = jax.random.normal(kk, (B, D_MODEL), jnp.float32)
    input_V = jax.random.normal(kv, (B, D_MODEL), jnp.float32)

    out, attn = jax.block_until_ready(
        multi_head_attention_forward(params, input_Q, input_K, input_V))

    ref_out, ref_attn = reference_forward(params, input_Q, input_K, input_V)
    assert jnp.allclose(out, ref_out, rtol=1e-4, atol=1e-4)
    assert jnp.allclose(attn, ref_attn)

    # bf16 dot-operand path (v6e/v7x: 2x MXU rate, half the weight DMA/VMEM);
    # LN / residual / outputs stay f32, so this is also safe on v5e.
    out_bf16, _ = jax.block_until_ready(
        multi_head_attention_forward(params, input_Q, input_K, input_V,
                                     dot_dtype=jnp.bfloat16))
    assert jnp.allclose(out_bf16, ref_out, rtol=5e-2, atol=5e-2)

    print("KERNEL_OK")
</pallas_src>

<mosaic_0001>
module attributes {stable_mosaic.version = 11 : i64} {
  func.func @_mha_kernel(%arg0: i32, %arg1: memref<2x128xf32, #tpu.memory_space<vmem>>, %arg2: memref<128x128xf32, #tpu.memory_space<vmem>>, %arg3: memref<128x128xf32, #tpu.memory_space<vmem>>, %arg4: memref<128x128xf32, #tpu.memory_space<vmem>>, %arg5: memref<128x128xf32, #tpu.memory_space<vmem>>, %arg6: memref<128x128xf32, #tpu.memory_space<vmem>>) attributes {dimension_semantics = [#tpu.dimension_semantics<parallel>], iteration_bounds = array<i64: 2>, scalar_prefetch = 0 : i64, scratch_operands = 0 : i64, tpu.core_type = #tpu.core_type<tc>, window_params = [{pipeline_mode = #tpu.pipeline_mode<synchronous>, transform_indices = @transform_0, window_bounds = array<i64: 2, 128>}, {pipeline_mode = #tpu.pipeline_mode<synchronous>, transform_indices = @transform_1, window_bounds = array<i64: 128, 128>}, {pipeline_mode = #tpu.pipeline_mode<synchronous>, transform_indices = @transform_2, window_bounds = array<i64: 128, 128>}, {transform_indices = @transform_3, window_bounds = array<i64: 128, 128>}, {transform_indices = @transform_4, window_bounds = array<i64: 128, 128>}, {transform_indices = @transform_5, window_bounds = array<i64: 128, 128>}]} {
    %c0 = arith.constant 0 : index
    %c0_0 = arith.constant 0 : index
    %0 = vector.load %arg1[%c0, %c0_0] : memref<2x128xf32, #tpu.memory_space<vmem>>, vector<1x128xf32>
    %c1 = arith.constant 1 : index
    %c0_1 = arith.constant 0 : index
    %1 = vector.load %arg1[%c1, %c0_1] : memref<2x128xf32, #tpu.memory_space<vmem>>, vector<1x128xf32>
    %c0_2 = arith.constant 0 : index
    %c0_3 = arith.constant 0 : index
    %2 = vector.load %arg5[%c0_2, %c0_3] : memref<128x128xf32, #tpu.memory_space<vmem>>, vector<128x128xf32>
    %cst = arith.constant dense<0.000000e+00> : vector<128xf32>
    %3 = vector.multi_reduction <add>, %2, %cst [1] : vector<128x128xf32> to vector<128xf32>
    %4 = vector.shape_cast %3 : vector<128xf32> to vector<128x1xf32>
    %cst_4 = arith.constant 1.280000e+02 : f32
    %5 = vector.broadcast %cst_4 : f32 to vector<128x1xf32>
    %6 = arith.divf %4, %5 : vector<128x1xf32>
    %7 = vector.broadcast %6 : vector<128x1xf32> to vector<128x128xf32>
    %8 = arith.subf %2, %7 : vector<128x128xf32>
    %9 = arith.mulf %8, %8 : vector<128x128xf32>
    %cst_5 = arith.constant dense<0.000000e+00> : vector<128xf32>
    %10 = vector.multi_reduction <add>, %9, %cst_5 [1] : vector<128x128xf32> to vector<128xf32>
    %11 = vector.shape_cast %10 : vector<128xf32> to vector<128x1xf32>
    %cst_6 = arith.constant 0.00787401571 : f32
    %12 = vector.broadcast %cst_6 : f32 to vector<128x1xf32>
    %13 = arith.mulf %11, %12 : vector<128x1xf32>
    %14 = math.sqrt %13 : vector<128x1xf32>
    %cst_7 = arith.constant 9.99999997E-7 : f32
    %15 = vector.broadcast %cst_7 : f32 to vector<128x1xf32>
    %16 = arith.addf %14, %15 : vector<128x1xf32>
    %17 = tpu.reciprocal %16 {approx = true} : vector<128x1xf32> -> vector<128x1xf32>
    %18 = arith.mulf %16, %17 : vector<128x1xf32>
    %cst_8 = arith.constant 2.000000e+00 : f32
    %19 = vector.broadcast %cst_8 : f32 to vector<128x1xf32>
    %20 = arith.subf %19, %18 : vector<128x1xf32>
    %21 = arith.mulf %17, %20 : vector<128x1xf32>
    %22 = vector.broadcast %6 : vector<128x1xf32> to vector<128x128xf32>
    %23 = arith.subf %2, %22 : vector<128x128xf32>
    %24 = vector.broadcast %0 : vector<1x128xf32> to vector<128x128xf32>
    %25 = arith.mulf %24, %23 : vector<128x128xf32>
    %26 = vector.broadcast %21 : vector<128x1xf32> to vector<128x128xf32>
    %27 = arith.mulf %25, %26 : vector<128x128xf32>
    %28 = vector.broadcast %1 : vector<1x128xf32> to vector<128x128xf32>
    %29 = arith.addf %27, %28 : vector<128x128xf32>
    %c0_9 = arith.constant 0 : index
    %c0_10 = arith.constant 0 : index
    %30 = vector.load %arg2[%c0_9, %c0_10] : memref<128x128xf32, #tpu.memory_space<vmem>>, vector<128x128xf32>
    %cst_11 = arith.constant dense<0.000000e+00> : vector<128x128xf32>
    %31 = tpu.matmul %29, %30, %cst_11 {dimension_numbers = #tpu.dot_dimension_numbers<[1], [0], [0], [1], [0, 0, 1, 1], [], []>, precision = #tpu.contract_precision<fp32>} : vector<128x128xf32>, vector<128x128xf32>, vector<128x128xf32> -> vector<128x128xf32>
    %c0_12 = arith.constant 0 : index
    %c0_13 = arith.constant 0 : index
    %32 = vector.load %arg3[%c0_12, %c0_13] : memref<128x128xf32, #tpu.memory_space<vmem>>, vector<128x128xf32>
    %cst_14 = arith.constant dense<0.000000e+00> : vector<128x128xf32>
    %33 = tpu.matmul %31, %32, %cst_14 {dimension_numbers = #tpu.dot_dimension_numbers<[1], [0], [0], [1], [0, 0, 1, 1], [], []>, precision = #tpu.contract_precision<fp32>} : vector<128x128xf32>, vector<128x128xf32>, vector<128x128xf32> -> vector<128x128xf32>
    %c0_15 = arith.constant 0 : index
    %c0_16 = arith.constant 0 : index
    %34 = vector.load %arg4[%c0_15, %c0_16] : memref<128x128xf32, #tpu.memory_space<vmem>>, vector<128x128xf32>
    %35 = arith.addf %34, %33 : vector<128x128xf32>
    %c0_17 = arith.constant 0 : index
    %c0_18 = arith.constant 0 : index
    %36 = vector.load %arg6[%c0_17, %c0_18] : memref<128x128xf32, #tpu.memory_space<vmem>>, vector<128x128xf32>
    tpu.vector_store %arg6[%c0_17, %c0_18], %35 {strides = array<i32>} : memref<128x128xf32, #tpu.memory_space<vmem>>, vector<128x128xf32>,
    return
  }
  func.func @transform_0(%arg0: i32) -> (i32, i32) {
    %c0_i32 = arith.constant 0 : i32
    %c0_i32_0 = arith.constant 0 : i32
    %c0_i32_1 = arith.constant 0 : i32
    return %c0_i32, %c0_i32_0 : i32, i32
  }
  func.func @transform_1(%arg0: i32) -> (i32, i32) {
    %c0_i32 = arith.constant 0 : i32
    %c0_i32_0 = arith.constant 0 : i32
    %c0_i32_1 = arith.constant 0 : i32
    return %c0_i32, %c0_i32_0 : i32, i32
  }
  func.func @transform_2(%arg0: i32) -> (i32, i32) {
    %c0_i32 = arith.constant 0 : i32
    %c0_i32_0 = arith.constant 0 : i32
    %c0_i32_1 = arith.constant 0 : i32
    return %c0_i32, %c0_i32_0 : i32, i32
  }
  func.func @transform_3(%arg0: i32) -> (i32, i32) {
    %c0_i32 = arith.constant 0 : i32
    %c0_i32_0 = arith.constant 0 : i32
    return %arg0, %c0_i32 : i32, i32
  }
  func.func @transform_4(%arg0: i32) -> (i32, i32) {
    %c0_i32 = arith.constant 0 : i32
    %c0_i32_0 = arith.constant 0 : i32
    return %arg0, %c0_i32 : i32, i32
  }
  func.func @transform_5(%arg0: i32) -> (i32, i32) {
    %c0_i32 = arith.constant 0 : i32
    %c0_i32_0 = arith.constant 0 : i32
    return %arg0, %c0_i32 : i32, i32
  }
}

</mosaic_0001>

<llo_original>
// kernel: tpu_custom_call.1
$region0: #{tpu_custom_call.1}
  #allocation0 [shape = 'u32[]', space=smem, size = 0x4, offset = 0x4, fixed_abs, tag = 'smem constant byte address 0x4 - core index']
  #allocation1 [shape = 'u32[144,128]{1,0:T(1,128)}', space=vmem, size = 0x12000, scoped, tag = 'internal scratch']
  %s0 = inlined_call_operand.hbm [shape: f32[2,128], index: 0, kind: input, shape index: {}]
  %s1 = inlined_call_operand.hbm [shape: f32[128,128], index: 1, kind: input, shape index: {}]
  %s2 = inlined_call_operand.hbm [shape: f32[128,128], index: 2, kind: input, shape index: {}]
  %s3 = inlined_call_operand.hbm [shape: f32[256,128], index: 3, kind: input, shape index: {}]
  %s4 = inlined_call_operand.hbm [shape: f32[256,128], index: 4, kind: input, shape index: {}]
  %s5 = inlined_call_operand.hbm [shape: f32[256,128], index: 5, kind: output, shape index: {}]
  %s6 = sld [smem:[#allocation0]]
  $region73: #{tpu_custom_call.1} parent=0
    _
  %s8 = ssub.s32 1, %s6
  %s9 = scalar_select 0, %s8, %s6
  $region1: #{tpu_custom_call.1} parent=0
    #allocation2 [shape = 'u8[1024]{0}', space=vmem, size = 0x400, scoped, tag = 'input window, operand 0, single buffered']
    #allocation3 [shape = 's32[2]{0}', space=sflag, size = 0x8, scoped, tag = 'scoped memory for tpu_custom_call.1']
    #allocation4 [shape = 's32[2]{0}', space=sflag, size = 0x8, scoped, tag = 'scoped memory for tpu_custom_call.1']
    #allocation5 [shape = 'u8[65536]{0}', space=vmem, size = 0x10000, scoped, tag = 'input window, operand 1, single buffered']
    #allocation6 [shape = 's32[1]{0}', space=sflag, size = 0x4, scoped, tag = 'scoped memory for tpu_custom_call.1']
    #allocation7 [shape = 'u8[65536]{0}', space=vmem, size = 0x10000, scoped, tag = 'input window, operand 2, single buffered']
    #allocation8 [shape = 'u8[131072]{0}', space=vmem, size = 0x20000, scoped, tag = 'input window, operand 3']
    #allocation9 [shape = 's32[2]{0}', space=sflag, size = 0x8, scoped, tag = 'scoped memory for tpu_custom_call.1']
    #allocation10 [shape = 'u8[131072]{0}', space=vmem, size = 0x20000, scoped, tag = 'input window, operand 4']
    #allocation11 [shape = 'u8[131072]{0}', space=vmem, size = 0x20000, scoped, tag = 'output window, operand 0']
    %10 = vsyncpa [#allocation3], 0
    %11 = vsyncpa [#allocation6], 0
    %12 = vsyncpa [#allocation9], 0
    %s13 = scalar_lea.sflag [#allocation9], 1
    %14 = vsyncpa %s13, 0
    %15 = vsyncpa [#allocation4], 0
    %s16 = scalar_lea.sflag [#allocation4], 1
    %17 = vsyncpa %s16, 0
    loop: start=0, step=1, limit=4
    $region2: #{tpu_custom_call.1} parent=1 // loop_pre_header
      _
    $region3: #{tpu_custom_call.1} parent=1 // loop_header
      %s19 = sphi 0, %s23
      %p20 = scmp.ge.s32.totalorder %s19, 4
      %s27 = sphi 0, %s27
      %s29 = sphi 0, %s27
      %s30 = sphi 0, %s29
      %s44 = sphi 0, %s30
      %s48 = sphi 0, %s48
      %s50 = sphi 0, %s48
      %s51 = sphi 0, %s50
      %s65 = sphi 0, %s51
      %s69 = sphi 0, %s69
      %s71 = sphi 0, %s69
      %s72 = sphi 0, %s71
      %s86 = sphi 0, %s72
      %s92 = sphi 0, %s94
      %s95 = sphi 0, %s92
      %s96 = sphi 0, %s95
      %s112 = sphi 0, %s96
      %s118 = sphi 0, %s120
      %s121 = sphi 0, %s118
      %s122 = sphi 0, %s121
      %s138 = sphi 0, %s122
      %s144 = sphi 0, %s146
      %s147 = sphi 0, %s144
      %s148 = sphi 0, %s147
      %s164 = sphi 0, %s148
    $region4: #{tpu_custom_call.1} parent=1 // loop_header_branch
      %22 = sbr.rel (%p20) target = $region8
    $region5: #{tpu_custom_call.1} parent=1 // loop_body
      %s24 = ssub.s32 %s19, 1
      %s25 = ssub.s32 %s19, 2
      %s26 = sadd.s32 %s19, 1
      %s28 = sadd.s32 %s27, 1
      %p31 = scmp.eq.s32.totalorder %s19, 1
      %p32 = scmp.ne.s32.totalorder %s27, %s29
      %p33 = scmp.eq.s32.totalorder %s19, 0
      %p34 = por %p32, %p33
      %p35 = scmp.ne.s32.totalorder %s27, %s29
      %p36 = scmp.eq.s32.totalorder %s24, 1
      %p37 = por %p35, %p36
      %p38 = scmp.ne.s32.totalorder %s29, %s30
      %p39 = scmp.eq.s32.totalorder %s24, 0
      %p40 = por %p38, %p39
      %p41 = scmp.ne.s32.totalorder %s29, %s30
      %p42 = scmp.eq.s32.totalorder %s25, 1
      %p43 = por %p41, %p42
      %p45 = scmp.ne.s32.totalorder %s30, %s44
      %p46 = scmp.eq.s32.totalorder %s25, 0
      %p47 = por %p45, %p46
      %s49 = sadd.s32 %s48, 1
      %p52 = scmp.eq.s32.totalorder %s19, 1
      %p53 = scmp.ne.s32.totalorder %s48, %s50
      %p54 = scmp.eq.s32.totalorder %s19, 0
      %p55 = por %p53, %p54
      %p56 = scmp.ne.s32.totalorder %s48, %s50
      %p57 = scmp.eq.s32.totalorder %s24, 1
      %p58 = por %p56, %p57
      %p59 = scmp.ne.s32.totalorder %s50, %s51
      %p60 = scmp.eq.s32.totalorder %s24, 0
      %p61 = por %p59, %p60
      %p62 = scmp.ne.s32.totalorder %s50, %s51
      %p63 = scmp.eq.s32.totalorder %s25, 1
      %p64 = por %p62, %p63
      %p66 = scmp.ne.s32.totalorder %s51, %s65
      %p67 = scmp.eq.s32.totalorder %s25, 0
      %p68 = por %p66, %p67
      %s70 = sadd.s32 %s69, 1
      %p73 = scmp.eq.s32.totalorder %s19, 1
      %p74 = scmp.ne.s32.totalorder %s69, %s71
      %p75 = scmp.eq.s32.totalorder %s19, 0
      %p76 = por %p74, %p75
      %p77 = scmp.ne.s32.totalorder %s69, %s71
      %p78 = scmp.eq.s32.totalorder %s24, 1
      %p79 = por %p77, %p78
      %p80 = scmp.ne.s32.totalorder %s71, %s72
      %p81 = scmp.eq.s32.totalorder %s24, 0
      %p82 = por %p80, %p81
      %p83 = scmp.ne.s32.totalorder %s71, %s72
      %p84 = scmp.eq.s32.totalorder %s25, 1
      %p85 = por %p83, %p84
      %p87 = scmp.ne.s32.totalorder %s72, %s86
      %p88 = scmp.eq.s32.totalorder %s25, 0
      %p89 = por %p87, %p88
      %s90 = ssub.s32 %s19, %s26
      %p91 = scmp.eq.s32.totalorder %s90, 0
      %s93 = sadd.s32 %s92, 1
      %s94 = scalar_select %p91, %s92, %s93
      %p97 = pneg %p91
      %p98 = scmp.eq.s32.totalorder %s19, 1
      %p99 = por %p97, %p98
      %p100 = scmp.ne.s32.totalorder %s92, %s95
      %p101 = scmp.eq.s32.totalorder %s19, 0
      %p102 = por %p100, %p101
      %p103 = scmp.ne.s32.totalorder %s92, %s95
      %p104 = scmp.eq.s32.totalorder %s24, 1
      %p105 = por %p103, %p104
      %p106 = scmp.ne.s32.totalorder %s95, %s96
      %p107 = scmp.eq.s32.totalorder %s24, 0
      %p108 = por %p106, %p107
      %p109 = scmp.ne.s32.totalorder %s95, %s96
      %p110 = scmp.eq.s32.totalorder %s25, 1
      %p111 = por %p109, %p110
      %p113 = scmp.ne.s32.totalorder %s96, %s112
      %p114 = scmp.eq.s32.totalorder %s25, 0
      %p115 = por %p113, %p114
      %s116 = ssub.s32 %s19, %s26
      %p117 = scmp.eq.s32.totalorder %s116, 0
      %s119 = sadd.s32 %s118, 1
      %s120 = scalar_select %p117, %s118, %s119
      %p123 = pneg %p117
      %p124 = scmp.eq.s32.totalorder %s19, 1
      %p125 = por %p123, %p124
      %p126 = scmp.ne.s32.totalorder %s118, %s121
      %p127 = scmp.eq.s32.totalorder %s19, 0
      %p128 = por %p126, %p127
      %p129 = scmp.ne.s32.totalorder %s118, %s121
      %p130 = scmp.eq.s32.totalorder %s24, 1
      %p131 = por %p129, %p130
      %p132 = scmp.ne.s32.totalorder %s121, %s122
      %p133 = scmp.eq.s32.totalorder %s24, 0
      %p134 = por %p132, %p133
      %p135 = scmp.ne.s32.totalorder %s121, %s122
      %p136 = scmp.eq.s32.totalorder %s25, 1
      %p137 = por %p135, %p136
      %p139 = scmp.ne.s32.totalorder %s122, %s138
      %p140 = scmp.eq.s32.totalorder %s25, 0
      %p141 = por %p139, %p140
      %s142 = ssub.s32 %s19, %s26
      %p143 = scmp.eq.s32.totalorder %s142, 0
      %s145 = sadd.s32 %s144, 1
      %s146 = scalar_select %p143, %s144, %s145
      %p149 = pneg %p143
      %p150 = scmp.eq.s32.totalorder %s19, 1
      %p151 = por %p149, %p150
      %p152 = scmp.ne.s32.totalorder %s144, %s147
      %p153 = scmp.eq.s32.totalorder %s19, 0
      %p154 = por %p152, %p153
      %p155 = scmp.ne.s32.totalorder %s144, %s147
      %p156 = scmp.eq.s32.totalorder %s24, 1
      %p157 = por %p155, %p156
      %p158 = scmp.ne.s32.totalorder %s147, %s148
      %p159 = scmp.eq.s32.totalorder %s24, 0
      %p160 = por %p158, %p159
      %p161 = scmp.ne.s32.totalorder %s147, %s148
      %p162 = scmp.eq.s32.totalorder %s25, 1
      %p163 = por %p161, %p162
      %p165 = scmp.ne.s32.totalorder %s148, %s164
      %p166 = scmp.eq.s32.totalorder %s25, 0
      %p167 = por %p165, %p166
      %p168 = scmp.le.s32.totalorder 1, %s19
      %p169 = scmp.lt.s32.totalorder %s19, 3
      %p170 = pnand %p168, %p169
      %p171 = pneg %p170
      // Predicated region
      $region9: #{tpu_custom_call.1} parent=5 // pred_check
        _
      $region10: #{tpu_custom_call.1} parent=5 // pred_check_branch
        %173 = sbr.rel (%p170) target = $region12
      $region11: #{tpu_custom_call.1} parent=5 // pred_region
        %s174 = ssub.s32 %s19, 1
        // Predicated region
        $region13: #{tpu_custom_call.1} parent=11 // pred_check
          %p175 = pneg %p40
        $region14: #{tpu_custom_call.1} parent=11 // pred_check_branch
          %177 = sbr.rel (%p175) target = $region16
        $region15: #{tpu_custom_call.1} parent=11 // pred_region
          %s179 = ssub.s32 32, 32
          %180 = vsyncadd [#allocation3], %s179
          %s182 = sshll.u32 [#allocation2], 4
          %s183 = int_to_ptr.vmem [resolvable:$true] %s182
          %185 = dma.hbm_to_vmem [thread:$0]  %s0, 32, %s183, [#allocation3]
        $region16: #{tpu_custom_call.1} parent=11 // pred_fallthru
          _
        // Predicated region
        $region17: #{tpu_custom_call.1} parent=11 // pred_check
          %p186 = pneg %p61
        $region18: #{tpu_custom_call.1} parent=11 // pred_check_branch
          %188 = sbr.rel (%p186) target = $region20
        $region19: #{tpu_custom_call.1} parent=11 // pred_region
          %s190 = ssub.s32 2048, 2048
          %191 = vsyncadd [#allocation6], %s190
          %s192 = sshll.u32 [#allocation5], 4
          %s193 = int_to_ptr.vmem [resolvable:$true] %s192
          %198 = dma.hbm_to_vmem [thread:$0]  %s1, 2048, %s193, [#allocation6], 128, 128, 8
        $region20: #{tpu_custom_call.1} parent=11 // pred_fallthru
          _
        // Predicated region
        $region21: #{tpu_custom_call.1} parent=11 // pred_check
          %p199 = pneg %p82
        $region22: #{tpu_custom_call.1} parent=11 // pred_check_branch
          %201 = sbr.rel (%p199) target = $region24
        $region23: #{tpu_custom_call.1} parent=11 // pred_region
          %s203 = ssub.s32 2048, 2048
          %204 = vsyncadd [#allocation6], %s203
          %s205 = sshll.u32 [#allocation7], 4
          %s206 = int_to_ptr.vmem [resolvable:$true] %s205
          %211 = dma.hbm_to_vmem [thread:$0]  %s2, 2048, %s206, [#allocation6], 128, 128, 8
        $region24: #{tpu_custom_call.1} parent=11 // pred_fallthru
          _
      $region12: #{tpu_custom_call.1} parent=5 // pred_fallthru
        _
      %p212 = scmp.lt.s32.totalorder %s19, 2
      // Predicated region
      $region25: #{tpu_custom_call.1} parent=5 // pred_check
        %p213 = pneg %p212
      $region26: #{tpu_custom_call.1} parent=5 // pred_check_branch
        %215 = sbr.rel (%p213) target = $region28
      $region27: #{tpu_custom_call.1} parent=5 // pred_region
        // Predicated region
        $region29: #{tpu_custom_call.1} parent=27 // pred_check
          %p216 = pneg %p102
        $region30: #{tpu_custom_call.1} parent=27 // pred_check_branch
          %218 = sbr.rel (%p216) target = $region32
        $region31: #{tpu_custom_call.1} parent=27 // pred_region
          %s219 = sand.u32 %s19, 1
          %s220 = scalar_lea.sflag [#allocation9], %s219
          %s221 = sand.u32 %s92, 1
          %s222 = smul.addr %s221, 128
          %s223 = scalar_lea.vmem [#allocation8], %s222
          %s224 = smul.u32 16, %s19
          %s226 = ssub.s32 2048, 2048
          %227 = vsyncadd %s220, %s226
          %s228 = smul.addr %s224, 128
          %s229 = scalar_lea.hbm %s3, %s228
          %s230 = sshll.u32 %s223, 4
          %s231 = int_to_ptr.vmem [resolvable:$true] %s230
          %236 = dma.hbm_to_vmem [thread:$0]  %s229, 2048, %s231, %s220, 128, 128, 8
        $region32: #{tpu_custom_call.1} parent=27 // pred_fallthru
          _
        // Predicated region
        $region33: #{tpu_custom_call.1} parent=27 // pred_check
          %p237 = pneg %p128
        $region34: #{tpu_custom_call.1} parent=27 // pred_check_branch
          %239 = sbr.rel (%p237) target = $region36
        $region35: #{tpu_custom_call.1} parent=27 // pred_region
          %s240 = sand.u32 %s19, 1
          %s241 = scalar_lea.sflag [#allocation9], %s240
          %s242 = sand.u32 %s118, 1
          %s243 = smul.addr %s242, 128
          %s244 = scalar_lea.vmem [#allocation10], %s243
          %s245 = smul.u32 16, %s19
          %s247 = ssub.s32 2048, 2048
          %248 = vsyncadd %s241, %s247
          %s249 = smul.addr %s245, 128
          %s250 = scalar_lea.hbm %s4, %s249
          %s251 = sshll.u32 %s244, 4
          %s252 = int_to_ptr.vmem [resolvable:$true] %s251
          %257 = dma.hbm_to_vmem [thread:$0]  %s250, 2048, %s252, %s241, 128, 128, 8
        $region36: #{tpu_custom_call.1} parent=27 // pred_fallthru
          _
      $region28: #{tpu_custom_call.1} parent=5 // pred_fallthru
        _
      %p258 = scmp.le.s32.totalorder 1, %s19
      %p259 = scmp.lt.s32.totalorder %s19, 3
      %p260 = pnand %p258, %p259
      %p261 = pneg %p260
      // Predicated region
      $region37: #{tpu_custom_call.1} parent=5 // pred_check
        _
      $region38: #{tpu_custom_call.1} parent=5 // pred_check_branch
        %263 = sbr.rel (%p260) target = $region40
      $region39: #{tpu_custom_call.1} parent=5 // pred_region
        %s264 = ssub.s32 %s19, 1
        // Predicated region
        $region41: #{tpu_custom_call.1} parent=39 // pred_check
          %p265 = pneg %p40
        $region42: #{tpu_custom_call.1} parent=39 // pred_check_branch
          %267 = sbr.rel (%p265) target = $region44
        $region43: #{tpu_custom_call.1} parent=39 // pred_region
          %268 = dma.done [#allocation3], 32
        $region44: #{tpu_custom_call.1} parent=39 // pred_fallthru
          _
        // Predicated region
        $region45: #{tpu_custom_call.1} parent=39 // pred_check
          %p269 = pneg %p61
        $region46: #{tpu_custom_call.1} parent=39 // pred_check_branch
          %271 = sbr.rel (%p269) target = $region48
        $region47: #{tpu_custom_call.1} parent=39 // pred_region
          %272 = dma.done [#allocation6], 2048
        $region48: #{tpu_custom_call.1} parent=39 // pred_fallthru
          _
        // Predicated region
        $region49: #{tpu_custom_call.1} parent=39 // pred_check
          %p273 = pneg %p82
        $region50: #{tpu_custom_call.1} parent=39 // pred_check_branch
          %275 = sbr.rel (%p273) target = $region52
        $region51: #{tpu_custom_call.1} parent=39 // pred_region
          %276 = dma.done [#allocation6], 2048
        $region52: #{tpu_custom_call.1} parent=39 // pred_fallthru
          _
        %s277 = sand.u32 %s24, 1
        %s278 = scalar_lea.sflag [#allocation9], %s277
        %s279 = sand.u32 %s95, 1
        %s280 = smul.addr %s279, 128
        %s281 = scalar_lea.vmem [#allocation8], %s280
        // Predicated region
        $region53: #{tpu_custom_call.1} parent=39 // pred_check
          %p282 = pneg %p108
        $region54: #{tpu_custom_call.1} parent=39 // pred_check_branch
          %284 = sbr.rel (%p282) target = $region56
        $region55: #{tpu_custom_call.1} parent=39 // pred_region
          %285 = dma.done %s278, 2048
        $region56: #{tpu_custom_call.1} parent=39 // pred_fallthru
          _
        %s286 = sand.u32 %s24, 1
        %s287 = scalar_lea.sflag [#allocation9], %s286
        %s288 = sand.u32 %s121, 1
        %s289 = smul.addr %s288, 128
        %s290 = scalar_lea.vmem [#allocation10], %s289
        // Predicated region
        $region57: #{tpu_custom_call.1} parent=39 // pred_check
          %p291 = pneg %p134
        $region58: #{tpu_custom_call.1} parent=39 // pred_check_branch
          %293 = sbr.rel (%p291) target = $region60
        $region59: #{tpu_custom_call.1} parent=39 // pred_region
          %294 = dma.done %s287, 2048
        $region60: #{tpu_custom_call.1} parent=39 // pred_fallthru
          _
        %p295 = pneg %p40
        %p296 = pneg %p37
        %p297 = pneg %p61
        %p298 = pneg %p58
        %p299 = pneg %p82
        %p300 = pneg %p79
        %s301 = sand.u32 %s24, 1
        %s302 = scalar_lea.sflag [#allocation9], %s301
        %s303 = sand.u32 %s95, 1
        %s304 = smul.addr %s303, 128
        %s305 = scalar_lea.vmem [#allocation8], %s304
        %p306 = pneg %p108
        %p307 = pneg %p105
        %s308 = sand.u32 %s24, 1
        %s309 = scalar_lea.sflag [#allocation9], %s308
        %s310 = sand.u32 %s121, 1
        %s311 = smul.addr %s310, 128
        %s312 = scalar_lea.vmem [#allocation10], %s311
        %p313 = pneg %p134
        %p314 = pneg %p131
        %p315 = pneg %p160
        %p316 = pneg %p157
        %s317 = sand.u32 %s147, 1
        %s318 = scalar_lea.sflag [#allocation4], %s317
        %s319 = sand.u32 %s147, 1
        %s320 = smul.addr %s319, 128
        %s321 = scalar_lea.vmem [#allocation11], %s320
        %s322 = smul.u32 16, %s24
        %s323 = smul.u32 16, %s24
        %s324 = smul.u32 16, %s24
        %v325 = vld [vmem:[#allocation2] sm:$0x1]
        %v326 = vld [vmem:[#allocation2 + $0x1] sm:$0x1]
        %v327 = vld [vmem:[%s290] sm:$0xff]
        %v328 = vld [vmem:[%s290 + $0x8] sm:$0xff]
        %v329 = vld [vmem:[%s290 + $0x10] sm:$0xff]
        %v330 = vld [vmem:[%s290 + $0x18] sm:$0xff]
        %v331 = vld [vmem:[%s290 + $0x20] sm:$0xff]
        %v332 = vld [vmem:[%s290 + $0x28] sm:$0xff]
        %v333 = vld [vmem:[%s290 + $0x30] sm:$0xff]
        %v334 = vld [vmem:[%s290 + $0x38] sm:$0xff]
        %v335 = vld [vmem:[%s290 + $0x40] sm:$0xff]
        %v336 = vld [vmem:[%s290 + $0x48] sm:$0xff]
        %v337 = vld [vmem:[%s290 + $0x50] sm:$0xff]
        %v338 = vld [vmem:[%s290 + $0x58] sm:$0xff]
        %v339 = vld [vmem:[%s290 + $0x60] sm:$0xff]
        %v340 = vld [vmem:[%s290 + $0x68] sm:$0xff]
        %v341 = vld [vmem:[%s290 + $0x70] sm:$0xff]
        %v342 = vld [vmem:[%s290 + $0x78] sm:$0xff]
        %343 = vadd.xlane.f32.xlu0 %v327
        %v344 = vpop.xlane.xlu0 %343
        %345 = vadd.xlane.f32.xlu0 %v328
        %v346 = vpop.xlane.xlu0 %345
        %347 = vadd.xlane.f32.xlu0 %v329
        %v348 = vpop.xlane.xlu0 %347
        %349 = vadd.xlane.f32.xlu0 %v330
        %v350 = vpop.xlane.xlu0 %349
        %351 = vadd.xlane.f32.xlu0 %v331
        %v352 = vpop.xlane.xlu0 %351
        %353 = vadd.xlane.f32.xlu0 %v332
        %v354 = vpop.xlane.xlu0 %353
        %355 = vadd.xlane.f32.xlu0 %v333
        %v356 = vpop.xlane.xlu0 %355
        %357 = vadd.xlane.f32.xlu0 %v334
        %v358 = vpop.xlane.xlu0 %357
        %359 = vadd.xlane.f32.xlu0 %v335
        %v360 = vpop.xlane.xlu0 %359
        %361 = vadd.xlane.f32.xlu0 %v336
        %v362 = vpop.xlane.xlu0 %361
        %363 = vadd.xlane.f32.xlu0 %v337
        %v364 = vpop.xlane.xlu0 %363
        %365 = vadd.xlane.f32.xlu0 %v338
        %v366 = vpop.xlane.xlu0 %365
        %367 = vadd.xlane.f32.xlu0 %v339
        %v368 = vpop.xlane.xlu0 %367
        %369 = vadd.xlane.f32.xlu0 %v340
        %v370 = vpop.xlane.xlu0 %369
        %371 = vadd.xlane.f32.xlu0 %v341
        %v372 = vpop.xlane.xlu0 %371
        %373 = vadd.xlane.f32.xlu0 %v342
        %v374 = vpop.xlane.xlu0 %373
        %v375 = vrcp.pop 128.0
        %v376 = vmul.f32 %v344, %v375
        %v377 = vmul.f32 %v346, %v375
        %v378 = vmul.f32 %v348, %v375
        %v379 = vmul.f32 %v350, %v375
        %v380 = vmul.f32 %v352, %v375
        %v381 = vmul.f32 %v354, %v375
        %v382 = vmul.f32 %v356, %v375
        %v383 = vmul.f32 %v358, %v375
        %v384 = vmul.f32 %v360, %v375
        %v385 = vmul.f32 %v362, %v375
        %v386 = vmul.f32 %v364, %v375
        %v387 = vmul.f32 %v366, %v375
        %v388 = vmul.f32 %v368, %v375
        %v389 = vmul.f32 %v370, %v375
        %v390 = vmul.f32 %v372, %v375
        %v391 = vmul.f32 %v374, %v375
        %v392 = vsub.f32 %v327, %v376
        %v393 = vsub.f32 %v328, %v377
        %v394 = vsub.f32 %v329, %v378
        %v395 = vsub.f32 %v330, %v379
        %v396 = vsub.f32 %v331, %v380
        %v397 = vsub.f32 %v332, %v381
        %v398 = vsub.f32 %v333, %v382
        %v399 = vsub.f32 %v334, %v383
        %v400 = vsub.f32 %v335, %v384
        %v401 = vsub.f32 %v336, %v385
        %v402 = vsub.f32 %v337, %v386
        %v403 = vsub.f32 %v338, %v387
        %v404 = vsub.f32 %v339, %v388
        %v405 = vsub.f32 %v340, %v389
        %v406 = vsub.f32 %v341, %v390
        %v407 = vsub.f32 %v342, %v391
        %v408 = vmul.f32 %v392, %v392
        %v409 = vmul.f32 %v393, %v393
        %v410 = vmul.f32 %v394, %v394
        %v411 = vmul.f32 %v395, %v395
        %v412 = vmul.f32 %v396, %v396
        %v413 = vmul.f32 %v397, %v397
        %v414 = vmul.f32 %v398, %v398
        %v415 = vmul.f32 %v399, %v399
        %v416 = vmul.f32 %v400, %v400
        %v417 = vmul.f32 %v401, %v401
        %v418 = vmul.f32 %v402, %v402
        %v419 = vmul.f32 %v403, %v403
        %v420 = vmul.f32 %v404, %v404
        %v421 = vmul.f32 %v405, %v405
        %v422 = vmul.f32 %v406, %v406
        %v423 = vmul.f32 %v407, %v407
        %424 = vadd.xlane.f32.xlu0 %v408
        %v425 = vpop.xlane.xlu0 %424
        %426 = vadd.xlane.f32.xlu0 %v409
        %v427 = vpop.xlane.xlu0 %426
        %428 = vadd.xlane.f32.xlu0 %v410
        %v429 = vpop.xlane.xlu0 %428
        %430 = vadd.xlane.f32.xlu0 %v411
        %v431 = vpop.xlane.xlu0 %430
        %432 = vadd.xlane.f32.xlu0 %v412
        %v433 = vpop.xlane.xlu0 %432
        %434 = vadd.xlane.f32.xlu0 %v413
        %v435 = vpop.xlane.xlu0 %434
        %436 = vadd.xlane.f32.xlu0 %v414
        %v437 = vpop.xlane.xlu0 %436
        %438 = vadd.xlane.f32.xlu0 %v415
        %v439 = vpop.xlane.xlu0 %438
        %440 = vadd.xlane.f32.xlu0 %v416
        %v441 = vpop.xlane.xlu0 %440
        %442 = vadd.xlane.f32.xlu0 %v417
        %v443 = vpop.xlane.xlu0 %442
        %444 = vadd.xlane.f32.xlu0 %v418
        %v445 = vpop.xlane.xlu0 %444
        %446 = vadd.xlane.f32.xlu0 %v419
        %v447 = vpop.xlane.xlu0 %446
        %448 = vadd.xlane.f32.xlu0 %v420
        %v449 = vpop.xlane.xlu0 %448
        %450 = vadd.xlane.f32.xlu0 %v421
        %v451 = vpop.xlane.xlu0 %450
        %452 = vadd.xlane.f32.xlu0 %v422
        %v453 = vpop.xlane.xlu0 %452
        %454 = vadd.xlane.f32.xlu0 %v423
        %v455 = vpop.xlane.xlu0 %454
        %v456 = vmul.f32 %v425, 0.007874016
        %v457 = vmul.f32 %v427, 0.007874016
        %v458 = vmul.f32 %v429, 0.007874016
        %v459 = vmul.f32 %v431, 0.007874016
        %v460 = vmul.f32 %v433, 0.007874016
        %v461 = vmul.f32 %v435, 0.007874016
        %v462 = vmul.f32 %v437, 0.007874016
        %v463 = vmul.f32 %v439, 0.007874016
        %v464 = vmul.f32 %v441, 0.007874016
        %v465 = vmul.f32 %v443, 0.007874016
        %v466 = vmul.f32 %v445, 0.007874016
        %v467 = vmul.f32 %v447, 0.007874016
        %v468 = vmul.f32 %v449, 0.007874016
        %v469 = vmul.f32 %v451, 0.007874016
        %v470 = vmul.f32 %v453, 0.007874016
        %v471 = vmul.f32 %v455, 0.007874016
        %v472 = vrsqrt.pop %v456
        %v473 = vmul.f32 %v456, %v472
        %vm474 = vcmp.eq.f32.partialorder %v456, inf
        %v475 = vsel %vm474, %v456, %v473
        %vm476 = vcmp.eq.f32.partialorder %v456, 0.0
        %v477 = vand.u32 %v456, 2147483648
        %v478 = vsel %vm476, %v477, %v475
        %v479 = vrsqrt.pop %v457
        %v480 = vmul.f32 %v457, %v479
        %vm481 = vcmp.eq.f32.partialorder %v457, inf
        %v482 = vsel %vm481, %v457, %v480
        %vm483 = vcmp.eq.f32.partialorder %v457, 0.0
        %v484 = vand.u32 %v457, 2147483648
        %v485 = vsel %vm483, %v484, %v482
        %v486 = vrsqrt.pop %v458
        %v487 = vmul.f32 %v458, %v486
        %vm488 = vcmp.eq.f32.partialorder %v458, inf
        %v489 = vsel %vm488, %v458, %v487
        %vm490 = vcmp.eq.f32.partialorder %v458, 0.0
        %v491 = vand.u32 %v458, 2147483648
        %v492 = vsel %vm490, %v491, %v489
        %v493 = vrsqrt.pop %v459
        %v494 = vmul.f32 %v459, %v493
        %vm495 = vcmp.eq.f32.partialorder %v459, inf
        %v496 = vsel %vm495, %v459, %v494
        %vm497 = vcmp.eq.f32.partialorder %v459, 0.0
        %v498 = vand.u32 %v459, 2147483648
        %v499 = vsel %vm497, %v498, %v496
        %v500 = vrsqrt.pop %v460
        %v501 = vmul.f32 %v460, %v500
        %vm502 = vcmp.eq.f32.partialorder %v460, inf
        %v503 = vsel %vm502, %v460, %v501
        %vm504 = vcmp.eq.f32.partialorder %v460, 0.0
        %v505 = vand.u32 %v460, 2147483648
        %v506 = vsel %vm504, %v505, %v503
        %v507 = vrsqrt.pop %v461
        %v508 = vmul.f32 %v461, %v507
        %vm509 = vcmp.eq.f32.partialorder %v461, inf
        %v510 = vsel %vm509, %v461, %v508
        %vm511 = vcmp.eq.f32.partialorder %v461, 0.0
        %v512 = vand.u32 %v461, 2147483648
        %v513 = vsel %vm511, %v512, %v510
        %v514 = vrsqrt.pop %v462
        %v515 = vmul.f32 %v462, %v514
        %vm516 = vcmp.eq.f32.partialorder %v462, inf
        %v517 = vsel %vm516, %v462, %v515
        %vm518 = vcmp.eq.f32.partialorder %v462, 0.0
        %v519 = vand.u32 %v462, 2147483648
        %v520 = vsel %vm518, %v519, %v517
        %v521 = vrsqrt.pop %v463
        %v522 = vmul.f32 %v463, %v521
        %vm523 = vcmp.eq.f32.partialorder %v463, inf
        %v524 = vsel %vm523, %v463, %v522
        %vm525 = vcmp.eq.f32.partialorder %v463, 0.0
        %v526 = vand.u32 %v463, 2147483648
        %v527 = vsel %vm525, %v526, %v524
        %v528 = vrsqrt.pop %v464
        %v529 = vmul.f32 %v464, %v528
        %vm530 = vcmp.eq.f32.partialorder %v464, inf
        %v531 = vsel %vm530, %v464, %v529
        %vm532 = vcmp.eq.f32.partialorder %v464, 0.0
        %v533 = vand.u32 %v464, 2147483648
        %v534 = vsel %vm532, %v533, %v531
        %v535 = vrsqrt.pop %v465
        %v536 = vmul.f32 %v465, %v535
        %vm537 = vcmp.eq.f32.partialorder %v465, inf
        %v538 = vsel %vm537, %v465, %v536
        %vm539 = vcmp.eq.f32.partialorder %v465, 0.0
        %v540 = vand.u32 %v465, 2147483648
        %v541 = vsel %vm539, %v540, %v538
        %v542 = vrsqrt.pop %v466
        %v543 = vmul.f32 %v466, %v542
        %vm544 = vcmp.eq.f32.partialorder %v466, inf
        %v545 = vsel %vm544, %v466, %v543
        %vm546 = vcmp.eq.f32.partialorder %v466, 0.0
        %v547 = vand.u32 %v466, 2147483648
        %v548 = vsel %vm546, %v547, %v545
        %v549 = vrsqrt.pop %v467
        %v550 = vmul.f32 %v467, %v549
        %vm551 = vcmp.eq.f32.partialorder %v467, inf
        %v552 = vsel %vm551, %v467, %v550
        %vm553 = vcmp.eq.f32.partialorder %v467, 0.0
        %v554 = vand.u32 %v467, 2147483648
        %v555 = vsel %vm553, %v554, %v552
        %v556 = vrsqrt.pop %v468
        %v557 = vmul.f32 %v468, %v556
        %vm558 = vcmp.eq.f32.partialorder %v468, inf
        %v559 = vsel %vm558, %v468, %v557
        %vm560 = vcmp.eq.f32.partialorder %v468, 0.0
        %v561 = vand.u32 %v468, 2147483648
        %v562 = vsel %vm560, %v561, %v559
        %v563 = vrsqrt.pop %v469
        %v564 = vmul.f32 %v469, %v563
        %vm565 = vcmp.eq.f32.partialorder %v469, inf
        %v566 = vsel %vm565, %v469, %v564
        %vm567 = vcmp.eq.f32.partialorder %v469, 0.0
        %v568 = vand.u32 %v469, 2147483648
        %v569 = vsel %vm567, %v568, %v566
        %v570 = vrsqrt.pop %v470
        %v571 = vmul.f32 %v470, %v570
        %vm572 = vcmp.eq.f32.partialorder %v470, inf
        %v573 = vsel %vm572, %v470, %v571
        %vm574 = vcmp.eq.f32.partialorder %v470, 0.0
        %v575 = vand.u32 %v470, 2147483648
        %v576 = vsel %vm574, %v575, %v573
        %v577 = vrsqrt.pop %v471
        %v578 = vmul.f32 %v471, %v577
        %vm579 = vcmp.eq.f32.partialorder %v471, inf
        %v580 = vsel %vm579, %v471, %v578
        %vm581 = vcmp.eq.f32.partialorder %v471, 0.0
        %v582 = vand.u32 %v471, 2147483648
        %v583 = vsel %vm581, %v582, %v580
        %v584 = vadd.f32 %v478, 1e-06
        %v585 = vadd.f32 %v485, 1e-06
        %v586 = vadd.f32 %v492, 1e-06
        %v587 = vadd.f32 %v499, 1e-06
        %v588 = vadd.f32 %v506, 1e-06
        %v589 = vadd.f32 %v513, 1e-06
        %v590 = vadd.f32 %v520, 1e-06
        %v591 = vadd.f32 %v527, 1e-06
        %v592 = vadd.f32 %v534, 1e-06
        %v593 = vadd.f32 %v541, 1e-06
        %v594 = vadd.f32 %v548, 1e-06
        %v595 = vadd.f32 %v555, 1e-06
        %v596 = vadd.f32 %v562, 1e-06
        %v597 = vadd.f32 %v569, 1e-06
        %v598 = vadd.f32 %v576, 1e-06
        %v599 = vadd.f32 %v583, 1e-06
        %v600 = vrcp.pop %v584
        %v601 = vrcp.pop %v585
        %v602 = vrcp.pop %v586
        %v603 = vrcp.pop %v587
        %v604 = vrcp.pop %v588
        %v605 = vrcp.pop %v589
        %v606 = vrcp.pop %v590
        %v607 = vrcp.pop %v591
        %v608 = vrcp.pop %v592
        %v609 = vrcp.pop %v593
        %v610 = vrcp.pop %v594
        %v611 = vrcp.pop %v595
        %v612 = vrcp.pop %v596
        %v613 = vrcp.pop %v597
        %v614 = vrcp.pop %v598
        %v615 = vrcp.pop %v599
        %v616 = vmul.f32 %v584, %v600
        %v617 = vmul.f32 %v585, %v601
        %v618 = vmul.f32 %v586, %v602
        %v619 = vmul.f32 %v587, %v603
        %v620 = vmul.f32 %v588, %v604
        %v621 = vmul.f32 %v589, %v605
        %v622 = vmul.f32 %v590, %v606
        %v623 = vmul.f32 %v591, %v607
        %v624 = vmul.f32 %v592, %v608
        %v625 = vmul.f32 %v593, %v609
        %v626 = vmul.f32 %v594, %v610
        %v627 = vmul.f32 %v595, %v611
        %v628 = vmul.f32 %v596, %v612
        %v629 = vmul.f32 %v597, %v613
        %v630 = vmul.f32 %v598, %v614
        %v631 = vmul.f32 %v599, %v615
        %v632 = vsub.f32 2.0, %v616
        %v633 = vsub.f32 2.0, %v617
        %v634 = vsub.f32 2.0, %v618
        %v635 = vsub.f32 2.0, %v619
        %v636 = vsub.f32 2.0, %v620
        %v637 = vsub.f32 2.0, %v621
        %v638 = vsub.f32 2.0, %v622
        %v639 = vsub.f32 2.0, %v623
        %v640 = vsub.f32 2.0, %v624
        %v641 = vsub.f32 2.0, %v625
        %v642 = vsub.f32 2.0, %v626
        %v643 = vsub.f32 2.0, %v627
        %v644 = vsub.f32 2.0, %v628
        %v645 = vsub.f32 2.0, %v629
        %v646 = vsub.f32 2.0, %v630
        %v647 = vsub.f32 2.0, %v631
        %v648 = vmul.f32 %v600, %v632
        %v649 = vmul.f32 %v601, %v633
        %v650 = vmul.f32 %v602, %v634
        %v651 = vmul.f32 %v603, %v635
        %v652 = vmul.f32 %v604, %v636
        %v653 = vmul.f32 %v605, %v637
        %v654 = vmul.f32 %v606, %v638
        %v655 = vmul.f32 %v607, %v639
        %v656 = vmul.f32 %v608, %v640
        %v657 = vmul.f32 %v609, %v641
        %v658 = vmul.f32 %v610, %v642
        %v659 = vmul.f32 %v611, %v643
        %v660 = vmul.f32 %v612, %v644
        %v661 = vmul.f32 %v613, %v645
        %v662 = vmul.f32 %v614, %v646
        %v663 = vmul.f32 %v615, %v647
        %v664 = vlaneseq
        %v665 = vshrl.u32 %v664, 7
        %v666 = vsub.s32 0, %v665
        %v667 = vrot.slane %v325, %v666
        %v668 = vmul.f32 %v667, %v392
        %v669 = vmul.f32 %v667, %v393
        %v670 = vmul.f32 %v667, %v394
        %v671 = vmul.f32 %v667, %v395
        %v672 = vmul.f32 %v667, %v396
        %v673 = vmul.f32 %v667, %v397
        %v674 = vmul.f32 %v667, %v398
        %v675 = vmul.f32 %v667, %v399
        %v676 = vmul.f32 %v667, %v400
        %v677 = vmul.f32 %v667, %v401
        %v678 = vmul.f32 %v667, %v402
        %v679 = vmul.f32 %v667, %v403
        %v680 = vmul.f32 %v667, %v404
        %v681 = vmul.f32 %v667, %v405
        %v682 = vmul.f32 %v667, %v406
        %v683 = vmul.f32 %v667, %v407
        %v684 = vmul.f32 %v668, %v648
        %v685 = vmul.f32 %v669, %v649
        %v686 = vmul.f32 %v670, %v650
        %v687 = vmul.f32 %v671, %v651
        %v688 = vmul.f32 %v672, %v652
        %v689 = vmul.f32 %v673, %v653
        %v690 = vmul.f32 %v674, %v654
        %v691 = vmul.f32 %v675, %v655
        %v692 = vmul.f32 %v676, %v656
        %v693 = vmul.f32 %v677, %v657
        %v694 = vmul.f32 %v678, %v658
        %v695 = vmul.f32 %v679, %v659
        %v696 = vmul.f32 %v680, %v660
        %v697 = vmul.f32 %v681, %v661
        %v698 = vmul.f32 %v682, %v662
        %v699 = vmul.f32 %v683, %v663
        %v700 = vlaneseq
        %v701 = vshrl.u32 %v700, 7
        %v702 = vsub.s32 0, %v701
        %v703 = vrot.slane %v326, %v702
        %v704 = vadd.f32 %v684, %v703
        %v705 = vadd.f32 %v685, %v703
        %v706 = vadd.f32 %v686, %v703
        %v707 = vadd.f32 %v687, %v703
        %v708 = vadd.f32 %v688, %v703
        %v709 = vadd.f32 %v689, %v703
        %v710 = vadd.f32 %v690, %v703
        %v711 = vadd.f32 %v691, %v703
        %v712 = vadd.f32 %v692, %v703
        %v713 = vadd.f32 %v693, %v703
        %v714 = vadd.f32 %v694, %v703
        %v715 = vadd.f32 %v695, %v703
        %v716 = vadd.f32 %v696, %v703
        %v717 = vadd.f32 %v697, %v703
        %v718 = vadd.f32 %v698, %v703
        %v719 = vadd.f32 %v699, %v703
        %v720 = vld [vmem:[#allocation5] sm:$0xff]
        %v721 = vld [vmem:[#allocation5 + $0x8] sm:$0xff]
        %v722 = vld [vmem:[#allocation5 + $0x10] sm:$0xff]
        %v723 = vld [vmem:[#allocation5 + $0x18] sm:$0xff]
        %v724 = vld [vmem:[#allocation5 + $0x20] sm:$0xff]
        %v725 = vld [vmem:[#allocation5 + $0x28] sm:$0xff]
        %v726 = vld [vmem:[#allocation5 + $0x30] sm:$0xff]
        %v727 = vld [vmem:[#allocation5 + $0x38] sm:$0xff]
        %v728 = vld [vmem:[#allocation5 + $0x40] sm:$0xff]
        %v729 = vld [vmem:[#allocation5 + $0x48] sm:$0xff]
        %v730 = vld [vmem:[#allocation5 + $0x50] sm:$0xff]
        %v731 = vld [vmem:[#allocation5 + $0x58] sm:$0xff]
        %v732 = vld [vmem:[#allocation5 + $0x60] sm:$0xff]
        %v733 = vld [vmem:[#allocation5 + $0x68] sm:$0xff]
        %v734 = vld [vmem:[#allocation5 + $0x70] sm:$0xff]
        %v735 = vld [vmem:[#allocation5 + $0x78] sm:$0xff]
        %736 = vmatprep.subr.mxu0 0.0
        %v737 = vand.u32 %v720, 4294901760
        %738 = vmatpush1.msra.mxu0 %v737
        %739 = vmatprep.subr.mxu0 0.0
        %v740 = vand.u32 %v721, 4294901760
        %741 = vmatpush1.msra.mxu0 %v740
        %742 = vmatprep.subr.mxu0 0.0
        %v743 = vand.u32 %v722, 4294901760
        %744 = vmatpush1.msra.mxu0 %v743
        %745 = vmatprep.subr.mxu0 0.0
        %v746 = vand.u32 %v723, 4294901760
        %747 = vmatpush1.msra.mxu0 %v746
        %748 = vmatprep.subr.mxu0 0.0
        %v749 = vand.u32 %v724, 4294901760
        %750 = vmatpush1.msra.mxu0 %v749
        %751 = vmatprep.subr.mxu0 0.0
        %v752 = vand.u32 %v725, 4294901760
        %753 = vmatpush1.msra.mxu0 %v752
        %754 = vmatprep.subr.mxu0 0.0
        %v755 = vand.u32 %v726, 4294901760
        %756 = vmatpush1.msra.mxu0 %v755
        %757 = vmatprep.subr.mxu0 0.0
        %v758 = vand.u32 %v727, 4294901760
        %759 = vmatpush1.msra.mxu0 %v758
        %760 = vmatprep.subr.mxu0 0.0
        %v761 = vand.u32 %v728, 4294901760
        %762 = vmatpush1.msra.mxu0 %v761
        %763 = vmatprep.subr.mxu0 0.0
        %v764 = vand.u32 %v729, 4294901760
        %765 = vmatpush1.msra.mxu0 %v764
        %766 = vmatprep.subr.mxu0 0.0
        %v767 = vand.u32 %v730, 4294901760
        %768 = vmatpush1.msra.mxu0 %v767
        %769 = vmatprep.subr.mxu0 0.0
        %v770 = vand.u32 %v731, 4294901760
        %771 = vmatpush1.msra.mxu0 %v770
        %772 = vmatprep.subr.mxu0 0.0
        %v773 = vand.u32 %v732, 4294901760
        %774 = vmatpush1.msra.mxu0 %v773
        %775 = vmatprep.subr.mxu0 0.0
        %v776 = vand.u32 %v733, 4294901760
        %777 = vmatpush1.msra.mxu0 %v776
        %778 = vmatprep.subr.mxu0 0.0
        %v779 = vand.u32 %v734, 4294901760
        %780 = vmatpush1.msra.mxu0 %v779
        %781 = vmatprep.subr.mxu0 0.0
        %v782 = vand.u32 %v735, 4294901760
        %783 = vmatpush1.msra.mxu0 %v782
        %784 = vmatprep.subr.mxu0 0.0
        %785 = vmatpush1.msra.mxu0 0.0
        %786 = vmatprep.subr.mxu0 0.0
        %787 = vmatpush1.msra.mxu0 0.0
        %788 = vmatprep.subr.mxu0 0.0
        %789 = vmatpush1.msra.mxu0 0.0
        %790 = vmatprep.subr.mxu0 0.0
        %791 = vmatpush1.msra.mxu0 0.0
        %792 = vmatprep.subr.mxu0 0.0
        %793 = vmatpush1.msra.mxu0 0.0
        %794 = vmatprep.subr.mxu0 0.0
        %795 = vmatpush1.msra.mxu0 0.0
        %796 = vmatprep.subr.mxu0 0.0
        %797 = vmatpush1.msra.mxu0 0.0
        %798 = vmatprep.subr.mxu0 0.0
        %799 = vmatpush1.msra.mxu0 0.0
        %800 = vmatprep.subr.mxu0 0.0
        %801 = vmatpush1.msra.mxu0 0.0
        %802 = vmatprep.subr.mxu0 0.0
        %803 = vmatpush1.msra.mxu0 0.0
        %804 = vmatprep.subr.mxu0 0.0
        %805 = vmatpush1.msra.mxu0 0.0
        %806 = vmatprep.subr.mxu0 0.0
        %807 = vmatpush1.msra.mxu0 0.0
        %808 = vmatprep.subr.mxu0 0.0
        %809 = vmatpush1.msra.mxu0 0.0
        %810 = vmatprep.subr.mxu0 0.0
        %811 = vmatpush1.msra.mxu0 0.0
        %812 = vmatprep.subr.mxu0 0.0
        %813 = vmatpush1.msra.mxu0 0.0
        %814 = vmatprep.subr.mxu0 0.0
        %815 = vmatpush1.msra.mxu0 0.0
        %816 = vmatprep.mubr.f32.mxu0 0.0
        %v817 = vand.u32 %v704, 4294901760
        %v818 = vsub.f32 %v704, %v817
        %v819 = vand.u32 %v818, 4294901760
        %v820 = vsub.f32 %v818, %v819
        %v821 = vand.u32 %v820, 4294901760
        %822 = vmatmul.mubr.f32.gmra.mrb[0].mxu0 %v821
        %v823 = vpop.f32.mrb[0].mxu0
        %v824 = vadd.f32 0.0, %v823
        %v825 = vpop.f32.mrb[0].mxu0
        %826 = vmatprep.mubr.f32.mxu0 0.0
        %v827 = vand.u32 %v705, 4294901760
        %v828 = vsub.f32 %v705, %v827
        %v829 = vand.u32 %v828, 4294901760
        %v830 = vsub.f32 %v828, %v829
        %v831 = vand.u32 %v830, 4294901760
        %832 = vmatmul.mubr.f32.gmra.mrb[0].mxu0 %v831
        %v833 = vpop.f32.mrb[0].mxu0
        %v834 = vadd.f32 0.0, %v833
        %v835 = vpop.f32.mrb[0].mxu0
        %836 = vmatprep.mubr.f32.mxu0 0.0
        %v837 = vand.u32 %v706, 4294901760
        %v838 = vsub.f32 %v706, %v837
        %v839 = vand.u32 %v838, 4294901760
        %v840 = vsub.f32 %v838, %v839
        %v841 = vand.u32 %v840, 4294901760
        %842 = vmatmul.mubr.f32.gmra.mrb[0].mxu0 %v841
        %v843 = vpop.f32.mrb[0].mxu0
        %v844 = vadd.f32 0.0, %v843
        %v845 = vpop.f32.mrb[0].mxu0
        %846 = vmatprep.mubr.f32.mxu0 0.0
        %v847 = vand.u32 %v707, 4294901760
        %v848 = vsub.f32 %v707, %v847
        %v849 = vand.u32 %v848, 4294901760
        %v850 = vsub.f32 %v848, %v849
        %v851 = vand.u32 %v850, 4294901760
        %852 = vmatmul.mubr.f32.gmra.mrb[0].mxu0 %v851
        %v853 = vpop.f32.mrb[0].mxu0
        %v854 = vadd.f32 0.0, %v853
        %v855 = vpop.f32.mrb[0].mxu0
        %856 = vmatprep.mubr.f32.mxu0 0.0
        %v857 = vand.u32 %v708, 4294901760
        %v858 = vsub.f32 %v708, %v857
        %v859 = vand.u32 %v858, 4294901760
        %v860 = vsub.f32 %v858, %v859
        %v861 = vand.u32 %v860, 4294901760
        %862 = vmatmul.mubr.f32.gmra.mrb[0].mxu0 %v861
        %v863 = vpop.f32.mrb[0].mxu0
        %v864 = vadd.f32 0.0, %v863
        %v865 = vpop.f32.mrb[0].mxu0
        %866 = vmatprep.mubr.f32.mxu0 0.0
        %v867 = vand.u32 %v709, 4294901760
        %v868 = vsub.f32 %v709, %v867
        %v869 = vand.u32 %v868, 4294901760
        %v870 = vsub.f32 %v868, %v869
        %v871 = vand.u32 %v870, 4294901760
        %872 = vmatmul.mubr.f32.gmra.mrb[0].mxu0 %v871
        %v873 = vpop.f32.mrb[0].mxu0
        %v874 = vadd.f32 0.0, %v873
        %v875 = vpop.f32.mrb[0].mxu0
        %876 = vmatprep.mubr.f32.mxu0 0.0
        %v877 = vand.u32 %v710, 4294901760
        %v878 = vsub.f32 %v710, %v877
        %v879 = vand.u32 %v878, 4294901760
        %v880 = vsub.f32 %v878, %v879
        %v881 = vand.u32 %v880, 4294901760
        %882 = vmatmul.mubr.f32.gmra.mrb[0].mxu0 %v881
        %v883 = vpop.f32.mrb[0].mxu0
        %v884 = vadd.f32 0.0, %v883
        %v885 = vpop.f32.mrb[0].mxu0
        %886 = vmatprep.mubr.f32.mxu0 0.0
        %v887 = vand.u32 %v711, 4294901760
        %v888 = vsub.f32 %v711, %v887
        %v889 = vand.u32 %v888, 4294901760
        %v890 = vsub.f32 %v888, %v889
        %v891 = vand.u32 %v890, 4294901760
        %892 = vmatmul.mubr.f32.gmra.mrb[0].mxu0 %v891
        %v893 = vpop.f32.mrb[0].mxu0
        %v894 = vadd.f32 0.0, %v893
        %v895 = vpop.f32.mrb[0].mxu0
        %896 = vmatprep.mubr.f32.mxu0 0.0
        %v897 = vand.u32 %v712, 4294901760
        %v898 = vsub.f32 %v712, %v897
        %v899 = vand.u32 %v898, 4294901760
        %v900 = vsub.f32 %v898, %v899
        %v901 = vand.u32 %v900, 4294901760
        %902 = vmatmul.mubr.f32.gmra.mrb[0].mxu0 %v901
        %v903 = vpop.f32.mrb[0].mxu0
        %v904 = vadd.f32 0.0, %v903
        %v905 = vpop.f32.mrb[0].mxu0
        %906 = vmatprep.mubr.f32.mxu0 0.0
        %v907 = vand.u32 %v713, 4294901760
        %v908 = vsub.f32 %v713, %v907
        %v909 = vand.u32 %v908, 4294901760
        %v910 = vsub.f32 %v908, %v909
        %v911 = vand.u32 %v910, 4294901760
        %912 = vmatmul.mubr.f32.gmra.mrb[0].mxu0 %v911
        %v913 = vpop.f32.mrb[0].mxu0
        %v914 = vadd.f32 0.0, %v913
        %v915 = vpop.f32.mrb[0].mxu0
        %916 = vmatprep.mubr.f32.mxu0 0.0
        %v917 = vand.u32 %v714, 4294901760
        %v918 = vsub.f32 %v714, %v917
        %v919 = vand.u32 %v918, 4294901760
        %v920 = vsub.f32 %v918, %v919
        %v921 = vand.u32 %v920, 4294901760
        %922 = vmatmul.mubr.f32.gmra.mrb[0].mxu0 %v921
        %v923 = vpop.f32.mrb[0].mxu0
        %v924 = vadd.f32 0.0, %v923
        %v925 = vpop.f32.mrb[0].mxu0
        %926 = vmatprep.mubr.f32.mxu0 0.0
        %v927 = vand.u32 %v715, 4294901760
        %v928 = vsub.f32 %v715, %v927
        %v929 = vand.u32 %v928, 4294901760
        %v930 = vsub.f32 %v928, %v929
        %v931 = vand.u32 %v930, 4294901760
        %932 = vmatmul.mubr.f32.gmra.mrb[0].mxu0 %v931
        %v933 = vpop.f32.mrb[0].mxu0
        %v934 = vadd.f32 0.0, %v933
        %v935 = vpop.f32.mrb[0].mxu0
        %936 = vmatprep.mubr.f32.mxu0 0.0
        %v937 = vand.u32 %v716, 4294901760
        %v938 = vsub.f32 %v716, %v937
        %v939 = vand.u32 %v938, 4294901760
        %v940 = vsub.f32 %v938, %v939
        %v941 = vand.u32 %v940, 4294901760
        %942 = vmatmul.mubr.f32.gmra.mrb[0].mxu0 %v941
        %v943 = vpop.f32.mrb[0].mxu0
        %v944 = vadd.f32 0.0, %v943
        %v945 = vpop.f32.mrb[0].mxu0
        %946 = vmatprep.mubr.f32.mxu0 0.0
        %v947 = vand.u32 %v717, 4294901760
        %v948 = vsub.f32 %v717, %v947
        %v949 = vand.u32 %v948, 4294901760
        %v950 = vsub.f32 %v948, %v949
        %v951 = vand.u32 %v950, 4294901760
        %952 = vmatmul.mubr.f32.gmra.mrb[0].mxu0 %v951
        %v953 = vpop.f32.mrb[0].mxu0
        %v954 = vadd.f32 0.0, %v953
        %v955 = vpop.f32.mrb[0].mxu0
        %956 = vmatprep.mubr.f32.mxu0 0.0
        %v957 = vand.u32 %v718, 4294901760
        %v958 = vsub.f32 %v718, %v957
        %v959 = vand.u32 %v958, 4294901760
        %v960 = vsub.f32 %v958, %v959
        %v961 = vand.u32 %v960, 4294901760
        %962 = vmatmul.mubr.f32.gmra.mrb[0].mxu0 %v961
        %v963 = vpop.f32.mrb[0].mxu0
        %v964 = vadd.f32 0.0, %v963
        %v965 = vpop.f32.mrb[0].mxu0
        %966 = vmatprep.mubr.f32.mxu0 0.0
        %v967 = vand.u32 %v719, 4294901760
        %v968 = vsub.f32 %v719, %v967
        %v969 = vand.u32 %v968, 4294901760
        %v970 = vsub.f32 %v968, %v969
        %v971 = vand.u32 %v970, 4294901760
        %972 = vmatmul.mubr.f32.gmra.mrb[0].mxu0 %v971
        %v973 = vpop.f32.mrb[0].mxu0
        %v974 = vadd.f32 0.0, %v973
        %v975 = vpop.f32.mrb[0].mxu0
        %976 = vdwg.mxu0
        %977 = vmatprep.subr.mxu0 0.0
        %v978 = vand.u32 %v720, 4294901760
        %v979 = vsub.f32 %v720, %v978
        %v980 = vand.u32 %v979, 4294901760
        %v981 = vsub.f32 %v979, %v980
        %v982 = vand.u32 %v981, 4294901760
        %983 = vmatpush1.msra.mxu0 %v982
        %984 = vmatprep.subr.mxu0 0.0
        %v985 = vand.u32 %v721, 4294901760
        %v986 = vsub.f32 %v721, %v985
        %v987 = vand.u32 %v986, 4294901760
        %v988 = vsub.f32 %v986, %v987
        %v989 = vand.u32 %v988, 4294901760
        %990 = vmatpush1.msra.mxu0 %v989
        %991 = vmatprep.subr.mxu0 0.0
        %v992 = vand.u32 %v722, 4294901760
        %v993 = vsub.f32 %v722, %v992
        %v994 = vand.u32 %v993, 4294901760
        %v995 = vsub.f32 %v993, %v994
        %v996 = vand.u32 %v995, 4294901760
        %997 = vmatpush1.msra.mxu0 %v996
        %998 = vmatprep.subr.mxu0 0.0
        %v999 = vand.u32 %v723, 4294901760
        %v1000 = vsub.f32 %v723, %v999
        %v1001 = vand.u32 %v1000, 4294901760
        %v1002 = vsub.f32 %v1000, %v1001
        %v1003 = vand.u32 %v1002, 4294901760
        %1004 = vmatpush1.msra.mxu0 %v1003
        %1005 = vmatprep.subr.mxu0 0.0
        %v1006 = vand.u32 %v724, 4294901760
        %v1007 = vsub.f32 %v724, %v1006
        %v1008 = vand.u32 %v1007, 4294901760
        %v1009 = vsub.f32 %v1007, %v1008
        %v1010 = vand.u32 %v1009, 4294901760
        %1011 = vmatpush1.msra.mxu0 %v1010
        %1012 = vmatprep.subr.mxu0 0.0
        %v1013 = vand.u32 %v725, 4294901760
        %v1014 = vsub.f32 %v725, %v1013
        %v1015 = vand.u32 %v1014, 4294901760
        %v1016 = vsub.f32 %v1014, %v1015
        %v1017 = vand.u32 %v1016, 4294901760
        %1018 = vmatpush1.msra.mxu0 %v1017
        %1019 = vmatprep.subr.mxu0 0.0
        %v1020 = vand.u32 %v726, 4294901760
        %v1021 = vsub.f32 %v726, %v1020
        %v1022 = vand.u32 %v1021, 4294901760
        %v1023 = vsub.f32 %v1021, %v1022
        %v1024 = vand.u32 %v1023, 4294901760
        %1025 = vmatpush1.msra.mxu0 %v1024
        %1026 = vmatprep.subr.mxu0 0.0
        %v1027 = vand.u32 %v727, 4294901760
        %v1028 = vsub.f32 %v727, %v1027
        %v1029 = vand.u32 %v1028, 4294901760
        %v1030 = vsub.f32 %v1028, %v1029
        %v1031 = vand.u32 %v1030, 4294901760
        %1032 = vmatpush1.msra.mxu0 %v1031
        %1033 = vmatprep.subr.mxu0 0.0
        %v1034 = vand.u32 %v728, 4294901760
        %v1035 = vsub.f32 %v728, %v1034
        %v1036 = vand.u32 %v1035, 4294901760
        %v1037 = vsub.f32 %v1035, %v1036
        %v1038 = vand.u32 %v1037, 4294901760
        %1039 = vmatpush1.msra.mxu0 %v1038
        %1040 = vmatprep.subr.mxu0 0.0
        %v1041 = vand.u32 %v729, 4294901760
        %v1042 = vsub.f32 %v729, %v1041
        %v1043 = vand.u32 %v1042, 4294901760
        %v1044 = vsub.f32 %v1042, %v1043
        %v1045 = vand.u32 %v1044, 4294901760
        %1046 = vmatpush1.msra.mxu0 %v1045
        %1047 = vmatprep.subr.mxu0 0.0
        %v1048 = vand.u32 %v730, 4294901760
        %v1049 = vsub.f32 %v730, %v1048
        %v1050 = vand.u32 %v1049, 4294901760
        %v1051 = vsub.f32 %v1049, %v1050
        %v1052 = vand.u32 %v1051, 4294901760
        %1053 = vmatpush1.msra.mxu0 %v1052
        %1054 = vmatprep.subr.mxu0 0.0
        %v1055 = vand.u32 %v731, 4294901760
        %v1056 = vsub.f32 %v731, %v1055
        %v1057 = vand.u32 %v1056, 4294901760
        %v1058 = vsub.f32 %v1056, %v1057
        %v1059 = vand.u32 %v1058, 4294901760
        %1060 = vmatpush1.msra.mxu0 %v1059
        %1061 = vmatprep.subr.mxu0 0.0
        %v1062 = vand.u32 %v732, 4294901760
        %v1063 = vsub.f32 %v732, %v1062
        %v1064 = vand.u32 %v1063, 4294901760
        %v1065 = vsub.f32 %v1063, %v1064
        %v1066 = vand.u32 %v1065, 4294901760
        %1067 = vmatpush1.msra.mxu0 %v1066
        %1068 = vmatprep.subr.mxu0 0.0
        %v1069 = vand.u32 %v733, 4294901760
        %v1070 = vsub.f32 %v733, %v1069
        %v1071 = vand.u32 %v1070, 4294901760
        %v1072 = vsub.f32 %v1070, %v1071
        %v1073 = vand.u32 %v1072, 4294901760
        %1074 = vmatpush1.msra.mxu0 %v1073
        %1075 = vmatprep.subr.mxu0 0.0
        %v1076 = vand.u32 %v734, 4294901760
        %v1077 = vsub.f32 %v734, %v1076
        %v1078 = vand.u32 %v1077, 4294901760
        %v1079 = vsub.f32 %v1077, %v1078
        %v1080 = vand.u32 %v1079, 4294901760
        %1081 = vmatpush1.msra.mxu0 %v1080
        %1082 = vmatprep.subr.mxu0 0.0
        %v1083 = vand.u32 %v735, 4294901760
        %v1084 = vsub.f32 %v735, %v1083
        %v1085 = vand.u32 %v1084, 4294901760
        %v1086 = vsub.f32 %v1084, %v1085
        %v1087 = vand.u32 %v1086, 4294901760
        %1088 = vmatpush1.msra.mxu0 %v1087
        %1089 = vmatprep.subr.mxu0 0.0
        %1090 = vmatpush1.msra.mxu0 0.0
        %1091 = vmatprep.subr.mxu0 0.0
        %1092 = vmatpush1.msra.mxu0 0.0
        %1093 = vmatprep.subr.mxu0 0.0
        %1094 = vmatpush1.msra.mxu0 0.0
        %1095 = vmatprep.subr.mxu0 0.0
        %1096 = vmatpush1.msra.mxu0 0.0
        %1097 = vmatprep.subr.mxu0 0.0
        %1098 = vmatpush1.msra.mxu0 0.0
        %1099 = vmatprep.subr.mxu0 0.0
        %1100 = vmatpush1.msra.mxu0 0.0
        %1101 = vmatprep.subr.mxu0 0.0
        %1102 = vmatpush1.msra.mxu0 0.0
        %1103 = vmatprep.subr.mxu0 0.0
        %1104 = vmatpush1.msra.mxu0 0.0
        %1105 = vmatprep.subr.mxu0 0.0
        %1106 = vmatpush1.msra.mxu0 0.0
        %1107 = vmatprep.subr.mxu0 0.0
        %1108 = vmatpush1.msra.mxu0 0.0
        %1109 = vmatprep.subr.mxu0 0.0
        %1110 = vmatpush1.msra.mxu0 0.0
        %1111 = vmatprep.subr.mxu0 0.0
        %1112 = vmatpush1.msra.mxu0 0.0
        %1113 = vmatprep.subr.mxu0 0.0
        %1114 = vmatpush1.msra.mxu0 0.0
        %1115 = vmatprep.subr.mxu0 0.0
        %1116 = vmatpush1.msra.mxu0 0.0
        %1117 = vmatprep.subr.mxu0 0.0
        %1118 = vmatpush1.msra.mxu0 0.0
        %1119 = vmatprep.subr.mxu0 0.0
        %1120 = vmatpush1.msra.mxu0 0.0
        %1121 = vmatprep.mubr.f32.mxu0 0.0
        %v1122 = vand.u32 %v704, 4294901760
        %1123 = vmatmul.mubr.f32.gmra.mrb[0].mxu0 %v1122
        %v1124 = vpop.f32.mrb[0].mxu0
        %v1125 = vadd.f32 %v824, %v1124
        %v1126 = vpop.f32.mrb[0].mxu0
        %1127 = vmatprep.mubr.f32.mxu0 0.0
        %v1128 = vand.u32 %v705, 4294901760
        %1129 = vmatmul.mubr.f32.gmra.mrb[0].mxu0 %v1128
        %v1130 = vpop.f32.mrb[0].mxu0
        %v1131 = vadd.f32 %v834, %v1130
        %v1132 = vpop.f32.mrb[0].mxu0
        %1133 = vmatprep.mubr.f32.mxu0 0.0
        %v1134 = vand.u32 %v706, 4294901760
        %1135 = vmatmul.mubr.f32.gmra.mrb[0].mxu0 %v1134
        %v1136 = vpop.f32.mrb[0].mxu0
        %v1137 = vadd.f32 %v844, %v1136
        %v1138 = vpop.f32.mrb[0].mxu0
        %1139 = vmatprep.mubr.f32.mxu0 0.0
        %v1140 = vand.u32 %v707, 4294901760
        %1141 = vmatmul.mubr.f32.gmra.mrb[0].mxu0 %v1140
        %v1142 = vpop.f32.mrb[0].mxu0
        %v1143 = vadd.f32 %v854, %v1142
        %v1144 = vpop.f32.mrb[0].mxu0
        %1145 = vmatprep.mubr.f32.mxu0 0.0
        %v1146 = vand.u32 %v708, 4294901760
        %1147 = vmatmul.mubr.f32.gmra.mrb[0].mxu0 %v1146
        %v1148 = vpop.f32.mrb[0].mxu0
        %v1149 = vadd.f32 %v864, %v1148
        %v1150 = vpop.f32.mrb[0].mxu0
        %1151 = vmatprep.mubr.f32.mxu0 0.0
        %v1152 = vand.u32 %v709, 4294901760
        %1153 = vmatmul.mubr.f32.gmra.mrb[0].mxu0 %v1152
        %v1154 = vpop.f32.mrb[0].mxu0
        %v1155 = vadd.f32 %v874, %v1154
        %v1156 = vpop.f32.mrb[0].mxu0
        %1157 = vmatprep.mubr.f32.mxu0 0.0
        %v1158 = vand.u32 %v710, 4294901760
        %1159 = vmatmul.mubr.f32.gmra.mrb[0].mxu0 %v1158
        %v1160 = vpop.f32.mrb[0].mxu0
        %v1161 = vadd.f32 %v884, %v1160
        %v1162 = vpop.f32.mrb[0].mxu0
        %1163 = vmatprep.mubr.f32.mxu0 0.0
        %v1164 = vand.u32 %v711, 4294901760
        %1165 = vmatmul.mubr.f32.gmra.mrb[0].mxu0 %v1164
        %v1166 = vpop.f32.mrb[0].mxu0
        %v1167 = vadd.f32 %v894, %v1166
        %v1168 = vpop.f32.mrb[0].mxu0
        %1169 = vmatprep.mubr.f32.mxu0 0.0
        %v1170 = vand.u32 %v712, 4294901760
        %1171 = vmatmul.mubr.f32.gmra.mrb[0].mxu0 %v1170
        %v1172 = vpop.f32.mrb[0].mxu0
        %v1173 = vadd.f32 %v904, %v1172
        %v1174 = vpop.f32.mrb[0].mxu0
        %1175 = vmatprep.mubr.f32.mxu0 0.0
        %v1176 = vand.u32 %v713, 4294901760
        %1177 = vmatmul.mubr.f32.gmra.mrb[0].mxu0 %v1176
        %v1178 = vpop.f32.mrb[0].mxu0
        %v1179 = vadd.f32 %v914, %v1178
        %v1180 = vpop.f32.mrb[0].mxu0
        %1181 = vmatprep.mubr.f32.mxu0 0.0
        %v1182 = vand.u32 %v714, 4294901760
        %1183 = vmatmul.mubr.f32.gmra.mrb[0].mxu0 %v1182
        %v1184 = vpop.f32.mrb[0].mxu0
        %v1185 = vadd.f32 %v924, %v1184
        %v1186 = vpop.f32.mrb[0].mxu0
        %1187 = vmatprep.mubr.f32.mxu0 0.0
        %v1188 = vand.u32 %v715, 4294901760
        %1189 = vmatmul.mubr.f32.gmra.mrb[0].mxu0 %v1188
        %v1190 = vpop.f32.mrb[0].mxu0
        %v1191 = vadd.f32 %v934, %v1190
        %v1192 = vpop.f32.mrb[0].mxu0
        %1193 = vmatprep.mubr.f32.mxu0 0.0
        %v1194 = vand.u32 %v716, 4294901760
        %1195 = vmatmul.mubr.f32.gmra.mrb[0].mxu0 %v1194
        %v1196 = vpop.f32.mrb[0].mxu0
        %v1197 = vadd.f32 %v944, %v1196
        %v1198 = vpop.f32.mrb[0].mxu0
        %1199 = vmatprep.mubr.f32.mxu0 0.0
        %v1200 = vand.u32 %v717, 4294901760
        %1201 = vmatmul.mubr.f32.gmra.mrb[0].mxu0 %v1200
        %v1202 = vpop.f32.mrb[0].mxu0
        %v1203 = vadd.f32 %v954, %v1202
        %v1204 = vpop.f32.mrb[0].mxu0
        %1205 = vmatprep.mubr.f32.mxu0 0.0
        %v1206 = vand.u32 %v718, 4294901760
        %1207 = vmatmul.mubr.f32.gmra.mrb[0].mxu0 %v1206
        %v1208 = vpop.f32.mrb[0].mxu0
        %v1209 = vadd.f32 %v964, %v1208
        %v1210 = vpop.f32.mrb[0].mxu0
        %1211 = vmatprep.mubr.f32.mxu0 0.0
        %v1212 = vand.u32 %v719, 4294901760
        %1213 = vmatmul.mubr.f32.gmra.mrb[0].mxu0 %v1212
        %v1214 = vpop.f32.mrb[0].mxu0
        %v1215 = vadd.f32 %v974, %v1214
        %v1216 = vpop.f32.mrb[0].mxu0
        %1217 = vdwg.mxu0
        %1218 = vmatprep.subr.mxu0 0.0
        %v1219 = vand.u32 %v720, 4294901760
        %v1220 = vsub.f32 %v720, %v1219
        %1221 = vmatpush1.msra.mxu0 %v1220
        %1222 = vmatprep.subr.mxu0 0.0
        %v1223 = vand.u32 %v721, 4294901760
        %v1224 = vsub.f32 %v721, %v1223
        %1225 = vmatpush1.msra.mxu0 %v1224
        %1226 = vmatprep.subr.mxu0 0.0
        %v1227 = vand.u32 %v722, 4294901760
        %v1228 = vsub.f32 %v722, %v1227
        %1229 = vmatpush1.msra.mxu0 %v1228
        %1230 = vmatprep.subr.mxu0 0.0
        %v1231 = vand.u32 %v723, 4294901760
        %v1232 = vsub.f32 %v723, %v1231
        %1233 = vmatpush1.msra.mxu0 %v1232
        %1234 = vmatprep.subr.mxu0 0.0
        %v1235 = vand.u32 %v724, 4294901760
        %v1236 = vsub.f32 %v724, %v1235
        %1237 = vmatpush1.msra.mxu0 %v1236
        %1238 = vmatprep.subr.mxu0 0.0
        %v1239 = vand.u32 %v725, 4294901760
        %v1240 = vsub.f32 %v725, %v1239
        %1241 = vmatpush1.msra.mxu0 %v1240
        %1242 = vmatprep.subr.mxu0 0.0
        %v1243 = vand.u32 %v726, 4294901760
        %v1244 = vsub.f32 %v726, %v1243
        %1245 = vmatpush1.msra.mxu0 %v1244
        %1246 = vmatprep.subr.mxu0 0.0
        %v1247 = vand.u32 %v727, 4294901760
        %v1248 = vsub.f32 %v727, %v1247
        %1249 = vmatpush1.msra.mxu0 %v1248
        %1250 = vmatprep.subr.mxu0 0.0
        %v1251 = vand.u32 %v728, 4294901760
        %v1252 = vsub.f32 %v728, %v1251
        %1253 = vmatpush1.msra.mxu0 %v1252
        %1254 = vmatprep.subr.mxu0 0.0
        %v1255 = vand.u32 %v729, 4294901760
        %v1256 = vsub.f32 %v729, %v1255
        %1257 = vmatpush1.msra.mxu0 %v1256
        %1258 = vmatprep.subr.mxu0 0.0
        %v1259 = vand.u32 %v730, 4294901760
        %v1260 = vsub.f32 %v730, %v1259
        %1261 = vmatpush1.msra.mxu0 %v1260
        %1262 = vmatprep.subr.mxu0 0.0
        %v1263 = vand.u32 %v731, 4294901760
        %v1264 = vsub.f32 %v731, %v1263
        %1265 = vmatpush1.msra.mxu0 %v1264
        %1266 = vmatprep.subr.mxu0 0.0
        %v1267 = vand.u32 %v732, 4294901760
        %v1268 = vsub.f32 %v732, %v1267
        %1269 = vmatpush1.msra.mxu0 %v1268
        %1270 = vmatprep.subr.mxu0 0.0
        %v1271 = vand.u32 %v733, 4294901760
        %v1272 = vsub.f32 %v733, %v1271
        %1273 = vmatpush1.msra.mxu0 %v1272
        %1274 = vmatprep.subr.mxu0 0.0
        %v1275 = vand.u32 %v734, 4294901760
        %v1276 = vsub.f32 %v734, %v1275
        %1277 = vmatpush1.msra.mxu0 %v1276
        %1278 = vmatprep.subr.mxu0 0.0
        %v1279 = vand.u32 %v735, 4294901760
        %v1280 = vsub.f32 %v735, %v1279
        %1281 = vmatpush1.msra.mxu0 %v1280
        %1282 = vmatprep.subr.mxu0 0.0
        %1283 = vmatpush1.msra.mxu0 0.0
        %1284 = vmatprep.subr.mxu0 0.0
        %1285 = vmatpush1.msra.mxu0 0.0
        %1286 = vmatprep.subr.mxu0 0.0
        %1287 = vmatpush1.msra.mxu0 0.0
        %1288 = vmatprep.subr.mxu0 0.0
        %1289 = vmatpush1.msra.mxu0 0.0
        %1290 = vmatprep.subr.mxu0 0.0
        %1291 = vmatpush1.msra.mxu0 0.0
        %1292 = vmatprep.subr.mxu0 0.0
        %1293 = vmatpush1.msra.mxu0 0.0
        %1294 = vmatprep.subr.mxu0 0.0
        %1295 = vmatpush1.msra.mxu0 0.0
        %1296 = vmatprep.subr.mxu0 0.0
        %1297 = vmatpush1.msra.mxu0 0.0
        %1298 = vmatprep.subr.mxu0 0.0
        %1299 = vmatpush1.msra.mxu0 0.0
        %1300 = vmatprep.subr.mxu0 0.0
        %1301 = vmatpush1.msra.mxu0 0.0
        %1302 = vmatprep.subr.mxu0 0.0
        %1303 = vmatpush1.msra.mxu0 0.0
        %1304 = vmatprep.subr.mxu0 0.0
        %1305 = vmatpush1.msra.mxu0 0.0
        %1306 = vmatprep.subr.mxu0 0.0
        %1307 = vmatpush1.msra.mxu0 0.0
        %1308 = vmatprep.subr.mxu0 0.0
        %1309 = vmatpush1.msra.mxu0 0.0
        %1310 = vmatprep.subr.mxu0 0.0
        %1311 = vmatpush1.msra.mxu0 0.0
        %1312 = vmatprep.subr.mxu0 0.0
        %1313 = vmatpush1.msra.mxu0 0.0
        %1314 = vmatprep.mubr.f32.mxu0 0.0
        %v1315 = vand.u32 %v704, 4294901760
        %v1316 = vsub.f32 %v704, %v1315
        %1317 = vmatmul.mubr.f32.gmra.mrb[0].mxu0 %v1316
        %v1318 = vpop.f32.mrb[0].mxu0
        %v1319 = vadd.f32 %v1125, %v1318
        %v1320 = vpop.f32.mrb[0].mxu0
        %1321 = vmatprep.mubr.f32.mxu0 0.0
        %v1322 = vand.u32 %v705, 4294901760
        %v1323 = vsub.f32 %v705, %v1322
        %1324 = vmatmul.mubr.f32.gmra.mrb[0].mxu0 %v1323
        %v1325 = vpop.f32.mrb[0].mxu0
        %v1326 = vadd.f32 %v1131, %v1325
        %v1327 = vpop.f32.mrb[0].mxu0
        %1328 = vmatprep.mubr.f32.mxu0 0.0
        %v1329 = vand.u32 %v706, 4294901760
        %v1330 = vsub.f32 %v706, %v1329
        %1331 = vmatmul.mubr.f32.gmra.mrb[0].mxu0 %v1330
        %v1332 = vpop.f32.mrb[0].mxu0
        %v1333 = vadd.f32 %v1137, %v1332
        %v1334 = vpop.f32.mrb[0].mxu0
        %1335 = vmatprep.mubr.f32.mxu0 0.0
        %v1336 = vand.u32 %v707, 4294901760
        %v1337 = vsub.f32 %v707, %v1336
        %1338 = vmatmul.mubr.f32.gmra.mrb[0].mxu0 %v1337
        %v1339 = vpop.f32.mrb[0].mxu0
        %v1340 = vadd.f32 %v1143, %v1339
        %v1341 = vpop.f32.mrb[0].mxu0
        %1342 = vmatprep.mubr.f32.mxu0 0.0
        %v1343 = vand.u32 %v708, 4294901760
        %v1344 = vsub.f32 %v708, %v1343
        %1345 = vmatmul.mubr.f32.gmra.mrb[0].mxu0 %v1344
        %v1346 = vpop.f32.mrb[0].mxu0
        %v1347 = vadd.f32 %v1149, %v1346
        %v1348 = vpop.f32.mrb[0].mxu0
        %1349 = vmatprep.mubr.f32.mxu0 0.0
        %v1350 = vand.u32 %v709, 4294901760
        %v1351 = vsub.f32 %v709, %v1350
        %1352 = vmatmul.mubr.f32.gmra.mrb[0].mxu0 %v1351
        %v1353 = vpop.f32.mrb[0].mxu0
        %v1354 = vadd.f32 %v1155, %v1353
        %v1355 = vpop.f32.mrb[0].mxu0
        %1356 = vmatprep.mubr.f32.mxu0 0.0
        %v1357 = vand.u32 %v710, 4294901760
        %v1358 = vsub.f32 %v710, %v1357
        %1359 = vmatmul.mubr.f32.gmra.mrb[0].mxu0 %v1358
        %v1360 = vpop.f32.mrb[0].mxu0
        %v1361 = vadd.f32 %v1161, %v1360
        %v1362 = vpop.f32.mrb[0].mxu0
        %1363 = vmatprep.mubr.f32.mxu0 0.0
        %v1364 = vand.u32 %v711, 4294901760
        %v1365 = vsub.f32 %v711, %v1364
        %1366 = vmatmul.mubr.f32.gmra.mrb[0].mxu0 %v1365
        %v1367 = vpop.f32.mrb[0].mxu0
        %v1368 = vadd.f32 %v1167, %v1367
        %v1369 = vpop.f32.mrb[0].mxu0
        %1370 = vmatprep.mubr.f32.mxu0 0.0
        %v1371 = vand.u32 %v712, 4294901760
        %v1372 = vsub.f32 %v712, %v1371
        %1373 = vmatmul.mubr.f32.gmra.mrb[0].mxu0 %v1372
        %v1374 = vpop.f32.mrb[0].mxu0
        %v1375 = vadd.f32 %v1173, %v1374
        %v1376 = vpop.f32.mrb[0].mxu0
        %1377 = vmatprep.mubr.f32.mxu0 0.0
        %v1378 = vand.u32 %v713, 4294901760
        %v1379 = vsub.f32 %v713, %v1378
        %1380 = vmatmul.mubr.f32.gmra.mrb[0].mxu0 %v1379
        %v1381 = vpop.f32.mrb[0].mxu0
        %v1382 = vadd.f32 %v1179, %v1381
        %v1383 = vpop.f32.mrb[0].mxu0
        %1384 = vmatprep.mubr.f32.mxu0 0.0
        %v1385 = vand.u32 %v714, 4294901760
        %v1386 = vsub.f32 %v714, %v1385
        %1387 = vmatmul.mubr.f32.gmra.mrb[0].mxu0 %v1386
        %v1388 = vpop.f32.mrb[0].mxu0
        %v1389 = vadd.f32 %v1185, %v1388
        %v1390 = vpop.f32.mrb[0].mxu0
        %1391 = vmatprep.mubr.f32.mxu0 0.0
        %v1392 = vand.u32 %v715, 4294901760
        %v1393 = vsub.f32 %v715, %v1392
        %1394 = vmatmul.mubr.f32.gmra.mrb[0].mxu0 %v1393
        %v1395 = vpop.f32.mrb[0].mxu0
        %v1396 = vadd.f32 %v1191, %v1395
        %v1397 = vpop.f32.mrb[0].mxu0
        %1398 = vmatprep.mubr.f32.mxu0 0.0
        %v1399 = vand.u32 %v716, 4294901760
        %v1400 = vsub.f32 %v716, %v1399
        %1401 = vmatmul.mubr.f32.gmra.mrb[0].mxu0 %v1400
        %v1402 = vpop.f32.mrb[0].mxu0
        %v1403 = vadd.f32 %v1197, %v1402
        %v1404 = vpop.f32.mrb[0].mxu0
        %1405 = vmatprep.mubr.f32.mxu0 0.0
        %v1406 = vand.u32 %v717, 4294901760
        %v1407 = vsub.f32 %v717, %v1406
        %1408 = vmatmul.mubr.f32.gmra.mrb[0].mxu0 %v1407
        %v1409 = vpop.f32.mrb[0].mxu0
        %v1410 = vadd.f32 %v1203, %v1409
        %v1411 = vpop.f32.mrb[0].mxu0
        %1412 = vmatprep.mubr.f32.mxu0 0.0
        %v1413 = vand.u32 %v718, 4294901760
        %v1414 = vsub.f32 %v718, %v1413
        %1415 = vmatmul.mubr.f32.gmra.mrb[0].mxu0 %v1414
        %v1416 = vpop.f32.mrb[0].mxu0
        %v1417 = vadd.f32 %v1209, %v1416
        %v1418 = vpop.f32.mrb[0].mxu0
        %1419 = vmatprep.mubr.f32.mxu0 0.0
        %v1420 = vand.u32 %v719, 4294901760
        %v1421 = vsub.f32 %v719, %v1420
        %1422 = vmatmul.mubr.f32.gmra.mrb[0].mxu0 %v1421
        %v1423 = vpop.f32.mrb[0].mxu0
        %v1424 = vadd.f32 %v1215, %v1423
        %v1425 = vpop.f32.mrb[0].mxu0
        %1426 = vdwg.mxu0
        %1427 = vmatprep.subr.mxu0 0.0
        %v1428 = vand.u32 %v720, 4294901760
        %1429 = vmatpush1.msra.mxu0 %v1428
        %1430 = vmatprep.subr.mxu0 0.0
        %v1431 = vand.u32 %v721, 4294901760
        %1432 = vmatpush1.msra.mxu0 %v1431
        %1433 = vmatprep.subr.mxu0 0.0
        %v1434 = vand.u32 %v722, 4294901760
        %1435 = vmatpush1.msra.mxu0 %v1434
        %1436 = vmatprep.subr.mxu0 0.0
        %v1437 = vand.u32 %v723, 4294901760
        %1438 = vmatpush1.msra.mxu0 %v1437
        %1439 = vmatprep.subr.mxu0 0.0
        %v1440 = vand.u32 %v724, 4294901760
        %1441 = vmatpush1.msra.mxu0 %v1440
        %1442 = vmatprep.subr.mxu0 0.0
        %v1443 = vand.u32 %v725, 4294901760
        %1444 = vmatpush1.msra.mxu0 %v1443
        %1445 = vmatprep.subr.mxu0 0.0
        %v1446 = vand.u32 %v726, 4294901760
        %1447 = vmatpush1.msra.mxu0 %v1446
        %1448 = vmatprep.subr.mxu0 0.0
        %v1449 = vand.u32 %v727, 4294901760
        %1450 = vmatpush1.msra.mxu0 %v1449
        %1451 = vmatprep.subr.mxu0 0.0
        %v1452 = vand.u32 %v728, 4294901760
        %1453 = vmatpush1.msra.mxu0 %v1452
        %1454 = vmatprep.subr.mxu0 0.0
        %v1455 = vand.u32 %v729, 4294901760
        %1456 = vmatpush1.msra.mxu0 %v1455
        %1457 = vmatprep.subr.mxu0 0.0
        %v1458 = vand.u32 %v730, 4294901760
        %1459 = vmatpush1.msra.mxu0 %v1458
        %1460 = vmatprep.subr.mxu0 0.0
        %v1461 = vand.u32 %v731, 4294901760
        %1462 = vmatpush1.msra.mxu0 %v1461
        %1463 = vmatprep.subr.mxu0 0.0
        %v1464 = vand.u32 %v732, 4294901760
        %1465 = vmatpush1.msra.mxu0 %v1464
        %1466 = vmatprep.subr.mxu0 0.0
        %v1467 = vand.u32 %v733, 4294901760
        %1468 = vmatpush1.msra.mxu0 %v1467
        %1469 = vmatprep.subr.mxu0 0.0
        %v1470 = vand.u32 %v734, 4294901760
        %1471 = vmatpush1.msra.mxu0 %v1470
        %1472 = vmatprep.subr.mxu0 0.0
        %v1473 = vand.u32 %v735, 4294901760
        %1474 = vmatpush1.msra.mxu0 %v1473
        %1475 = vmatprep.subr.mxu0 0.0
        %1476 = vmatpush1.msra.mxu0 0.0
        %1477 = vmatprep.subr.mxu0 0.0
        %1478 = vmatpush1.msra.mxu0 0.0
        %1479 = vmatprep.subr.mxu0 0.0
        %1480 = vmatpush1.msra.mxu0 0.0
        %1481 = vmatprep.subr.mxu0 0.0
        %1482 = vmatpush1.msra.mxu0 0.0
        %1483 = vmatprep.subr.mxu0 0.0
        %1484 = vmatpush1.msra.mxu0 0.0
        %1485 = vmatprep.subr.mxu0 0.0
        %1486 = vmatpush1.msra.mxu0 0.0
        %1487 = vmatprep.subr.mxu0 0.0
        %1488 = vmatpush1.msra.mxu0 0.0
        %1489 = vmatprep.subr.mxu0 0.0
        %1490 = vmatpush1.msra.mxu0 0.0
        %1491 = vmatprep.subr.mxu0 0.0
        %1492 = vmatpush1.msra.mxu0 0.0
        %1493 = vmatprep.subr.mxu0 0.0
        %1494 = vmatpush1.msra.mxu0 0.0
        %1495 = vmatprep.subr.mxu0 0.0
        %1496 = vmatpush1.msra.mxu0 0.0
        %1497 = vmatprep.subr.mxu0 0.0
        %1498 = vmatpush1.msra.mxu0 0.0
        %1499 = vmatprep.subr.mxu0 0.0
        %1500 = vmatpush1.msra.mxu0 0.0
        %1501 = vmatprep.subr.mxu0 0.0
        %1502 = vmatpush1.msra.mxu0 0.0
        %1503 = vmatprep.subr.mxu0 0.0
        %1504 = vmatpush1.msra.mxu0 0.0
        %1505 = vmatprep.subr.mxu0 0.0
        %1506 = vmatpush1.msra.mxu0 0.0
        %1507 = vmatprep.mubr.f32.mxu0 0.0
        %v1508 = vand.u32 %v704, 4294901760
        %v1509 = vsub.f32 %v704, %v1508
        %v1510 = vand.u32 %v1509, 4294901760
        %1511 = vmatmul.mubr.f32.gmra.mrb[0].mxu0 %v1510
        %v1512 = vpop.f32.mrb[0].mxu0
        %v1513 = vadd.f32 %v1319, %v1512
        %v1514 = vpop.f32.mrb[0].mxu0
        %1515 = vmatprep.mubr.f32.mxu0 0.0
        %v1516 = vand.u32 %v705, 4294901760
        %v1517 = vsub.f32 %v705, %v1516
        %v1518 = vand.u32 %v1517, 4294901760
        %1519 = vmatmul.mubr.f32.gmra.mrb[0].mxu0 %v1518
        %v1520 = vpop.f32.mrb[0].mxu0
        %v1521 = vadd.f32 %v1326, %v1520
        %v1522 = vpop.f32.mrb[0].mxu0
        %1523 = vmatprep.mubr.f32.mxu0 0.0
        %v1524 = vand.u32 %v706, 4294901760
        %v1525 = vsub.f32 %v706, %v1524
        %v1526 = vand.u32 %v1525, 4294901760
        %1527 = vmatmul.mubr.f32.gmra.mrb[0].mxu0 %v1526
        %v1528 = vpop.f32.mrb[0].mxu0
        %v1529 = vadd.f32 %v1333, %v1528
        %v1530 = vpop.f32.mrb[0].mxu0
        %1531 = vmatprep.mubr.f32.mxu0 0.0
        %v1532 = vand.u32 %v707, 4294901760
        %v1533 = vsub.f32 %v707, %v1532
        %v1534 = vand.u32 %v1533, 4294901760
        %1535 = vmatmul.mubr.f32.gmra.mrb[0].mxu0 %v1534
        %v1536 = vpop.f32.mrb[0].mxu0
        %v1537 = vadd.f32 %v1340, %v1536
        %v1538 = vpop.f32.mrb[0].mxu0
        %1539 = vmatprep.mubr.f32.mxu0 0.0
        %v1540 = vand.u32 %v708, 4294901760
        %v1541 = vsub.f32 %v708, %v1540
        %v1542 = vand.u32 %v1541, 4294901760
        %1543 = vmatmul.mubr.f32.gmra.mrb[0].mxu0 %v1542
        %v1544 = vpop.f32.mrb[0].mxu0
        %v1545 = vadd.f32 %v1347, %v1544
        %v1546 = vpop.f32.mrb[0].mxu0
        %1547 = vmatprep.mubr.f32.mxu0 0.0
        %v1548 = vand.u32 %v709, 4294901760
        %v1549 = vsub.f32 %v709, %v1548
        %v1550 = vand.u32 %v1549, 4294901760
        %1551 = vmatmul.mubr.f32.gmra.mrb[0].mxu0 %v1550
        %v1552 = vpop.f32.mrb[0].mxu0
        %v1553 = vadd.f32 %v1354, %v1552
        %v1554 = vpop.f32.mrb[0].mxu0
        %1555 = vmatprep.mubr.f32.mxu0 0.0
        %v1556 = vand.u32 %v710, 4294901760
        %v1557 = vsub.f32 %v710, %v1556
        %v1558 = vand.u32 %v1557, 4294901760
        %1559 = vmatmul.mubr.f32.gmra.mrb[0].mxu0 %v1558
        %v1560 = vpop.f32.mrb[0].mxu0
        %v1561 = vadd.f32 %v1361, %v1560
        %v1562 = vpop.f32.mrb[0].mxu0
        %1563 = vmatprep.mubr.f32.mxu0 0.0
        %v1564 = vand.u32 %v711, 4294901760
        %v1565 = vsub.f32 %v711, %v1564
        %v1566 = vand.u32 %v1565, 4294901760
        %1567 = vmatmul.mubr.f32.gmra.mrb[0].mxu0 %v1566
        %v1568 = vpop.f32.mrb[0].mxu0
        %v1569 = vadd.f32 %v1368, %v1568
        %v1570 = vpop.f32.mrb[0].mxu0
        %1571 = vmatprep.mubr.f32.mxu0 0.0
        %v1572 = vand.u32 %v712, 4294901760
        %v1573 = vsub.f32 %v712, %v1572
        %v1574 = vand.u32 %v1573, 4294901760
        %1575 = vmatmul.mubr.f32.gmra.mrb[0].mxu0 %v1574
        %v1576 = vpop.f32.mrb[0].mxu0
        %v1577 = vadd.f32 %v1375, %v1576
        %v1578 = vpop.f32.mrb[0].mxu0
        %1579 = vmatprep.mubr.f32.mxu0 0.0
        %v1580 = vand.u32 %v713, 4294901760
        %v1581 = vsub.f32 %v713, %v1580
        %v1582 = vand.u32 %v1581, 4294901760
        %1583 = vmatmul.mubr.f32.gmra.mrb[0].mxu0 %v1582
        %v1584 = vpop.f32.mrb[0].mxu0
        %v1585 = vadd.f32 %v1382, %v1584
        %v1586 = vpop.f32.mrb[0].mxu0
        %1587 = vmatprep.mubr.f32.mxu0 0.0
        %v1588 = vand.u32 %v714, 4294901760
        %v1589 = vsub.f32 %v714, %v1588
        %v1590 = vand.u32 %v1589, 4294901760
        %1591 = vmatmul.mubr.f32.gmra.mrb[0].mxu0 %v1590
        %v1592 = vpop.f32.mrb[0].mxu0
        %v1593 = vadd.f32 %v1389, %v1592
        %v1594 = vpop.f32.mrb[0].mxu0
        %1595 = vmatprep.mubr.f32.mxu0 0.0
        %v1596 = vand.u32 %v715, 4294901760
        %v1597 = vsub.f32 %v715, %v1596
        %v1598 = vand.u32 %v1597, 4294901760
        %1599 = vmatmul.mubr.f32.gmra.mrb[0].mxu0 %v1598
        %v1600 = vpop.f32.mrb[0].mxu0
        %v1601 = vadd.f32 %v1396, %v1600
        %v1602 = vpop.f32.mrb[0].mxu0
        %1603 = vmatprep.mubr.f32.mxu0 0.0
        %v1604 = vand.u32 %v716, 4294901760
        %v1605 = vsub.f32 %v716, %v1604
        %v1606 = vand.u32 %v1605, 4294901760
        %1607 = vmatmul.mubr.f32.gmra.mrb[0].mxu0 %v1606
        %v1608 = vpop.f32.mrb[0].mxu0
        %v1609 = vadd.f32 %v1403, %v1608
        %v1610 = vpop.f32.mrb[0].mxu0
        %1611 = vmatprep.mubr.f32.mxu0 0.0
        %v1612 = vand.u32 %v717, 4294901760
        %v1613 = vsub.f32 %v717, %v1612
        %v1614 = vand.u32 %v1613, 4294901760
        %1615 = vmatmul.mubr.f32.gmra.mrb[0].mxu0 %v1614
        %v1616 = vpop.f32.mrb[0].mxu0
        %v1617 = vadd.f32 %v1410, %v1616
        %v1618 = vpop.f32.mrb[0].mxu0
        %1619 = vmatprep.mubr.f32.mxu0 0.0
        %v1620 = vand.u32 %v718, 4294901760
        %v1621 = vsub.f32 %v718, %v1620
        %v1622 = vand.u32 %v1621, 4294901760
        %1623 = vmatmul.mubr.f32.gmra.mrb[0].mxu0 %v1622
        %v1624 = vpop.f32.mrb[0].mxu0
        %v1625 = vadd.f32 %v1417, %v1624
        %v1626 = vpop.f32.mrb[0].mxu0
        %1627 = vmatprep.mubr.f32.mxu0 0.0
        %v1628 = vand.u32 %v719, 4294901760
        %v1629 = vsub.f32 %v719, %v1628
        %v1630 = vand.u32 %v1629, 4294901760
        %1631 = vmatmul.mubr.f32.gmra.mrb[0].mxu0 %v1630
        %v1632 = vpop.f32.mrb[0].mxu0
        %v1633 = vadd.f32 %v1424, %v1632
        %v1634 = vpop.f32.mrb[0].mxu0
        %1635 = vdwg.mxu0
        %1636 = vmatprep.subr.mxu0 0.0
        %v1637 = vand.u32 %v720, 4294901760
        %v1638 = vsub.f32 %v720, %v1637
        %v1639 = vand.u32 %v1638, 4294901760
        %1640 = vmatpush1.msra.mxu0 %v1639
        %1641 = vmatprep.subr.mxu0 0.0
        %v1642 = vand.u32 %v721, 4294901760
        %v1643 = vsub.f32 %v721, %v1642
        %v1644 = vand.u32 %v1643, 4294901760
        %1645 = vmatpush1.msra.mxu0 %v1644
        %1646 = vmatprep.subr.mxu0 0.0
        %v1647 = vand.u32 %v722, 4294901760
        %v1648 = vsub.f32 %v722, %v1647
        %v1649 = vand.u32 %v1648, 4294901760
        %1650 = vmatpush1.msra.mxu0 %v1649
        %1651 = vmatprep.subr.mxu0 0.0
        %v1652 = vand.u32 %v723, 4294901760
        %v1653 = vsub.f32 %v723, %v1652
        %v1654 = vand.u32 %v1653, 4294901760
        %1655 = vmatpush1.msra.mxu0 %v1654
        %1656 = vmatprep.subr.mxu0 0.0
        %v1657 = vand.u32 %v724, 4294901760
        %v1658 = vsub.f32 %v724, %v1657
        %v1659 = vand.u32 %v1658, 4294901760
        %1660 = vmatpush1.msra.mxu0 %v1659
        %1661 = vmatprep.subr.mxu0 0.0
        %v1662 = vand.u32 %v725, 4294901760
        %v1663 = vsub.f32 %v725, %v1662
        %v1664 = vand.u32 %v1663, 4294901760
        %1665 = vmatpush1.msra.mxu0 %v1664
        %1666 = vmatprep.subr.mxu0 0.0
        %v1667 = vand.u32 %v726, 4294901760
        %v1668 = vsub.f32 %v726, %v1667
        %v1669 = vand.u32 %v1668, 4294901760
        %1670 = vmatpush1.msra.mxu0 %v1669
        %1671 = vmatprep.subr.mxu0 0.0
        %v1672 = vand.u32 %v727, 4294901760
        %v1673 = vsub.f32 %v727, %v1672
        %v1674 = vand.u32 %v1673, 4294901760
        %1675 = vmatpush1.msra.mxu0 %v1674
        %1676 = vmatprep.subr.mxu0 0.0
        %v1677 = vand.u32 %v728, 4294901760
        %v1678 = vsub.f32 %v728, %v1677
        %v1679 = vand.u32 %v1678, 4294901760
        %1680 = vmatpush1.msra.mxu0 %v1679
        %1681 = vmatprep.subr.mxu0 0.0
        %v1682 = vand.u32 %v729, 4294901760
        %v1683 = vsub.f32 %v729, %v1682
        %v1684 = vand.u32 %v1683, 4294901760
        %1685 = vmatpush1.msra.mxu0 %v1684
        %1686 = vmatprep.subr.mxu0 0.0
        %v1687 = vand.u32 %v730, 4294901760
        %v1688 = vsub.f32 %v730, %v1687
        %v1689 = vand.u32 %v1688, 4294901760
        %1690 = vmatpush1.msra.mxu0 %v1689
        %1691 = vmatprep.subr.mxu0 0.0
        %v1692 = vand.u32 %v731, 4294901760
        %v1693 = vsub.f32 %v731, %v1692
        %v1694 = vand.u32 %v1693, 4294901760
        %1695 = vmatpush1.msra.mxu0 %v1694
        %1696 = vmatprep.subr.mxu0 0.0
        %v1697 = vand.u32 %v732, 4294901760
        %v1698 = vsub.f32 %v732, %v1697
        %v1699 = vand.u32 %v1698, 4294901760
        %1700 = vmatpush1.msra.mxu0 %v1699
        %1701 = vmatprep.subr.mxu0 0.0
        %v1702 = vand.u32 %v733, 4294901760
        %v1703 = vsub.f32 %v733, %v1702
        %v1704 = vand.u32 %v1703, 4294901760
        %1705 = vmatpush1.msra.mxu0 %v1704
        %1706 = vmatprep.subr.mxu0 0.0
        %v1707 = vand.u32 %v734, 4294901760
        %v1708 = vsub.f32 %v734, %v1707
        %v1709 = vand.u32 %v1708, 4294901760
        %1710 = vmatpush1.msra.mxu0 %v1709
        %1711 = vmatprep.subr.mxu0 0.0
        %v1712 = vand.u32 %v735, 4294901760
        %v1713 = vsub.f32 %v735, %v1712
        %v1714 = vand.u32 %v1713, 4294901760
        %1715 = vmatpush1.msra.mxu0 %v1714
        %1716 = vmatprep.subr.mxu0 0.0
        %1717 = vmatpush1.msra.mxu0 0.0
        %1718 = vmatprep.subr.mxu0 0.0
        %1719 = vmatpush1.msra.mxu0 0.0
        %1720 = vmatprep.subr.mxu0 0.0
        %1721 = vmatpush1.msra.mxu0 0.0
        %1722 = vmatprep.subr.mxu0 0.0
        %1723 = vmatpush1.msra.mxu0 0.0
        %1724 = vmatprep.subr.mxu0 0.0
        %1725 = vmatpush1.msra.mxu0 0.0
        %1726 = vmatprep.subr.mxu0 0.0
        %1727 = vmatpush1.msra.mxu0 0.0
        %1728 = vmatprep.subr.mxu0 0.0
        %1729 = vmatpush1.msra.mxu0 0.0
        %1730 = vmatprep.subr.mxu0 0.0
        %1731 = vmatpush1.msra.mxu0 0.0
        %1732 = vmatprep.subr.mxu0 0.0
        %1733 = vmatpush1.msra.mxu0 0.0
        %1734 = vmatprep.subr.mxu0 0.0
        %1735 = vmatpush1.msra.mxu0 0.0
        %1736 = vmatprep.subr.mxu0 0.0
        %1737 = vmatpush1.msra.mxu0 0.0
        %1738 = vmatprep.subr.mxu0 0.0
        %1739 = vmatpush1.msra.mxu0 0.0
        %1740 = vmatprep.subr.mxu0 0.0
        %1741 = vmatpush1.msra.mxu0 0.0
        %1742 = vmatprep.subr.mxu0 0.0
        %1743 = vmatpush1.msra.mxu0 0.0
        %1744 = vmatprep.subr.mxu0 0.0
        %1745 = vmatpush1.msra.mxu0 0.0
        %1746 = vmatprep.subr.mxu0 0.0
        %1747 = vmatpush1.msra.mxu0 0.0
        %1748 = vmatprep.mubr.f32.mxu0 0.0
        %v1749 = vand.u32 %v704, 4294901760
        %1750 = vmatmul.mubr.f32.gmra.mrb[0].mxu0 %v1749
        %v1751 = vpop.f32.mrb[0].mxu0
        %v1752 = vadd.f32 %v1513, %v1751
        %v1753 = vpop.f32.mrb[0].mxu0
        %1754 = vmatprep.mubr.f32.mxu0 0.0
        %v1755 = vand.u32 %v705, 4294901760
        %1756 = vmatmul.mubr.f32.gmra.mrb[0].mxu0 %v1755
        %v1757 = vpop.f32.mrb[0].mxu0
        %v1758 = vadd.f32 %v1521, %v1757
        %v1759 = vpop.f32.mrb[0].mxu0
        %1760 = vmatprep.mubr.f32.mxu0 0.0
        %v1761 = vand.u32 %v706, 4294901760
        %1762 = vmatmul.mubr.f32.gmra.mrb[0].mxu0 %v1761
        %v1763 = vpop.f32.mrb[0].mxu0
        %v1764 = vadd.f32 %v1529, %v1763
        %v1765 = vpop.f32.mrb[0].mxu0
        %1766 = vmatprep.mubr.f32.mxu0 0.0
        %v1767 = vand.u32 %v707, 4294901760
        %1768 = vmatmul.mubr.f32.gmra.mrb[0].mxu0 %v1767
        %v1769 = vpop.f32.mrb[0].mxu0
        %v1770 = vadd.f32 %v1537, %v1769
        %v1771 = vpop.f32.mrb[0].mxu0
        %1772 = vmatprep.mubr.f32.mxu0 0.0
        %v1773 = vand.u32 %v708, 4294901760
        %1774 = vmatmul.mubr.f32.gmra.mrb[0].mxu0 %v1773
        %v1775 = vpop.f32.mrb[0].mxu0
        %v1776 = vadd.f32 %v1545, %v1775
        %v1777 = vpop.f32.mrb[0].mxu0
        %1778 = vmatprep.mubr.f32.mxu0 0.0
        %v1779 = vand.u32 %v709, 4294901760
        %1780 = vmatmul.mubr.f32.gmra.mrb[0].mxu0 %v1779
        %v1781 = vpop.f32.mrb[0].mxu0
        %v1782 = vadd.f32 %v1553, %v1781
        %v1783 = vpop.f32.mrb[0].mxu0
        %1784 = vmatprep.mubr.f32.mxu0 0.0
        %v1785 = vand.u32 %v710, 4294901760
        %1786 = vmatmul.mubr.f32.gmra.mrb[0].mxu0 %v1785
        %v1787 = vpop.f32.mrb[0].mxu0
        %v1788 = vadd.f32 %v1561, %v1787
        %v1789 = vpop.f32.mrb[0].mxu0
        %1790 = vmatprep.mubr.f32.mxu0 0.0
        %v1791 = vand.u32 %v711, 4294901760
        %1792 = vmatmul.mubr.f32.gmra.mrb[0].mxu0 %v1791
        %v1793 = vpop.f32.mrb[0].mxu0
        %v1794 = vadd.f32 %v1569, %v1793
        %v1795 = vpop.f32.mrb[0].mxu0
        %1796 = vmatprep.mubr.f32.mxu0 0.0
        %v1797 = vand.u32 %v712, 4294901760
        %1798 = vmatmul.mubr.f32.gmra.mrb[0].mxu0 %v1797
        %v1799 = vpop.f32.mrb[0].mxu0
        %v1800 = vadd.f32 %v1577, %v1799
        %v1801 = vpop.f32.mrb[0].mxu0
        %1802 = vmatprep.mubr.f32.mxu0 0.0
        %v1803 = vand.u32 %v713, 4294901760
        %1804 = vmatmul.mubr.f32.gmra.mrb[0].mxu0 %v1803
        %v1805 = vpop.f32.mrb[0].mxu0
        %v1806 = vadd.f32 %v1585, %v1805
        %v1807 = vpop.f32.mrb[0].mxu0
        %1808 = vmatprep.mubr.f32.mxu0 0.0
        %v1809 = vand.u32 %v714, 4294901760
        %1810 = vmatmul.mubr.f32.gmra.mrb[0].mxu0 %v1809
        %v1811 = vpop.f32.mrb[0].mxu0
        %v1812 = vadd.f32 %v1593, %v1811
        %v1813 = vpop.f32.mrb[0].mxu0
        %1814 = vmatprep.mubr.f32.mxu0 0.0
        %v1815 = vand.u32 %v715, 4294901760
        %1816 = vmatmul.mubr.f32.gmra.mrb[0].mxu0 %v1815
        %v1817 = vpop.f32.mrb[0].mxu0
        %v1818 = vadd.f32 %v1601, %v1817
        %v1819 = vpop.f32.mrb[0].mxu0
        %1820 = vmatprep.mubr.f32.mxu0 0.0
        %v1821 = vand.u32 %v716, 4294901760
        %1822 = vmatmul.mubr.f32.gmra.mrb[0].mxu0 %v1821
        %v1823 = vpop.f32.mrb[0].mxu0
        %v1824 = vadd.f32 %v1609, %v1823
        %v1825 = vpop.f32.mrb[0].mxu0
        %1826 = vmatprep.mubr.f32.mxu0 0.0
        %v1827 = vand.u32 %v717, 4294901760
        %1828 = vmatmul.mubr.f32.gmra.mrb[0].mxu0 %v1827
        %v1829 = vpop.f32.mrb[0].mxu0
        %v1830 = vadd.f32 %v1617, %v1829
        %v1831 = vpop.f32.mrb[0].mxu0
        %1832 = vmatprep.mubr.f32.mxu0 0.0
        %v1833 = vand.u32 %v718, 4294901760
        %1834 = vmatmul.mubr.f32.gmra.mrb[0].mxu0 %v1833
        %v1835 = vpop.f32.mrb[0].mxu0
        %v1836 = vadd.f32 %v1625, %v1835
        %v1837 = vpop.f32.mrb[0].mxu0
        %1838 = vmatprep.mubr.f32.mxu0 0.0
        %v1839 = vand.u32 %v719, 4294901760
        %1840 = vmatmul.mubr.f32.gmra.mrb[0].mxu0 %v1839
        %v1841 = vpop.f32.mrb[0].mxu0
        %v1842 = vadd.f32 %v1633, %v1841
        %v1843 = vpop.f32.mrb[0].mxu0
        %1844 = vdwg.mxu0
        %1845 = vmatprep.subr.mxu0 0.0
        %v1846 = vand.u32 %v720, 4294901760
        %1847 = vmatpush1.msra.mxu0 %v1846
        %1848 = vmatprep.subr.mxu0 0.0
        %v1849 = vand.u32 %v721, 4294901760
        %1850 = vmatpush1.msra.mxu0 %v1849
        %1851 = vmatprep.subr.mxu0 0.0
        %v1852 = vand.u32 %v722, 4294901760
        %1853 = vmatpush1.msra.mxu0 %v1852
        %1854 = vmatprep.subr.mxu0 0.0
        %v1855 = vand.u32 %v723, 4294901760
        %1856 = vmatpush1.msra.mxu0 %v1855
        %1857 = vmatprep.subr.mxu0 0.0
        %v1858 = vand.u32 %v724, 4294901760
        %1859 = vmatpush1.msra.mxu0 %v1858
        %1860 = vmatprep.subr.mxu0 0.0
        %v1861 = vand.u32 %v725, 4294901760
        %1862 = vmatpush1.msra.mxu0 %v1861
        %1863 = vmatprep.subr.mxu0 0.0
        %v1864 = vand.u32 %v726, 4294901760
        %1865 = vmatpush1.msra.mxu0 %v1864
        %1866 = vmatprep.subr.mxu0 0.0
        %v1867 = vand.u32 %v727, 4294901760
        %1868 = vmatpush1.msra.mxu0 %v1867
        %1869 = vmatprep.subr.mxu0 0.0
        %v1870 = vand.u32 %v728, 4294901760
        %1871 = vmatpush1.msra.mxu0 %v1870
        %1872 = vmatprep.subr.mxu0 0.0
        %v1873 = vand.u32 %v729, 4294901760
        %1874 = vmatpush1.msra.mxu0 %v1873
        %1875 = vmatprep.subr.mxu0 0.0
        %v1876 = vand.u32 %v730, 4294901760
        %1877 = vmatpush1.msra.mxu0 %v1876
        %1878 = vmatprep.subr.mxu0 0.0
        %v1879 = vand.u32 %v731, 4294901760
        %1880 = vmatpush1.msra.mxu0 %v1879
        %1881 = vmatprep.subr.mxu0 0.0
        %v1882 = vand.u32 %v732, 4294901760
        %1883 = vmatpush1.msra.mxu0 %v1882
        %1884 = vmatprep.subr.mxu0 0.0
        %v1885 = vand.u32 %v733, 4294901760
        %1886 = vmatpush1.msra.mxu0 %v1885
        %1887 = vmatprep.subr.mxu0 0.0
        %v1888 = vand.u32 %v734, 4294901760
        %1889 = vmatpush1.msra.mxu0 %v1888
        %1890 = vmatprep.subr.mxu0 0.0
        %v1891 = vand.u32 %v735, 4294901760
        %1892 = vmatpush1.msra.mxu0 %v1891
        %1893 = vmatprep.subr.mxu0 0.0
        %1894 = vmatpush1.msra.mxu0 0.0
        %1895 = vmatprep.subr.mxu0 0.0
        %1896 = vmatpush1.msra.mxu0 0.0
        %1897 = vmatprep.subr.mxu0 0.0
        %1898 = vmatpush1.msra.mxu0 0.0
        %1899 = vmatprep.subr.mxu0 0.0
        %1900 = vmatpush1.msra.mxu0 0.0
        %1901 = vmatprep.subr.mxu0 0.0
        %1902 = vmatpush1.msra.mxu0 0.0
        %1903 = vmatprep.subr.mxu0 0.0
        %1904 = vmatpush1.msra.mxu0 0.0
        %1905 = vmatprep.subr.mxu0 0.0
        %1906 = vmatpush1.msra.mxu0 0.0
        %1907 = vmatprep.subr.mxu0 0.0
        %1908 = vmatpush1.msra.mxu0 0.0
        %1909 = vmatprep.subr.mxu0 0.0
        %1910 = vmatpush1.msra.mxu0 0.0
        %1911 = vmatprep.subr.mxu0 0.0
        %1912 = vmatpush1.msra.mxu0 0.0
        %1913 = vmatprep.subr.mxu0 0.0
        %1914 = vmatpush1.msra.mxu0 0.0
        %1915 = vmatprep.subr.mxu0 0.0
        %1916 = vmatpush1.msra.mxu0 0.0
        %1917 = vmatprep.subr.mxu0 0.0
        %1918 = vmatpush1.msra.mxu0 0.0
        %1919 = vmatprep.subr.mxu0 0.0
        %1920 = vmatpush1.msra.mxu0 0.0
        %1921 = vmatprep.subr.mxu0 0.0
        %1922 = vmatpush1.msra.mxu0 0.0
        %1923 = vmatprep.subr.mxu0 0.0
        %1924 = vmatpush1.msra.mxu0 0.0
        %1925 = vmatprep.mubr.f32.mxu0 0.0
        %v1926 = vand.u32 %v704, 4294901760
        %1927 = vmatmul.mubr.f32.gmra.mrb[0].mxu0 %v1926
        %v1928 = vpop.f32.mrb[0].mxu0
        %v1929 = vadd.f32 %v1752, %v1928
        %v1930 = vpop.f32.mrb[0].mxu0
        %1931 = vmatprep.mubr.f32.mxu0 0.0
        %v1932 = vand.u32 %v705, 4294901760
        %1933 = vmatmul.mubr.f32.gmra.mrb[0].mxu0 %v1932
        %v1934 = vpop.f32.mrb[0].mxu0
        %v1935 = vadd.f32 %v1758, %v1934
        %v1936 = vpop.f32.mrb[0].mxu0
        %1937 = vmatprep.mubr.f32.mxu0 0.0
        %v1938 = vand.u32 %v706, 4294901760
        %1939 = vmatmul.mubr.f32.gmra.mrb[0].mxu0 %v1938
        %v1940 = vpop.f32.mrb[0].mxu0
        %v1941 = vadd.f32 %v1764, %v1940
        %v1942 = vpop.f32.mrb[0].mxu0
        %1943 = vmatprep.mubr.f32.mxu0 0.0
        %v1944 = vand.u32 %v707, 4294901760
        %1945 = vmatmul.mubr.f32.gmra.mrb[0].mxu0 %v1944
        %v1946 = vpop.f32.mrb[0].mxu0
        %v1947 = vadd.f32 %v1770, %v1946
        %v1948 = vpop.f32.mrb[0].mxu0
        %1949 = vmatprep.mubr.f32.mxu0 0.0
        %v1950 = vand.u32 %v708, 4294901760
        %1951 = vmatmul.mubr.f32.gmra.mrb[0].mxu0 %v1950
        %v1952 = vpop.f32.mrb[0].mxu0
        %v1953 = vadd.f32 %v1776, %v1952
        %v1954 = vpop.f32.mrb[0].mxu0
        %1955 = vmatprep.mubr.f32.mxu0 0.0
        %v1956 = vand.u32 %v709, 4294901760
        %1957 = vmatmul.mubr.f32.gmra.mrb[0].mxu0 %v1956
        %v1958 = vpop.f32.mrb[0].mxu0
        %v1959 = vadd.f32 %v1782, %v1958
        %v1960 = vpop.f32.mrb[0].mxu0
        %1961 = vmatprep.mubr.f32.mxu0 0.0
        %v1962 = vand.u32 %v710, 4294901760
        %1963 = vmatmul.mubr.f32.gmra.mrb[0].mxu0 %v1962
        %v1964 = vpop.f32.mrb[0].mxu0
        %v1965 = vadd.f32 %v1788, %v1964
        %v1966 = vpop.f32.mrb[0].mxu0
        %1967 = vmatprep.mubr.f32.mxu0 0.0
        %v1968 = vand.u32 %v711, 4294901760
        %1969 = vmatmul.mubr.f32.gmra.mrb[0].mxu0 %v1968
        %v1970 = vpop.f32.mrb[0].mxu0
        %v1971 = vadd.f32 %v1794, %v1970
        %v1972 = vpop.f32.mrb[0].mxu0
        %1973 = vmatprep.mubr.f32.mxu0 0.0
        %v1974 = vand.u32 %v712, 4294901760
        %1975 = vmatmul.mubr.f32.gmra.mrb[0].mxu0 %v1974
        %v1976 = vpop.f32.mrb[0].mxu0
        %v1977 = vadd.f32 %v1800, %v1976
        %v1978 = vpop.f32.mrb[0].mxu0
        %1979 = vmatprep.mubr.f32.mxu0 0.0
        %v1980 = vand.u32 %v713, 4294901760
        %1981 = vmatmul.mubr.f32.gmra.mrb[0].mxu0 %v1980
        %v1982 = vpop.f32.mrb[0].mxu0
        %v1983 = vadd.f32 %v1806, %v1982
        %v1984 = vpop.f32.mrb[0].mxu0
        %1985 = vmatprep.mubr.f32.mxu0 0.0
        %v1986 = vand.u32 %v714, 4294901760
        %1987 = vmatmul.mubr.f32.gmra.mrb[0].mxu0 %v1986
        %v1988 = vpop.f32.mrb[0].mxu0
        %v1989 = vadd.f32 %v1812, %v1988
        %v1990 = vpop.f32.mrb[0].mxu0
        %1991 = vmatprep.mubr.f32.mxu0 0.0
        %v1992 = vand.u32 %v715, 4294901760
        %1993 = vmatmul.mubr.f32.gmra.mrb[0].mxu0 %v1992
        %v1994 = vpop.f32.mrb[0].mxu0
        %v1995 = vadd.f32 %v1818, %v1994
        %v1996 = vpop.f32.mrb[0].mxu0
        %1997 = vmatprep.mubr.f32.mxu0 0.0
        %v1998 = vand.u32 %v716, 4294901760
        %1999 = vmatmul.mubr.f32.gmra.mrb[0].mxu0 %v1998
        %v2000 = vpop.f32.mrb[0].mxu0
        %v2001 = vadd.f32 %v1824, %v2000
        %v2002 = vpop.f32.mrb[0].mxu0
        %2003 = vmatprep.mubr.f32.mxu0 0.0
        %v2004 = vand.u32 %v717, 4294901760
        %2005 = vmatmul.mubr.f32.gmra.mrb[0].mxu0 %v2004
        %v2006 = vpop.f32.mrb[0].mxu0
        %v2007 = vadd.f32 %v1830, %v2006
        %v2008 = vpop.f32.mrb[0].mxu0
        %2009 = vmatprep.mubr.f32.mxu0 0.0
        %v2010 = vand.u32 %v718, 4294901760
        %2011 = vmatmul.mubr.f32.gmra.mrb[0].mxu0 %v2010
        %v2012 = vpop.f32.mrb[0].mxu0
        %v2013 = vadd.f32 %v1836, %v2012
        %v2014 = vpop.f32.mrb[0].mxu0
        %2015 = vmatprep.mubr.f32.mxu0 0.0
        %v2016 = vand.u32 %v719, 4294901760
        %2017 = vmatmul.mubr.f32.gmra.mrb[0].mxu0 %v2016
        %v2018 = vpop.f32.mrb[0].mxu0
        %v2019 = vadd.f32 %v1842, %v2018
        %v2020 = vpop.f32.mrb[0].mxu0
        %2021 = vdwg.mxu0
        %v2022 = vld [vmem:[#allocation7] sm:$0xff]
        %v2023 = vld [vmem:[#allocation7 + $0x8] sm:$0xff]
        %v2024 = vld [vmem:[#allocation7 + $0x10] sm:$0xff]
        %v2025 = vld [vmem:[#allocation7 + $0x18] sm:$0xff]
        %v2026 = vld [vmem:[#allocation7 + $0x20] sm:$0xff]
        %v2027 = vld [vmem:[#allocation7 + $0x28] sm:$0xff]
        %v2028 = vld [vmem:[#allocation7 + $0x30] sm:$0xff]
        %v2029 = vld [vmem:[#allocation7 + $0x38] sm:$0xff]
        %v2030 = vld [vmem:[#allocation7 + $0x40] sm:$0xff]
        %v2031 = vld [vmem:[#allocation7 + $0x48] sm:$0xff]
        %v2032 = vld [vmem:[#allocation7 + $0x50] sm:$0xff]
        %v2033 = vld [vmem:[#allocation7 + $0x58] sm:$0xff]
        %v2034 = vld [vmem:[#allocation7 + $0x60] sm:$0xff]
        %v2035 = vld [vmem:[#allocation7 + $0x68] sm:$0xff]
        %v2036 = vld [vmem:[#allocation7 + $0x70] sm:$0xff]
        %v2037 = vld [vmem:[#allocation7 + $0x78] sm:$0xff]
        %2038 = vmatprep.subr.mxu0 0.0
        %v2039 = vand.u32 %v2022, 4294901760
        %2040 = vmatpush1.msra.mxu0 %v2039
        %2041 = vmatprep.subr.mxu0 0.0
        %v2042 = vand.u32 %v2023, 4294901760
        %2043 = vmatpush1.msra.mxu0 %v2042
        %2044 = vmatprep.subr.mxu0 0.0
        %v2045 = vand.u32 %v2024, 4294901760
        %2046 = vmatpush1.msra.mxu0 %v2045
        %2047 = vmatprep.subr.mxu0 0.0
        %v2048 = vand.u32 %v2025, 4294901760
        %2049 = vmatpush1.msra.mxu0 %v2048
        %2050 = vmatprep.subr.mxu0 0.0
        %v2051 = vand.u32 %v2026, 4294901760
        %2052 = vmatpush1.msra.mxu0 %v2051
        %2053 = vmatprep.subr.mxu0 0.0
        %v2054 = vand.u32 %v2027, 4294901760
        %2055 = vmatpush1.msra.mxu0 %v2054
        %2056 = vmatprep.subr.mxu0 0.0
        %v2057 = vand.u32 %v2028, 4294901760
        %2058 = vmatpush1.msra.mxu0 %v2057
        %2059 = vmatprep.subr.mxu0 0.0
        %v2060 = vand.u32 %v2029, 4294901760
        %2061 = vmatpush1.msra.mxu0 %v2060
        %2062 = vmatprep.subr.mxu0 0.0
        %v2063 = vand.u32 %v2030, 4294901760
        %2064 = vmatpush1.msra.mxu0 %v2063
        %2065 = vmatprep.subr.mxu0 0.0
        %v2066 = vand.u32 %v2031, 4294901760
        %2067 = vmatpush1.msra.mxu0 %v2066
        %2068 = vmatprep.subr.mxu0 0.0
        %v2069 = vand.u32 %v2032, 4294901760
        %2070 = vmatpush1.msra.mxu0 %v2069
        %2071 = vmatprep.subr.mxu0 0.0
        %v2072 = vand.u32 %v2033, 4294901760
        %2073 = vmatpush1.msra.mxu0 %v2072
        %2074 = vmatprep.subr.mxu0 0.0
        %v2075 = vand.u32 %v2034, 4294901760
        %2076 = vmatpush1.msra.mxu0 %v2075
        %2077 = vmatprep.subr.mxu0 0.0
        %v2078 = vand.u32 %v2035, 4294901760
        %2079 = vmatpush1.msra.mxu0 %v2078
        %2080 = vmatprep.subr.mxu0 0.0
        %v2081 = vand.u32 %v2036, 4294901760
        %2082 = vmatpush1.msra.mxu0 %v2081
        %2083 = vmatprep.subr.mxu0 0.0
        %v2084 = vand.u32 %v2037, 4294901760
        %2085 = vmatpush1.msra.mxu0 %v2084
        %2086 = vmatprep.subr.mxu0 0.0
        %2087 = vmatpush1.msra.mxu0 0.0
        %2088 = vmatprep.subr.mxu0 0.0
        %2089 = vmatpush1.msra.mxu0 0.0
        %2090 = vmatprep.subr.mxu0 0.0
        %2091 = vmatpush1.msra.mxu0 0.0
        %2092 = vmatprep.subr.mxu0 0.0
        %2093 = vmatpush1.msra.mxu0 0.0
        %2094 = vmatprep.subr.mxu0 0.0
        %2095 = vmatpush1.msra.mxu0 0.0
        %2096 = vmatprep.subr.mxu0 0.0
        %2097 = vmatpush1.msra.mxu0 0.0
        %2098 = vmatprep.subr.mxu0 0.0
        %2099 = vmatpush1.msra.mxu0 0.0
        %2100 = vmatprep.subr.mxu0 0.0
        %2101 = vmatpush1.msra.mxu0 0.0
        %2102 = vmatprep.subr.mxu0 0.0
        %2103 = vmatpush1.msra.mxu0 0.0
        %2104 = vmatprep.subr.mxu0 0.0
        %2105 = vmatpush1.msra.mxu0 0.0
        %2106 = vmatprep.subr.mxu0 0.0
        %2107 = vmatpush1.msra.mxu0 0.0
        %2108 = vmatprep.subr.mxu0 0.0
        %2109 = vmatpush1.msra.mxu0 0.0
        %2110 = vmatprep.subr.mxu0 0.0
        %2111 = vmatpush1.msra.mxu0 0.0
        %2112 = vmatprep.subr.mxu0 0.0
        %2113 = vmatpush1.msra.mxu0 0.0
        %2114 = vmatprep.subr.mxu0 0.0
        %2115 = vmatpush1.msra.mxu0 0.0
        %2116 = vmatprep.subr.mxu0 0.0
        %2117 = vmatpush1.msra.mxu0 0.0
        %2118 = vmatprep.mubr.f32.mxu0 0.0
        %v2119 = vand.u32 %v1929, 4294901760
        %v2120 = vsub.f32 %v1929, %v2119
        %v2121 = vand.u32 %v2120, 4294901760
        %v2122 = vsub.f32 %v2120, %v2121
        %v2123 = vand.u32 %v2122, 4294901760
        %2124 = vmatmul.mubr.f32.gmra.mrb[0].mxu0 %v2123
        %v2125 = vpop.f32.mrb[0].mxu0
        %v2126 = vadd.f32 0.0, %v2125
        %v2127 = vpop.f32.mrb[0].mxu0
        %2128 = vmatprep.mubr.f32.mxu0 0.0
        %v2129 = vand.u32 %v1935, 4294901760
        %v2130 = vsub.f32 %v1935, %v2129
        %v2131 = vand.u32 %v2130, 4294901760
        %v2132 = vsub.f32 %v2130, %v2131
        %v2133 = vand.u32 %v2132, 4294901760
        %2134 = vmatmul.mubr.f32.gmra.mrb[0].mxu0 %v2133
        %v2135 = vpop.f32.mrb[0].mxu0
        %v2136 = vadd.f32 0.0, %v2135
        %v2137 = vpop.f32.mrb[0].mxu0
        %2138 = vmatprep.mubr.f32.mxu0 0.0
        %v2139 = vand.u32 %v1941, 4294901760
        %v2140 = vsub.f32 %v1941, %v2139
        %v2141 = vand.u32 %v2140, 4294901760
        %v2142 = vsub.f32 %v2140, %v2141
        %v2143 = vand.u32 %v2142, 4294901760
        %2144 = vmatmul.mubr.f32.gmra.mrb[0].mxu0 %v2143
        %v2145 = vpop.f32.mrb[0].mxu0
        %v2146 = vadd.f32 0.0, %v2145
        %v2147 = vpop.f32.mrb[0].mxu0
        %2148 = vmatprep.mubr.f32.mxu0 0.0
        %v2149 = vand.u32 %v1947, 4294901760
        %v2150 = vsub.f32 %v1947, %v2149
        %v2151 = vand.u32 %v2150, 4294901760
        %v2152 = vsub.f32 %v2150, %v2151
        %v2153 = vand.u32 %v2152, 4294901760
        %2154 = vmatmul.mubr.f32.gmra.mrb[0].mxu0 %v2153
        %v2155 = vpop.f32.mrb[0].mxu0
        %v2156 = vadd.f32 0.0, %v2155
        %v2157 = vpop.f32.mrb[0].mxu0
        %2158 = vmatprep.mubr.f32.mxu0 0.0
        %v2159 = vand.u32 %v1953, 4294901760
        %v2160 = vsub.f32 %v1953, %v2159
        %v2161 = vand.u32 %v2160, 4294901760
        %v2162 = vsub.f32 %v2160, %v2161
        %v2163 = vand.u32 %v2162, 4294901760
        %2164 = vmatmul.mubr.f32.gmra.mrb[0].mxu0 %v2163
        %v2165 = vpop.f32.mrb[0].mxu0
        %v2166 = vadd.f32 0.0, %v2165
        %v2167 = vpop.f32.mrb[0].mxu0
        %2168 = vmatprep.mubr.f32.mxu0 0.0
        %v2169 = vand.u32 %v1959, 4294901760
        %v2170 = vsub.f32 %v1959, %v2169
        %v2171 = vand.u32 %v2170, 4294901760
        %v2172 = vsub.f32 %v2170, %v2171
        %v2173 = vand.u32 %v2172, 4294901760
        %2174 = vmatmul.mubr.f32.gmra.mrb[0].mxu0 %v2173
        %v2175 = vpop.f32.mrb[0].mxu0
        %v2176 = vadd.f32 0.0, %v2175
        %v2177 = vpop.f32.mrb[0].mxu0
        %2178 = vmatprep.mubr.f32.mxu0 0.0
        %v2179 = vand.u32 %v1965, 4294901760
        %v2180 = vsub.f32 %v1965, %v2179
        %v2181 = vand.u32 %v2180, 4294901760
        %v2182 = vsub.f32 %v2180, %v2181
        %v2183 = vand.u32 %v2182, 4294901760
        %2184 = vmatmul.mubr.f32.gmra.mrb[0].mxu0 %v2183
        %v2185 = vpop.f32.mrb[0].mxu0
        %v2186 = vadd.f32 0.0, %v2185
        %v2187 = vpop.f32.mrb[0].mxu0
        %2188 = vmatprep.mubr.f32.mxu0 0.0
        %v2189 = vand.u32 %v1971, 4294901760
        %v2190 = vsub.f32 %v1971, %v2189
        %v2191 = vand.u32 %v2190, 4294901760
        %v2192 = vsub.f32 %v2190, %v2191
        %v2193 = vand.u32 %v2192, 4294901760
        %2194 = vmatmul.mubr.f32.gmra.mrb[0].mxu0 %v2193
        %v2195 = vpop.f32.mrb[0].mxu0
        %v2196 = vadd.f32 0.0, %v2195
        %v2197 = vpop.f32.mrb[0].mxu0
        %2198 = vmatprep.mubr.f32.mxu0 0.0
        %v2199 = vand.u32 %v1977, 4294901760
        %v2200 = vsub.f32 %v1977, %v2199
        %v2201 = vand.u32 %v2200, 4294901760
        %v2202 = vsub.f32 %v2200, %v2201
        %v2203 = vand.u32 %v2202, 4294901760
        %2204 = vmatmul.mubr.f32.gmra.mrb[0].mxu0 %v2203
        %v2205 = vpop.f32.mrb[0].mxu0
        %v2206 = vadd.f32 0.0, %v2205
        %v2207 = vpop.f32.mrb[0].mxu0
        %2208 = vmatprep.mubr.f32.mxu0 0.0
        %v2209 = vand.u32 %v1983, 4294901760
        %v2210 = vsub.f32 %v1983, %v2209
        %v2211 = vand.u32 %v2210, 4294901760
        %v2212 = vsub.f32 %v2210, %v2211
        %v2213 = vand.u32 %v2212, 4294901760
        %2214 = vmatmul.mubr.f32.gmra.mrb[0].mxu0 %v2213
        %v2215 = vpop.f32.mrb[0].mxu0
        %v2216 = vadd.f32 0.0, %v2215
        %v2217 = vpop.f32.mrb[0].mxu0
        %2218 = vmatprep.mubr.f32.mxu0 0.0
        %v2219 = vand.u32 %v1989, 4294901760
        %v2220 = vsub.f32 %v1989, %v2219
        %v2221 = vand.u32 %v2220, 4294901760
        %v2222 = vsub.f32 %v2220, %v2221
        %v2223 = vand.u32 %v2222, 4294901760
        %2224 = vmatmul.mubr.f32.gmra.mrb[0].mxu0 %v2223
        %v2225 = vpop.f32.mrb[0].mxu0
        %v2226 = vadd.f32 0.0, %v2225
        %v2227 = vpop.f32.mrb[0].mxu0
        %2228 = vmatprep.mubr.f32.mxu0 0.0
        %v2229 = vand.u32 %v1995, 4294901760
        %v2230 = vsub.f32 %v1995, %v2229
        %v2231 = vand.u32 %v2230, 4294901760
        %v2232 = vsub.f32 %v2230, %v2231
        %v2233 = vand.u32 %v2232, 4294901760
        %2234 = vmatmul.mubr.f32.gmra.mrb[0].mxu0 %v2233
        %v2235 = vpop.f32.mrb[0].mxu0
        %v2236 = vadd.f32 0.0, %v2235
        %v2237 = vpop.f32.mrb[0].mxu0
        %2238 = vmatprep.mubr.f32.mxu0 0.0
        %v2239 = vand.u32 %v2001, 4294901760
        %v2240 = vsub.f32 %v2001, %v2239
        %v2241 = vand.u32 %v2240, 4294901760
        %v2242 = vsub.f32 %v2240, %v2241
        %v2243 = vand.u32 %v2242, 4294901760
        %2244 = vmatmul.mubr.f32.gmra.mrb[0].mxu0 %v2243
        %v2245 = vpop.f32.mrb[0].mxu0
        %v2246 = vadd.f32 0.0, %v2245
        %v2247 = vpop.f32.mrb[0].mxu0
        %2248 = vmatprep.mubr.f32.mxu0 0.0
        %v2249 = vand.u32 %v2007, 4294901760
        %v2250 = vsub.f32 %v2007, %v2249
        %v2251 = vand.u32 %v2250, 4294901760
        %v2252 = vsub.f32 %v2250, %v2251
        %v2253 = vand.u32 %v2252, 4294901760
        %2254 = vmatmul.mubr.f32.gmra.mrb[0].mxu0 %v2253
        %v2255 = vpop.f32.mrb[0].mxu0
        %v2256 = vadd.f32 0.0, %v2255
        %v2257 = vpop.f32.mrb[0].mxu0
        %2258 = vmatprep.mubr.f32.mxu0 0.0
        %v2259 = vand.u32 %v2013, 4294901760
        %v2260 = vsub.f32 %v2013, %v2259
        %v2261 = vand.u32 %v2260, 4294901760
        %v2262 = vsub.f32 %v2260, %v2261
        %v2263 = vand.u32 %v2262, 4294901760
        %2264 = vmatmul.mubr.f32.gmra.mrb[0].mxu0 %v2263
        %v2265 = vpop.f32.mrb[0].mxu0
        %v2266 = vadd.f32 0.0, %v2265
        %v2267 = vpop.f32.mrb[0].mxu0
        %2268 = vmatprep.mubr.f32.mxu0 0.0
        %v2269 = vand.u32 %v2019, 4294901760
        %v2270 = vsub.f32 %v2019, %v2269
        %v2271 = vand.u32 %v2270, 4294901760
        %v2272 = vsub.f32 %v2270, %v2271
        %v2273 = vand.u32 %v2272, 4294901760
        %2274 = vmatmul.mubr.f32.gmra.mrb[0].mxu0 %v2273
        %v2275 = vpop.f32.mrb[0].mxu0
        %v2276 = vadd.f32 0.0, %v2275
        %v2277 = vpop.f32.mrb[0].mxu0
        %2278 = vdwg.mxu0
        %2279 = vmatprep.subr.mxu0 0.0
        %v2280 = vand.u32 %v2022, 4294901760
        %v2281 = vsub.f32 %v2022, %v2280
        %v2282 = vand.u32 %v2281, 4294901760
        %v2283 = vsub.f32 %v2281, %v2282
        %v2284 = vand.u32 %v2283, 4294901760
        %2285 = vmatpush1.msra.mxu0 %v2284
        %2286 = vmatprep.subr.mxu0 0.0
        %v2287 = vand.u32 %v2023, 4294901760
        %v2288 = vsub.f32 %v2023, %v2287
        %v2289 = vand.u32 %v2288, 4294901760
        %v2290 = vsub.f32 %v2288, %v2289
        %v2291 = vand.u32 %v2290, 4294901760
        %2292 = vmatpush1.msra.mxu0 %v2291
        %2293 = vmatprep.subr.mxu0 0.0
        %v2294 = vand.u32 %v2024, 4294901760
        %v2295 = vsub.f32 %v2024, %v2294
        %v2296 = vand.u32 %v2295, 4294901760
        %v2297 = vsub.f32 %v2295, %v2296
        %v2298 = vand.u32 %v2297, 4294901760
        %2299 = vmatpush1.msra.mxu0 %v2298
        %2300 = vmatprep.subr.mxu0 0.0
        %v2301 = vand.u32 %v2025, 4294901760
        %v2302 = vsub.f32 %v2025, %v2301
        %v2303 = vand.u32 %v2302, 4294901760
        %v2304 = vsub.f32 %v2302, %v2303
        %v2305 = vand.u32 %v2304, 4294901760
        %2306 = vmatpush1.msra.mxu0 %v2305
        %2307 = vmatprep.subr.mxu0 0.0
        %v2308 = vand.u32 %v2026, 4294901760
        %v2309 = vsub.f32 %v2026, %v2308
        %v2310 = vand.u32 %v2309, 4294901760
        %v2311 = vsub.f32 %v2309, %v2310
        %v2312 = vand.u32 %v2311, 4294901760
        %2313 = vmatpush1.msra.mxu0 %v2312
        %2314 = vmatprep.subr.mxu0 0.0
        %v2315 = vand.u32 %v2027, 4294901760
        %v2316 = vsub.f32 %v2027, %v2315
        %v2317 = vand.u32 %v2316, 4294901760
        %v2318 = vsub.f32 %v2316, %v2317
        %v2319 = vand.u32 %v2318, 4294901760
        %2320 = vmatpush1.msra.mxu0 %v2319
        %2321 = vmatprep.subr.mxu0 0.0
        %v2322 = vand.u32 %v2028, 4294901760
        %v2323 = vsub.f32 %v2028, %v2322
        %v2324 = vand.u32 %v2323, 4294901760
        %v2325 = vsub.f32 %v2323, %v2324
        %v2326 = vand.u32 %v2325, 4294901760
        %2327 = vmatpush1.msra.mxu0 %v2326
        %2328 = vmatprep.subr.mxu0 0.0
        %v2329 = vand.u32 %v2029, 4294901760
        %v2330 = vsub.f32 %v2029, %v2329
        %v2331 = vand.u32 %v2330, 4294901760
        %v2332 = vsub.f32 %v2330, %v2331
        %v2333 = vand.u32 %v2332, 4294901760
        %2334 = vmatpush1.msra.mxu0 %v2333
        %2335 = vmatprep.subr.mxu0 0.0
        %v2336 = vand.u32 %v2030, 4294901760
        %v2337 = vsub.f32 %v2030, %v2336
        %v2338 = vand.u32 %v2337, 4294901760
        %v2339 = vsub.f32 %v2337, %v2338
        %v2340 = vand.u32 %v2339, 4294901760
        %2341 = vmatpush1.msra.mxu0 %v2340
        %2342 = vmatprep.subr.mxu0 0.0
        %v2343 = vand.u32 %v2031, 4294901760
        %v2344 = vsub.f32 %v2031, %v2343
        %v2345 = vand.u32 %v2344, 4294901760
        %v2346 = vsub.f32 %v2344, %v2345
        %v2347 = vand.u32 %v2346, 4294901760
        %2348 = vmatpush1.msra.mxu0 %v2347
        %2349 = vmatprep.subr.mxu0 0.0
        %v2350 = vand.u32 %v2032, 4294901760
        %v2351 = vsub.f32 %v2032, %v2350
        %v2352 = vand.u32 %v2351, 4294901760
        %v2353 = vsub.f32 %v2351, %v2352
        %v2354 = vand.u32 %v2353, 4294901760
        %2355 = vmatpush1.msra.mxu0 %v2354
        %2356 = vmatprep.subr.mxu0 0.0
        %v2357 = vand.u32 %v2033, 4294901760
        %v2358 = vsub.f32 %v2033, %v2357
        %v2359 = vand.u32 %v2358, 4294901760
        %v2360 = vsub.f32 %v2358, %v2359
        %v2361 = vand.u32 %v2360, 4294901760
        %2362 = vmatpush1.msra.mxu0 %v2361
        %2363 = vmatprep.subr.mxu0 0.0
        %v2364 = vand.u32 %v2034, 4294901760
        %v2365 = vsub.f32 %v2034, %v2364
        %v2366 = vand.u32 %v2365, 4294901760
        %v2367 = vsub.f32 %v2365, %v2366
        %v2368 = vand.u32 %v2367, 4294901760
        %2369 = vmatpush1.msra.mxu0 %v2368
        %2370 = vmatprep.subr.mxu0 0.0
        %v2371 = vand.u32 %v2035, 4294901760
        %v2372 = vsub.f32 %v2035, %v2371
        %v2373 = vand.u32 %v2372, 4294901760
        %v2374 = vsub.f32 %v2372, %v2373
        %v2375 = vand.u32 %v2374, 4294901760
        %2376 = vmatpush1.msra.mxu0 %v2375
        %2377 = vmatprep.subr.mxu0 0.0
        %v2378 = vand.u32 %v2036, 4294901760
        %v2379 = vsub.f32 %v2036, %v2378
        %v2380 = vand.u32 %v2379, 4294901760
        %v2381 = vsub.f32 %v2379, %v2380
        %v2382 = vand.u32 %v2381, 4294901760
        %2383 = vmatpush1.msra.mxu0 %v2382
        %2384 = vmatprep.subr.mxu0 0.0
        %v2385 = vand.u32 %v2037, 4294901760
        %v2386 = vsub.f32 %v2037, %v2385
        %v2387 = vand.u32 %v2386, 4294901760
        %v2388 = vsub.f32 %v2386, %v2387
        %v2389 = vand.u32 %v2388, 4294901760
        %2390 = vmatpush1.msra.mxu0 %v2389
        %2391 = vmatprep.subr.mxu0 0.0
        %2392 = vmatpush1.msra.mxu0 0.0
        %2393 = vmatprep.subr.mxu0 0.0
        %2394 = vmatpush1.msra.mxu0 0.0
        %2395 = vmatprep.subr.mxu0 0.0
        %2396 = vmatpush1.msra.mxu0 0.0
        %2397 = vmatprep.subr.mxu0 0.0
        %2398 = vmatpush1.msra.mxu0 0.0
        %2399 = vmatprep.subr.mxu0 0.0
        %2400 = vmatpush1.msra.mxu0 0.0
        %2401 = vmatprep.subr.mxu0 0.0
        %2402 = vmatpush1.msra.mxu0 0.0
        %2403 = vmatprep.subr.mxu0 0.0
        %2404 = vmatpush1.msra.mxu0 0.0
        %2405 = vmatprep.subr.mxu0 0.0
        %2406 = vmatpush1.msra.mxu0 0.0
        %2407 = vmatprep.subr.mxu0 0.0
        %2408 = vmatpush1.msra.mxu0 0.0
        %2409 = vmatprep.subr.mxu0 0.0
        %2410 = vmatpush1.msra.mxu0 0.0
        %2411 = vmatprep.subr.mxu0 0.0
        %2412 = vmatpush1.msra.mxu0 0.0
        %2413 = vmatprep.subr.mxu0 0.0
        %2414 = vmatpush1.msra.mxu0 0.0
        %2415 = vmatprep.subr.mxu0 0.0
        %2416 = vmatpush1.msra.mxu0 0.0
        %2417 = vmatprep.subr.mxu0 0.0
        %2418 = vmatpush1.msra.mxu0 0.0
        %2419 = vmatprep.subr.mxu0 0.0
        %2420 = vmatpush1.msra.mxu0 0.0
        %2421 = vmatprep.subr.mxu0 0.0
        %2422 = vmatpush1.msra.mxu0 0.0
        %2423 = vmatprep.mubr.f32.mxu0 0.0
        %v2424 = vand.u32 %v1929, 4294901760
        %2425 = vmatmul.mubr.f32.gmra.mrb[0].mxu0 %v2424
        %v2426 = vpop.f32.mrb[0].mxu0
        %v2427 = vadd.f32 %v2126, %v2426
        %v2428 = vpop.f32.mrb[0].mxu0
        %2429 = vmatprep.mubr.f32.mxu0 0.0
        %v2430 = vand.u32 %v1935, 4294901760
        %2431 = vmatmul.mubr.f32.gmra.mrb[0].mxu0 %v2430
        %v2432 = vpop.f32.mrb[0].mxu0
        %v2433 = vadd.f32 %v2136, %v2432
        %v2434 = vpop.f32.mrb[0].mxu0
        %2435 = vmatprep.mubr.f32.mxu0 0.0
        %v2436 = vand.u32 %v1941, 4294901760
        %2437 = vmatmul.mubr.f32.gmra.mrb[0].mxu0 %v2436
        %v2438 = vpop.f32.mrb[0].mxu0
        %v2439 = vadd.f32 %v2146, %v2438
        %v2440 = vpop.f32.mrb[0].mxu0
        %2441 = vmatprep.mubr.f32.mxu0 0.0
        %v2442 = vand.u32 %v1947, 4294901760
        %2443 = vmatmul.mubr.f32.gmra.mrb[0].mxu0 %v2442
        %v2444 = vpop.f32.mrb[0].mxu0
        %v2445 = vadd.f32 %v2156, %v2444
        %v2446 = vpop.f32.mrb[0].mxu0
        %2447 = vmatprep.mubr.f32.mxu0 0.0
        %v2448 = vand.u32 %v1953, 4294901760
        %2449 = vmatmul.mubr.f32.gmra.mrb[0].mxu0 %v2448
        %v2450 = vpop.f32.mrb[0].mxu0
        %v2451 = vadd.f32 %v2166, %v2450
        %v2452 = vpop.f32.mrb[0].mxu0
        %2453 = vmatprep.mubr.f32.mxu0 0.0
        %v2454 = vand.u32 %v1959, 4294901760
        %2455 = vmatmul.mubr.f32.gmra.mrb[0].mxu0 %v2454
        %v2456 = vpop.f32.mrb[0].mxu0
        %v2457 = vadd.f32 %v2176, %v2456
        %v2458 = vpop.f32.mrb[0].mxu0
        %2459 = vmatprep.mubr.f32.mxu0 0.0
        %v2460 = vand.u32 %v1965, 4294901760
        %2461 = vmatmul.mubr.f32.gmra.mrb[0].mxu0 %v2460
        %v2462 = vpop.f32.mrb[0].mxu0
        %v2463 = vadd.f32 %v2186, %v2462
        %v2464 = vpop.f32.mrb[0].mxu0
        %2465 = vmatprep.mubr.f32.mxu0 0.0
        %v2466 = vand.u32 %v1971, 4294901760
        %2467 = vmatmul.mubr.f32.gmra.mrb[0].mxu0 %v2466
        %v2468 = vpop.f32.mrb[0].mxu0
        %v2469 = vadd.f32 %v2196, %v2468
        %v2470 = vpop.f32.mrb[0].mxu0
        %2471 = vmatprep.mubr.f32.mxu0 0.0
        %v2472 = vand.u32 %v1977, 4294901760
        %2473 = vmatmul.mubr.f32.gmra.mrb[0].mxu0 %v2472
        %v2474 = vpop.f32.mrb[0].mxu0
        %v2475 = vadd.f32 %v2206, %v2474
        %v2476 = vpop.f32.mrb[0].mxu0
        %2477 = vmatprep.mubr.f32.mxu0 0.0
        %v2478 = vand.u32 %v1983, 4294901760
        %2479 = vmatmul.mubr.f32.gmra.mrb[0].mxu0 %v2478
        %v2480 = vpop.f32.mrb[0].mxu0
        %v2481 = vadd.f32 %v2216, %v2480
        %v2482 = vpop.f32.mrb[0].mxu0
        %2483 = vmatprep.mubr.f32.mxu0 0.0
        %v2484 = vand.u32 %v1989, 4294901760
        %2485 = vmatmul.mubr.f32.gmra.mrb[0].mxu0 %v2484
        %v2486 = vpop.f32.mrb[0].mxu0
        %v2487 = vadd.f32 %v2226, %v2486
        %v2488 = vpop.f32.mrb[0].mxu0
        %2489 = vmatprep.mubr.f32.mxu0 0.0
        %v2490 = vand.u32 %v1995, 4294901760
        %2491 = vmatmul.mubr.f32.gmra.mrb[0].mxu0 %v2490
        %v2492 = vpop.f32.mrb[0].mxu0
        %v2493 = vadd.f32 %v2236, %v2492
        %v2494 = vpop.f32.mrb[0].mxu0
        %2495 = vmatprep.mubr.f32.mxu0 0.0
        %v2496 = vand.u32 %v2001, 4294901760
        %2497 = vmatmul.mubr.f32.gmra.mrb[0].mxu0 %v2496
        %v2498 = vpop.f32.mrb[0].mxu0
        %v2499 = vadd.f32 %v2246, %v2498
        %v2500 = vpop.f32.mrb[0].mxu0
        %2501 = vmatprep.mubr.f32.mxu0 0.0
        %v2502 = vand.u32 %v2007, 4294901760
        %2503 = vmatmul.mubr.f32.gmra.mrb[0].mxu0 %v2502
        %v2504 = vpop.f32.mrb[0].mxu0
        %v2505 = vadd.f32 %v2256, %v2504
        %v2506 = vpop.f32.mrb[0].mxu0
        %2507 = vmatprep.mubr.f32.mxu0 0.0
        %v2508 = vand.u32 %v2013, 4294901760
        %2509 = vmatmul.mubr.f32.gmra.mrb[0].mxu0 %v2508
        %v2510 = vpop.f32.mrb[0].mxu0
        %v2511 = vadd.f32 %v2266, %v2510
        %v2512 = vpop.f32.mrb[0].mxu0
        %2513 = vmatprep.mubr.f32.mxu0 0.0
        %v2514 = vand.u32 %v2019, 4294901760
        %2515 = vmatmul.mubr.f32.gmra.mrb[0].mxu0 %v2514
        %v2516 = vpop.f32.mrb[0].mxu0
        %v2517 = vadd.f32 %v2276, %v2516
        %v2518 = vpop.f32.mrb[0].mxu0
        %2519 = vdwg.mxu0
        %2520 = vmatprep.subr.mxu0 0.0
        %v2521 = vand.u32 %v2022, 4294901760
        %v2522 = vsub.f32 %v2022, %v2521
        %2523 = vmatpush1.msra.mxu0 %v2522
        %2524 = vmatprep.subr.mxu0 0.0
        %v2525 = vand.u32 %v2023, 4294901760
        %v2526 = vsub.f32 %v2023, %v2525
        %2527 = vmatpush1.msra.mxu0 %v2526
        %2528 = vmatprep.subr.mxu0 0.0
        %v2529 = vand.u32 %v2024, 4294901760
        %v2530 = vsub.f32 %v2024, %v2529
        %2531 = vmatpush1.msra.mxu0 %v2530
        %2532 = vmatprep.subr.mxu0 0.0
        %v2533 = vand.u32 %v2025, 4294901760
        %v2534 = vsub.f32 %v2025, %v2533
        %2535 = vmatpush1.msra.mxu0 %v2534
        %2536 = vmatprep.subr.mxu0 0.0
        %v2537 = vand.u32 %v2026, 4294901760
        %v2538 = vsub.f32 %v2026, %v2537
        %2539 = vmatpush1.msra.mxu0 %v2538
        %2540 = vmatprep.subr.mxu0 0.0
        %v2541 = vand.u32 %v2027, 4294901760
        %v2542 = vsub.f32 %v2027, %v2541
        %2543 = vmatpush1.msra.mxu0 %v2542
        %2544 = vmatprep.subr.mxu0 0.0
        %v2545 = vand.u32 %v2028, 4294901760
        %v2546 = vsub.f32 %v2028, %v2545
        %2547 = vmatpush1.msra.mxu0 %v2546
        %2548 = vmatprep.subr.mxu0 0.0
        %v2549 = vand.u32 %v2029, 4294901760
        %v2550 = vsub.f32 %v2029, %v2549
        %2551 = vmatpush1.msra.mxu0 %v2550
        %2552 = vmatprep.subr.mxu0 0.0
        %v2553 = vand.u32 %v2030, 4294901760
        %v2554 = vsub.f32 %v2030, %v2553
        %2555 = vmatpush1.msra.mxu0 %v2554
        %2556 = vmatprep.subr.mxu0 0.0
        %v2557 = vand.u32 %v2031, 4294901760
        %v2558 = vsub.f32 %v2031, %v2557
        %2559 = vmatpush1.msra.mxu0 %v2558
        %2560 = vmatprep.subr.mxu0 0.0
        %v2561 = vand.u32 %v2032, 4294901760
        %v2562 = vsub.f32 %v2032, %v2561
        %2563 = vmatpush1.msra.mxu0 %v2562
        %2564 = vmatprep.subr.mxu0 0.0
        %v2565 = vand.u32 %v2033, 4294901760
        %v2566 = vsub.f32 %v2033, %v2565
        %2567 = vmatpush1.msra.mxu0 %v2566
        %2568 = vmatprep.subr.mxu0 0.0
        %v2569 = vand.u32 %v2034, 4294901760
        %v2570 = vsub.f32 %v2034, %v2569
        %2571 = vmatpush1.msra.mxu0 %v2570
        %2572 = vmatprep.subr.mxu0 0.0
        %v2573 = vand.u32 %v2035, 4294901760
        %v2574 = vsub.f32 %v2035, %v2573
        %2575 = vmatpush1.msra.mxu0 %v2574
        %2576 = vmatprep.subr.mxu0 0.0
        %v2577 = vand.u32 %v2036, 4294901760
        %v2578 = vsub.f32 %v2036, %v2577
        %2579 = vmatpush1.msra.mxu0 %v2578
        %2580 = vmatprep.subr.mxu0 0.0
        %v2581 = vand.u32 %v2037, 4294901760
        %v2582 = vsub.f32 %v2037, %v2581
        %2583 = vmatpush1.msra.mxu0 %v2582
        %2584 = vmatprep.subr.mxu0 0.0
        %2585 = vmatpush1.msra.mxu0 0.0
        %2586 = vmatprep.subr.mxu0 0.0
        %2587 = vmatpush1.msra.mxu0 0.0
        %2588 = vmatprep.subr.mxu0 0.0
        %2589 = vmatpush1.msra.mxu0 0.0
        %2590 = vmatprep.subr.mxu0 0.0
        %2591 = vmatpush1.msra.mxu0 0.0
        %2592 = vmatprep.subr.mxu0 0.0
        %2593 = vmatpush1.msra.mxu0 0.0
        %2594 = vmatprep.subr.mxu0 0.0
        %2595 = vmatpush1.msra.mxu0 0.0
        %2596 = vmatprep.subr.mxu0 0.0
        %2597 = vmatpush1.msra.mxu0 0.0
        %2598 = vmatprep.subr.mxu0 0.0
        %2599 = vmatpush1.msra.mxu0 0.0
        %2600 = vmatprep.subr.mxu0 0.0
        %2601 = vmatpush1.msra.mxu0 0.0
        %2602 = vmatprep.subr.mxu0 0.0
        %2603 = vmatpush1.msra.mxu0 0.0
        %2604 = vmatprep.subr.mxu0 0.0
        %2605 = vmatpush1.msra.mxu0 0.0
        %2606 = vmatprep.subr.mxu0 0.0
        %2607 = vmatpush1.msra.mxu0 0.0
        %2608 = vmatprep.subr.mxu0 0.0
        %2609 = vmatpush1.msra.mxu0 0.0
        %2610 = vmatprep.subr.mxu0 0.0
        %2611 = vmatpush1.msra.mxu0 0.0
        %2612 = vmatprep.subr.mxu0 0.0
        %2613 = vmatpush1.msra.mxu0 0.0
        %2614 = vmatprep.subr.mxu0 0.0
        %2615 = vmatpush1.msra.mxu0 0.0
        %2616 = vmatprep.mubr.f32.mxu0 0.0
        %v2617 = vand.u32 %v1929, 4294901760
        %v2618 = vsub.f32 %v1929, %v2617
        %2619 = vmatmul.mubr.f32.gmra.mrb[0].mxu0 %v2618
        %v2620 = vpop.f32.mrb[0].mxu0
        %v2621 = vadd.f32 %v2427, %v2620
        %v2622 = vpop.f32.mrb[0].mxu0
        %2623 = vmatprep.mubr.f32.mxu0 0.0
        %v2624 = vand.u32 %v1935, 4294901760
        %v2625 = vsub.f32 %v1935, %v2624
        %2626 = vmatmul.mubr.f32.gmra.mrb[0].mxu0 %v2625
        %v2627 = vpop.f32.mrb[0].mxu0
        %v2628 = vadd.f32 %v2433, %v2627
        %v2629 = vpop.f32.mrb[0].mxu0
        %2630 = vmatprep.mubr.f32.mxu0 0.0
        %v2631 = vand.u32 %v1941, 4294901760
        %v2632 = vsub.f32 %v1941, %v2631
        %2633 = vmatmul.mubr.f32.gmra.mrb[0].mxu0 %v2632
        %v2634 = vpop.f32.mrb[0].mxu0
        %v2635 = vadd.f32 %v2439, %v2634
        %v2636 = vpop.f32.mrb[0].mxu0
        %2637 = vmatprep.mubr.f32.mxu0 0.0
        %v2638 = vand.u32 %v1947, 4294901760
        %v2639 = vsub.f32 %v1947, %v2638
        %2640 = vmatmul.mubr.f32.gmra.mrb[0].mxu0 %v2639
        %v2641 = vpop.f32.mrb[0].mxu0
        %v2642 = vadd.f32 %v2445, %v2641
        %v2643 = vpop.f32.mrb[0].mxu0
        %2644 = vmatprep.mubr.f32.mxu0 0.0
        %v2645 = vand.u32 %v1953, 4294901760
        %v2646 = vsub.f32 %v1953, %v2645
        %2647 = vmatmul.mubr.f32.gmra.mrb[0].mxu0 %v2646
        %v2648 = vpop.f32.mrb[0].mxu0
        %v2649 = vadd.f32 %v2451, %v2648
        %v2650 = vpop.f32.mrb[0].mxu0
        %2651 = vmatprep.mubr.f32.mxu0 0.0
        %v2652 = vand.u32 %v1959, 4294901760
        %v2653 = vsub.f32 %v1959, %v2652
        %2654 = vmatmul.mubr.f32.gmra.mrb[0].mxu0 %v2653
        %v2655 = vpop.f32.mrb[0].mxu0
        %v2656 = vadd.f32 %v2457, %v2655
        %v2657 = vpop.f32.mrb[0].mxu0
        %2658 = vmatprep.mubr.f32.mxu0 0.0
        %v2659 = vand.u32 %v1965, 4294901760
        %v2660 = vsub.f32 %v1965, %v2659
        %2661 = vmatmul.mubr.f32.gmra.mrb[0].mxu0 %v2660
        %v2662 = vpop.f32.mrb[0].mxu0
        %v2663 = vadd.f32 %v2463, %v2662
        %v2664 = vpop.f32.mrb[0].mxu0
        %2665 = vmatprep.mubr.f32.mxu0 0.0
        %v2666 = vand.u32 %v1971, 4294901760
        %v2667 = vsub.f32 %v1971, %v2666
        %2668 = vmatmul.mubr.f32.gmra.mrb[0].mxu0 %v2667
        %v2669 = vpop.f32.mrb[0].mxu0
        %v2670 = vadd.f32 %v2469, %v2669
        %v2671 = vpop.f32.mrb[0].mxu0
        %2672 = vmatprep.mubr.f32.mxu0 0.0
        %v2673 = vand.u32 %v1977, 4294901760
        %v2674 = vsub.f32 %v1977, %v2673
        %2675 = vmatmul.mubr.f32.gmra.mrb[0].mxu0 %v2674
        %v2676 = vpop.f32.mrb[0].mxu0
        %v2677 = vadd.f32 %v2475, %v2676
        %v2678 = vpop.f32.mrb[0].mxu0
        %2679 = vmatprep.mubr.f32.mxu0 0.0
        %v2680 = vand.u32 %v1983, 4294901760
        %v2681 = vsub.f32 %v1983, %v2680
        %2682 = vmatmul.mubr.f32.gmra.mrb[0].mxu0 %v2681
        %v2683 = vpop.f32.mrb[0].mxu0
        %v2684 = vadd.f32 %v2481, %v2683
        %v2685 = vpop.f32.mrb[0].mxu0
        %2686 = vmatprep.mubr.f32.mxu0 0.0
        %v2687 = vand.u32 %v1989, 4294901760
        %v2688 = vsub.f32 %v1989, %v2687
        %2689 = vmatmul.mubr.f32.gmra.mrb[0].mxu0 %v2688
        %v2690 = vpop.f32.mrb[0].mxu0
        %v2691 = vadd.f32 %v2487, %v2690
        %v2692 = vpop.f32.mrb[0].mxu0
        %2693 = vmatprep.mubr.f32.mxu0 0.0
        %v2694 = vand.u32 %v1995, 4294901760
        %v2695 = vsub.f32 %v1995, %v2694
        %2696 = vmatmul.mubr.f32.gmra.mrb[0].mxu0 %v2695
        %v2697 = vpop.f32.mrb[0].mxu0
        %v2698 = vadd.f32 %v2493, %v2697
        %v2699 = vpop.f32.mrb[0].mxu0
        %2700 = vmatprep.mubr.f32.mxu0 0.0
        %v2701 = vand.u32 %v2001, 4294901760
        %v2702 = vsub.f32 %v2001, %v2701
        %2703 = vmatmul.mubr.f32.gmra.mrb[0].mxu0 %v2702
        %v2704 = vpop.f32.mrb[0].mxu0
        %v2705 = vadd.f32 %v2499, %v2704
        %v2706 = vpop.f32.mrb[0].mxu0
        %2707 = vmatprep.mubr.f32.mxu0 0.0
        %v2708 = vand.u32 %v2007, 4294901760
        %v2709 = vsub.f32 %v2007, %v2708
        %2710 = vmatmul.mubr.f32.gmra.mrb[0].mxu0 %v2709
        %v2711 = vpop.f32.mrb[0].mxu0
        %v2712 = vadd.f32 %v2505, %v2711
        %v2713 = vpop.f32.mrb[0].mxu0
        %2714 = vmatprep.mubr.f32.mxu0 0.0
        %v2715 = vand.u32 %v2013, 4294901760
        %v2716 = vsub.f32 %v2013, %v2715
        %2717 = vmatmul.mubr.f32.gmra.mrb[0].mxu0 %v2716
        %v2718 = vpop.f32.mrb[0].mxu0
        %v2719 = vadd.f32 %v2511, %v2718
        %v2720 = vpop.f32.mrb[0].mxu0
        %2721 = vmatprep.mubr.f32.mxu0 0.0
        %v2722 = vand.u32 %v2019, 4294901760
        %v2723 = vsub.f32 %v2019, %v2722
        %2724 = vmatmul.mubr.f32.gmra.mrb[0].mxu0 %v2723
        %v2725 = vpop.f32.mrb[0].mxu0
        %v2726 = vadd.f32 %v2517, %v2725
        %v2727 = vpop.f32.mrb[0].mxu0
        %2728 = vdwg.mxu0
        %2729 = vmatprep.subr.mxu0 0.0
        %v2730 = vand.u32 %v2022, 4294901760
        %2731 = vmatpush1.msra.mxu0 %v2730
        %2732 = vmatprep.subr.mxu0 0.0
        %v2733 = vand.u32 %v2023, 4294901760
        %2734 = vmatpush1.msra.mxu0 %v2733
        %2735 = vmatprep.subr.mxu0 0.0
        %v2736 = vand.u32 %v2024, 4294901760
        %2737 = vmatpush1.msra.mxu0 %v2736
        %2738 = vmatprep.subr.mxu0 0.0
        %v2739 = vand.u32 %v2025, 4294901760
        %2740 = vmatpush1.msra.mxu0 %v2739
        %2741 = vmatprep.subr.mxu0 0.0
        %v2742 = vand.u32 %v2026, 4294901760
        %2743 = vmatpush1.msra.mxu0 %v2742
        %2744 = vmatprep.subr.mxu0 0.0
        %v2745 = vand.u32 %v2027, 4294901760
        %2746 = vmatpush1.msra.mxu0 %v2745
        %2747 = vmatprep.subr.mxu0 0.0
        %v2748 = vand.u32 %v2028, 4294901760
        %2749 = vmatpush1.msra.mxu0 %v2748
        %2750 = vmatprep.subr.mxu0 0.0
        %v2751 = vand.u32 %v2029, 4294901760
        %2752 = vmatpush1.msra.mxu0 %v2751
        %2753 = vmatprep.subr.mxu0 0.0
        %v2754 = vand.u32 %v2030, 4294901760
        %2755 = vmatpush1.msra.mxu0 %v2754
        %2756 = vmatprep.subr.mxu0 0.0
        %v2757 = vand.u32 %v2031, 4294901760
        %2758 = vmatpush1.msra.mxu0 %v2757
        %2759 = vmatprep.subr.mxu0 0.0
        %v2760 = vand.u32 %v2032, 4294901760
        %2761 = vmatpush1.msra.mxu0 %v2760
        %2762 = vmatprep.subr.mxu0 0.0
        %v2763 = vand.u32 %v2033, 4294901760
        %2764 = vmatpush1.msra.mxu0 %v2763
        %2765 = vmatprep.subr.mxu0 0.0
        %v2766 = vand.u32 %v2034, 4294901760
        %2767 = vmatpush1.msra.mxu0 %v2766
        %2768 = vmatprep.subr.mxu0 0.0
        %v2769 = vand.u32 %v2035, 4294901760
        %2770 = vmatpush1.msra.mxu0 %v2769
        %2771 = vmatprep.subr.mxu0 0.0
        %v2772 = vand.u32 %v2036, 4294901760
        %2773 = vmatpush1.msra.mxu0 %v2772
        %2774 = vmatprep.subr.mxu0 0.0
        %v2775 = vand.u32 %v2037, 4294901760
        %2776 = vmatpush1.msra.mxu0 %v2775
        %2777 = vmatprep.subr.mxu0 0.0
        %2778 = vmatpush1.msra.mxu0 0.0
        %2779 = vmatprep.subr.mxu0 0.0
        %2780 = vmatpush1.msra.mxu0 0.0
        %2781 = vmatprep.subr.mxu0 0.0
        %2782 = vmatpush1.msra.mxu0 0.0
        %2783 = vmatprep.subr.mxu0 0.0
        %2784 = vmatpush1.msra.mxu0 0.0
        %2785 = vmatprep.subr.mxu0 0.0
        %2786 = vmatpush1.msra.mxu0 0.0
        %2787 = vmatprep.subr.mxu0 0.0
        %2788 = vmatpush1.msra.mxu0 0.0
        %2789 = vmatprep.subr.mxu0 0.0
        %2790 = vmatpush1.msra.mxu0 0.0
        %2791 = vmatprep.subr.mxu0 0.0
        %2792 = vmatpush1.msra.mxu0 0.0
        %2793 = vmatprep.subr.mxu0 0.0
        %2794 = vmatpush1.msra.mxu0 0.0
        %2795 = vmatprep.subr.mxu0 0.0
        %2796 = vmatpush1.msra.mxu0 0.0
        %2797 = vmatprep.subr.mxu0 0.0
        %2798 = vmatpush1.msra.mxu0 0.0
        %2799 = vmatprep.subr.mxu0 0.0
        %2800 = vmatpush1.msra.mxu0 0.0
        %2801 = vmatprep.subr.mxu0 0.0
        %2802 = vmatpush1.msra.mxu0 0.0
        %2803 = vmatprep.subr.mxu0 0.0
        %2804 = vmatpush1.msra.mxu0 0.0
        %2805 = vmatprep.subr.mxu0 0.0
        %2806 = vmatpush1.msra.mxu0 0.0
        %2807 = vmatprep.subr.mxu0 0.0
        %2808 = vmatpush1.msra.mxu0 0.0
        %2809 = vmatprep.mubr.f32.mxu0 0.0
        %v2810 = vand.u32 %v1929, 4294901760
        %v2811 = vsub.f32 %v1929, %v2810
        %v2812 = vand.u32 %v2811, 4294901760
        %2813 = vmatmul.mubr.f32.gmra.mrb[0].mxu0 %v2812
        %v2814 = vpop.f32.mrb[0].mxu0
        %v2815 = vadd.f32 %v2621, %v2814
        %v2816 = vpop.f32.mrb[0].mxu0
        %2817 = vmatprep.mubr.f32.mxu0 0.0
        %v2818 = vand.u32 %v1935, 4294901760
        %v2819 = vsub.f32 %v1935, %v2818
        %v2820 = vand.u32 %v2819, 4294901760
        %2821 = vmatmul.mubr.f32.gmra.mrb[0].mxu0 %v2820
        %v2822 = vpop.f32.mrb[0].mxu0
        %v2823 = vadd.f32 %v2628, %v2822
        %v2824 = vpop.f32.mrb[0].mxu0
        %2825 = vmatprep.mubr.f32.mxu0 0.0
        %v2826 = vand.u32 %v1941, 4294901760
        %v2827 = vsub.f32 %v1941, %v2826
        %v2828 = vand.u32 %v2827, 4294901760
        %2829 = vmatmul.mubr.f32.gmra.mrb[0].mxu0 %v2828
        %v2830 = vpop.f32.mrb[0].mxu0
        %v2831 = vadd.f32 %v2635, %v2830
        %v2832 = vpop.f32.mrb[0].mxu0
        %2833 = vmatprep.mubr.f32.mxu0 0.0
        %v2834 = vand.u32 %v1947, 4294901760
        %v2835 = vsub.f32 %v1947, %v2834
        %v2836 = vand.u32 %v2835, 4294901760
        %2837 = vmatmul.mubr.f32.gmra.mrb[0].mxu0 %v2836
        %v2838 = vpop.f32.mrb[0].mxu0
        %v2839 = vadd.f32 %v2642, %v2838
        %v2840 = vpop.f32.mrb[0].mxu0
        %2841 = vmatprep.mubr.f32.mxu0 0.0
        %v2842 = vand.u32 %v1953, 4294901760
        %v2843 = vsub.f32 %v1953, %v2842
        %v2844 = vand.u32 %v2843, 4294901760
        %2845 = vmatmul.mubr.f32.gmra.mrb[0].mxu0 %v2844
        %v2846 = vpop.f32.mrb[0].mxu0
        %v2847 = vadd.f32 %v2649, %v2846
        %v2848 = vpop.f32.mrb[0].mxu0
        %2849 = vmatprep.mubr.f32.mxu0 0.0
        %v2850 = vand.u32 %v1959, 4294901760
        %v2851 = vsub.f32 %v1959, %v2850
        %v2852 = vand.u32 %v2851, 4294901760
        %2853 = vmatmul.mubr.f32.gmra.mrb[0].mxu0 %v2852
        %v2854 = vpop.f32.mrb[0].mxu0
        %v2855 = vadd.f32 %v2656, %v2854
        %v2856 = vpop.f32.mrb[0].mxu0
        %2857 = vmatprep.mubr.f32.mxu0 0.0
        %v2858 = vand.u32 %v1965, 4294901760
        %v2859 = vsub.f32 %v1965, %v2858
        %v2860 = vand.u32 %v2859, 4294901760
        %2861 = vmatmul.mubr.f32.gmra.mrb[0].mxu0 %v2860
        %v2862 = vpop.f32.mrb[0].mxu0
        %v2863 = vadd.f32 %v2663, %v2862
        %v2864 = vpop.f32.mrb[0].mxu0
        %2865 = vmatprep.mubr.f32.mxu0 0.0
        %v2866 = vand.u32 %v1971, 4294901760
        %v2867 = vsub.f32 %v1971, %v2866
        %v2868 = vand.u32 %v2867, 4294901760
        %2869 = vmatmul.mubr.f32.gmra.mrb[0].mxu0 %v2868
        %v2870 = vpop.f32.mrb[0].mxu0
        %v2871 = vadd.f32 %v2670, %v2870
        %v2872 = vpop.f32.mrb[0].mxu0
        %2873 = vmatprep.mubr.f32.mxu0 0.0
        %v2874 = vand.u32 %v1977, 4294901760
        %v2875 = vsub.f32 %v1977, %v2874
        %v2876 = vand.u32 %v2875, 4294901760
        %2877 = vmatmul.mubr.f32.gmra.mrb[0].mxu0 %v2876
        %v2878 = vpop.f32.mrb[0].mxu0
        %v2879 = vadd.f32 %v2677, %v2878
        %v2880 = vpop.f32.mrb[0].mxu0
        %2881 = vmatprep.mubr.f32.mxu0 0.0
        %v2882 = vand.u32 %v1983, 4294901760
        %v2883 = vsub.f32 %v1983, %v2882
        %v2884 = vand.u32 %v2883, 4294901760
        %2885 = vmatmul.mubr.f32.gmra.mrb[0].mxu0 %v2884
        %v2886 = vpop.f32.mrb[0].mxu0
        %v2887 = vadd.f32 %v2684, %v2886
        %v2888 = vpop.f32.mrb[0].mxu0
        %2889 = vmatprep.mubr.f32.mxu0 0.0
        %v2890 = vand.u32 %v1989, 4294901760
        %v2891 = vsub.f32 %v1989, %v2890
        %v2892 = vand.u32 %v2891, 4294901760
        %2893 = vmatmul.mubr.f32.gmra.mrb[0].mxu0 %v2892
        %v2894 = vpop.f32.mrb[0].mxu0
        %v2895 = vadd.f32 %v2691, %v2894
        %v2896 = vpop.f32.mrb[0].mxu0
        %2897 = vmatprep.mubr.f32.mxu0 0.0
        %v2898 = vand.u32 %v1995, 4294901760
        %v2899 = vsub.f32 %v1995, %v2898
        %v2900 = vand.u32 %v2899, 4294901760
        %2901 = vmatmul.mubr.f32.gmra.mrb[0].mxu0 %v2900
        %v2902 = vpop.f32.mrb[0].mxu0
        %v2903 = vadd.f32 %v2698, %v2902
        %v2904 = vpop.f32.mrb[0].mxu0
        %2905 = vmatprep.mubr.f32.mxu0 0.0
        %v2906 = vand.u32 %v2001, 4294901760
        %v2907 = vsub.f32 %v2001, %v2906
        %v2908 = vand.u32 %v2907, 4294901760
        %2909 = vmatmul.mubr.f32.gmra.mrb[0].mxu0 %v2908
        %v2910 = vpop.f32.mrb[0].mxu0
        %v2911 = vadd.f32 %v2705, %v2910
        %v2912 = vpop.f32.mrb[0].mxu0
        %2913 = vmatprep.mubr.f32.mxu0 0.0
        %v2914 = vand.u32 %v2007, 4294901760
        %v2915 = vsub.f32 %v2007, %v2914
        %v2916 = vand.u32 %v2915, 4294901760
        %2917 = vmatmul.mubr.f32.gmra.mrb[0].mxu0 %v2916
        %v2918 = vpop.f32.mrb[0].mxu0
        %v2919 = vadd.f32 %v2712, %v2918
        %v2920 = vpop.f32.mrb[0].mxu0
        %2921 = vmatprep.mubr.f32.mxu0 0.0
        %v2922 = vand.u32 %v2013, 4294901760
        %v2923 = vsub.f32 %v2013, %v2922
        %v2924 = vand.u32 %v2923, 4294901760
        %2925 = vmatmul.mubr.f32.gmra.mrb[0].mxu0 %v2924
        %v2926 = vpop.f32.mrb[0].mxu0
        %v2927 = vadd.f32 %v2719, %v2926
        %v2928 = vpop.f32.mrb[0].mxu0
        %2929 = vmatprep.mubr.f32.mxu0 0.0
        %v2930 = vand.u32 %v2019, 4294901760
        %v2931 = vsub.f32 %v2019, %v2930
        %v2932 = vand.u32 %v2931, 4294901760
        %2933 = vmatmul.mubr.f32.gmra.mrb[0].mxu0 %v2932
        %v2934 = vpop.f32.mrb[0].mxu0
        %v2935 = vadd.f32 %v2726, %v2934
        %v2936 = vpop.f32.mrb[0].mxu0
        %2937 = vdwg.mxu0
        %2938 = vmatprep.subr.mxu0 0.0
        %v2939 = vand.u32 %v2022, 4294901760
        %v2940 = vsub.f32 %v2022, %v2939
        %v2941 = vand.u32 %v2940, 4294901760
        %2942 = vmatpush1.msra.mxu0 %v2941
        %2943 = vmatprep.subr.mxu0 0.0
        %v2944 = vand.u32 %v2023, 4294901760
        %v2945 = vsub.f32 %v2023, %v2944
        %v2946 = vand.u32 %v2945, 4294901760
        %2947 = vmatpush1.msra.mxu0 %v2946
        %2948 = vmatprep.subr.mxu0 0.0
        %v2949 = vand.u32 %v2024, 4294901760
        %v2950 = vsub.f32 %v2024, %v2949
        %v2951 = vand.u32 %v2950, 4294901760
        %2952 = vmatpush1.msra.mxu0 %v2951
        %2953 = vmatprep.subr.mxu0 0.0
        %v2954 = vand.u32 %v2025, 4294901760
        %v2955 = vsub.f32 %v2025, %v2954
        %v2956 = vand.u32 %v2955, 4294901760
        %2957 = vmatpush1.msra.mxu0 %v2956
        %2958 = vmatprep.subr.mxu0 0.0
        %v2959 = vand.u32 %v2026, 4294901760
        %v2960 = vsub.f32 %v2026, %v2959
        %v2961 = vand.u32 %v2960, 4294901760
        %2962 = vmatpush1.msra.mxu0 %v2961
        %2963 = vmatprep.subr.mxu0 0.0
        %v2964 = vand.u32 %v2027, 4294901760
        %v2965 = vsub.f32 %v2027, %v2964
        %v2966 = vand.u32 %v2965, 4294901760
        %2967 = vmatpush1.msra.mxu0 %v2966
        %2968 = vmatprep.subr.mxu0 0.0
        %v2969 = vand.u32 %v2028, 4294901760
        %v2970 = vsub.f32 %v2028, %v2969
        %v2971 = vand.u32 %v2970, 4294901760
        %2972 = vmatpush1.msra.mxu0 %v2971
        %2973 = vmatprep.subr.mxu0 0.0
        %v2974 = vand.u32 %v2029, 4294901760
        %v2975 = vsub.f32 %v2029, %v2974
        %v2976 = vand.u32 %v2975, 4294901760
        %2977 = vmatpush1.msra.mxu0 %v2976
        %2978 = vmatprep.subr.mxu0 0.0
        %v2979 = vand.u32 %v2030, 4294901760
        %v2980 = vsub.f32 %v2030, %v2979
        %v2981 = vand.u32 %v2980, 4294901760
        %2982 = vmatpush1.msra.mxu0 %v2981
        %2983 = vmatprep.subr.mxu0 0.0
        %v2984 = vand.u32 %v2031, 4294901760
        %v2985 = vsub.f32 %v2031, %v2984
        %v2986 = vand.u32 %v2985, 4294901760
        %2987 = vmatpush1.msra.mxu0 %v2986
        %2988 = vmatprep.subr.mxu0 0.0
        %v2989 = vand.u32 %v2032, 4294901760
        %v2990 = vsub.f32 %v2032, %v2989
        %v2991 = vand.u32 %v2990, 4294901760
        %2992 = vmatpush1.msra.mxu0 %v2991
        %2993 = vmatprep.subr.mxu0 0.0
        %v2994 = vand.u32 %v2033, 4294901760
        %v2995 = vsub.f32 %v2033, %v2994
        %v2996 = vand.u32 %v2995, 4294901760
        %2997 = vmatpush1.msra.mxu0 %v2996
        %2998 = vmatprep.subr.mxu0 0.0
        %v2999 = vand.u32 %v2034, 4294901760
        %v3000 = vsub.f32 %v2034, %v2999
        %v3001 = vand.u32 %v3000, 4294901760
        %3002 = vmatpush1.msra.mxu0 %v3001
        %3003 = vmatprep.subr.mxu0 0.0
        %v3004 = vand.u32 %v2035, 4294901760
        %v3005 = vsub.f32 %v2035, %v3004
        %v3006 = vand.u32 %v3005, 4294901760
        %3007 = vmatpush1.msra.mxu0 %v3006
        %3008 = vmatprep.subr.mxu0 0.0
        %v3009 = vand.u32 %v2036, 4294901760
        %v3010 = vsub.f32 %v2036, %v3009
        %v3011 = vand.u32 %v3010, 4294901760
        %3012 = vmatpush1.msra.mxu0 %v3011
        %3013 = vmatprep.subr.mxu0 0.0
        %v3014 = vand.u32 %v2037, 4294901760
        %v3015 = vsub.f32 %v2037, %v3014
        %v3016 = vand.u32 %v3015, 4294901760
        %3017 = vmatpush1.msra.mxu0 %v3016
        %3018 = vmatprep.subr.mxu0 0.0
        %3019 = vmatpush1.msra.mxu0 0.0
        %3020 = vmatprep.subr.mxu0 0.0
        %3021 = vmatpush1.msra.mxu0 0.0
        %3022 = vmatprep.subr.mxu0 0.0
        %3023 = vmatpush1.msra.mxu0 0.0
        %3024 = vmatprep.subr.mxu0 0.0
        %3025 = vmatpush1.msra.mxu0 0.0
        %3026 = vmatprep.subr.mxu0 0.0
        %3027 = vmatpush1.msra.mxu0 0.0
        %3028 = vmatprep.subr.mxu0 0.0
        %3029 = vmatpush1.msra.mxu0 0.0
        %3030 = vmatprep.subr.mxu0 0.0
        %3031 = vmatpush1.msra.mxu0 0.0
        %3032 = vmatprep.subr.mxu0 0.0
        %3033 = vmatpush1.msra.mxu0 0.0
        %3034 = vmatprep.subr.mxu0 0.0
        %3035 = vmatpush1.msra.mxu0 0.0
        %3036 = vmatprep.subr.mxu0 0.0
        %3037 = vmatpush1.msra.mxu0 0.0
        %3038 = vmatprep.subr.mxu0 0.0
        %3039 = vmatpush1.msra.mxu0 0.0
        %3040 = vmatprep.subr.mxu0 0.0
        %3041 = vmatpush1.msra.mxu0 0.0
        %3042 = vmatprep.subr.mxu0 0.0
        %3043 = vmatpush1.msra.mxu0 0.0
        %3044 = vmatprep.subr.mxu0 0.0
        %3045 = vmatpush1.msra.mxu0 0.0
        %3046 = vmatprep.subr.mxu0 0.0
        %3047 = vmatpush1.msra.mxu0 0.0
        %3048 = vmatprep.subr.mxu0 0.0
        %3049 = vmatpush1.msra.mxu0 0.0
        %3050 = vmatprep.mubr.f32.mxu0 0.0
        %v3051 = vand.u32 %v1929, 4294901760
        %3052 = vmatmul.mubr.f32.gmra.mrb[0].mxu0 %v3051
        %v3053 = vpop.f32.mrb[0].mxu0
        %v3054 = vadd.f32 %v2815, %v3053
        %v3055 = vpop.f32.mrb[0].mxu0
        %3056 = vmatprep.mubr.f32.mxu0 0.0
        %v3057 = vand.u32 %v1935, 4294901760
        %3058 = vmatmul.mubr.f32.gmra.mrb[0].mxu0 %v3057
        %v3059 = vpop.f32.mrb[0].mxu0
        %v3060 = vadd.f32 %v2823, %v3059
        %v3061 = vpop.f32.mrb[0].mxu0
        %3062 = vmatprep.mubr.f32.mxu0 0.0
        %v3063 = vand.u32 %v1941, 4294901760
        %3064 = vmatmul.mubr.f32.gmra.mrb[0].mxu0 %v3063
        %v3065 = vpop.f32.mrb[0].mxu0
        %v3066 = vadd.f32 %v2831, %v3065
        %v3067 = vpop.f32.mrb[0].mxu0
        %3068 = vmatprep.mubr.f32.mxu0 0.0
        %v3069 = vand.u32 %v1947, 4294901760
        %3070 = vmatmul.mubr.f32.gmra.mrb[0].mxu0 %v3069
        %v3071 = vpop.f32.mrb[0].mxu0
        %v3072 = vadd.f32 %v2839, %v3071
        %v3073 = vpop.f32.mrb[0].mxu0
        %3074 = vmatprep.mubr.f32.mxu0 0.0
        %v3075 = vand.u32 %v1953, 4294901760
        %3076 = vmatmul.mubr.f32.gmra.mrb[0].mxu0 %v3075
        %v3077 = vpop.f32.mrb[0].mxu0
        %v3078 = vadd.f32 %v2847, %v3077
        %v3079 = vpop.f32.mrb[0].mxu0
        %3080 = vmatprep.mubr.f32.mxu0 0.0
        %v3081 = vand.u32 %v1959, 4294901760
        %3082 = vmatmul.mubr.f32.gmra.mrb[0].mxu0 %v3081
        %v3083 = vpop.f32.mrb[0].mxu0
        %v3084 = vadd.f32 %v2855, %v3083
        %v3085 = vpop.f32.mrb[0].mxu0
        %3086 = vmatprep.mubr.f32.mxu0 0.0
        %v3087 = vand.u32 %v1965, 4294901760
        %3088 = vmatmul.mubr.f32.gmra.mrb[0].mxu0 %v3087
        %v3089 = vpop.f32.mrb[0].mxu0
        %v3090 = vadd.f32 %v2863, %v3089
        %v3091 = vpop.f32.mrb[0].mxu0
        %3092 = vmatprep.mubr.f32.mxu0 0.0
        %v3093 = vand.u32 %v1971, 4294901760
        %3094 = vmatmul.mubr.f32.gmra.mrb[0].mxu0 %v3093
        %v3095 = vpop.f32.mrb[0].mxu0
        %v3096 = vadd.f32 %v2871, %v3095
        %v3097 = vpop.f32.mrb[0].mxu0
        %3098 = vmatprep.mubr.f32.mxu0 0.0
        %v3099 = vand.u32 %v1977, 4294901760
        %3100 = vmatmul.mubr.f32.gmra.mrb[0].mxu0 %v3099
        %v3101 = vpop.f32.mrb[0].mxu0
        %v3102 = vadd.f32 %v2879, %v3101
        %v3103 = vpop.f32.mrb[0].mxu0
        %3104 = vmatprep.mubr.f32.mxu0 0.0
        %v3105 = vand.u32 %v1983, 4294901760
        %3106 = vmatmul.mubr.f32.gmra.mrb[0].mxu0 %v3105
        %v3107 = vpop.f32.mrb[0].mxu0
        %v3108 = vadd.f32 %v2887, %v3107
        %v3109 = vpop.f32.mrb[0].mxu0
        %3110 = vmatprep.mubr.f32.mxu0 0.0
        %v3111 = vand.u32 %v1989, 4294901760
        %3112 = vmatmul.mubr.f32.gmra.mrb[0].mxu0 %v3111
        %v3113 = vpop.f32.mrb[0].mxu0
        %v3114 = vadd.f32 %v2895, %v3113
        %v3115 = vpop.f32.mrb[0].mxu0
        %3116 = vmatprep.mubr.f32.mxu0 0.0
        %v3117 = vand.u32 %v1995, 4294901760
        %3118 = vmatmul.mubr.f32.gmra.mrb[0].mxu0 %v3117
        %v3119 = vpop.f32.mrb[0].mxu0
        %v3120 = vadd.f32 %v2903, %v3119
        %v3121 = vpop.f32.mrb[0].mxu0
        %3122 = vmatprep.mubr.f32.mxu0 0.0
        %v3123 = vand.u32 %v2001, 4294901760
        %3124 = vmatmul.mubr.f32.gmra.mrb[0].mxu0 %v3123
        %v3125 = vpop.f32.mrb[0].mxu0
        %v3126 = vadd.f32 %v2911, %v3125
        %v3127 = vpop.f32.mrb[0].mxu0
        %3128 = vmatprep.mubr.f32.mxu0 0.0
        %v3129 = vand.u32 %v2007, 4294901760
        %3130 = vmatmul.mubr.f32.gmra.mrb[0].mxu0 %v3129
        %v3131 = vpop.f32.mrb[0].mxu0
        %v3132 = vadd.f32 %v2919, %v3131
        %v3133 = vpop.f32.mrb[0].mxu0
        %3134 = vmatprep.mubr.f32.mxu0 0.0
        %v3135 = vand.u32 %v2013, 4294901760
        %3136 = vmatmul.mubr.f32.gmra.mrb[0].mxu0 %v3135
        %v3137 = vpop.f32.mrb[0].mxu0
        %v3138 = vadd.f32 %v2927, %v3137
        %v3139 = vpop.f32.mrb[0].mxu0
        %3140 = vmatprep.mubr.f32.mxu0 0.0
        %v3141 = vand.u32 %v2019, 4294901760
        %3142 = vmatmul.mubr.f32.gmra.mrb[0].mxu0 %v3141
        %v3143 = vpop.f32.mrb[0].mxu0
        %v3144 = vadd.f32 %v2935, %v3143
        %v3145 = vpop.f32.mrb[0].mxu0
        %3146 = vdwg.mxu0
        %3147 = vmatprep.subr.mxu0 0.0
        %v3148 = vand.u32 %v2022, 4294901760
        %3149 = vmatpush1.msra.mxu0 %v3148
        %3150 = vmatprep.subr.mxu0 0.0
        %v3151 = vand.u32 %v2023, 4294901760
        %3152 = vmatpush1.msra.mxu0 %v3151
        %3153 = vmatprep.subr.mxu0 0.0
        %v3154 = vand.u32 %v2024, 4294901760
        %3155 = vmatpush1.msra.mxu0 %v3154
        %3156 = vmatprep.subr.mxu0 0.0
        %v3157 = vand.u32 %v2025, 4294901760
        %3158 = vmatpush1.msra.mxu0 %v3157
        %3159 = vmatprep.subr.mxu0 0.0
        %v3160 = vand.u32 %v2026, 4294901760
        %3161 = vmatpush1.msra.mxu0 %v3160
        %3162 = vmatprep.subr.mxu0 0.0
        %v3163 = vand.u32 %v2027, 4294901760
        %3164 = vmatpush1.msra.mxu0 %v3163
        %3165 = vmatprep.subr.mxu0 0.0
        %v3166 = vand.u32 %v2028, 4294901760
        %3167 = vmatpush1.msra.mxu0 %v3166
        %3168 = vmatprep.subr.mxu0 0.0
        %v3169 = vand.u32 %v2029, 4294901760
        %3170 = vmatpush1.msra.mxu0 %v3169
        %3171 = vmatprep.subr.mxu0 0.0
        %v3172 = vand.u32 %v2030, 4294901760
        %3173 = vmatpush1.msra.mxu0 %v3172
        %3174 = vmatprep.subr.mxu0 0.0
        %v3175 = vand.u32 %v2031, 4294901760
        %3176 = vmatpush1.msra.mxu0 %v3175
        %3177 = vmatprep.subr.mxu0 0.0
        %v3178 = vand.u32 %v2032, 4294901760
        %3179 = vmatpush1.msra.mxu0 %v3178
        %3180 = vmatprep.subr.mxu0 0.0
        %v3181 = vand.u32 %v2033, 4294901760
        %3182 = vmatpush1.msra.mxu0 %v3181
        %3183 = vmatprep.subr.mxu0 0.0
        %v3184 = vand.u32 %v2034, 4294901760
        %3185 = vmatpush1.msra.mxu0 %v3184
        %3186 = vmatprep.subr.mxu0 0.0
        %v3187 = vand.u32 %v2035, 4294901760
        %3188 = vmatpush1.msra.mxu0 %v3187
        %3189 = vmatprep.subr.mxu0 0.0
        %v3190 = vand.u32 %v2036, 4294901760
        %3191 = vmatpush1.msra.mxu0 %v3190
        %3192 = vmatprep.subr.mxu0 0.0
        %v3193 = vand.u32 %v2037, 4294901760
        %3194 = vmatpush1.msra.mxu0 %v3193
        %3195 = vmatprep.subr.mxu0 0.0
        %3196 = vmatpush1.msra.mxu0 0.0
        %3197 = vmatprep.subr.mxu0 0.0
        %3198 = vmatpush1.msra.mxu0 0.0
        %3199 = vmatprep.subr.mxu0 0.0
        %3200 = vmatpush1.msra.mxu0 0.0
        %3201 = vmatprep.subr.mxu0 0.0
        %3202 = vmatpush1.msra.mxu0 0.0
        %3203 = vmatprep.subr.mxu0 0.0
        %3204 = vmatpush1.msra.mxu0 0.0
        %3205 = vmatprep.subr.mxu0 0.0
        %3206 = vmatpush1.msra.mxu0 0.0
        %3207 = vmatprep.subr.mxu0 0.0
        %3208 = vmatpush1.msra.mxu0 0.0
        %3209 = vmatprep.subr.mxu0 0.0
        %3210 = vmatpush1.msra.mxu0 0.0
        %3211 = vmatprep.subr.mxu0 0.0
        %3212 = vmatpush1.msra.mxu0 0.0
        %3213 = vmatprep.subr.mxu0 0.0
        %3214 = vmatpush1.msra.mxu0 0.0
        %3215 = vmatprep.subr.mxu0 0.0
        %3216 = vmatpush1.msra.mxu0 0.0
        %3217 = vmatprep.subr.mxu0 0.0
        %3218 = vmatpush1.msra.mxu0 0.0
        %3219 = vmatprep.subr.mxu0 0.0
        %3220 = vmatpush1.msra.mxu0 0.0
        %3221 = vmatprep.subr.mxu0 0.0
        %3222 = vmatpush1.msra.mxu0 0.0
        %3223 = vmatprep.subr.mxu0 0.0
        %3224 = vmatpush1.msra.mxu0 0.0
        %3225 = vmatprep.subr.mxu0 0.0
        %3226 = vmatpush1.msra.mxu0 0.0
        %3227 = vmatprep.mubr.f32.mxu0 0.0
        %v3228 = vand.u32 %v1929, 4294901760
        %3229 = vmatmul.mubr.f32.gmra.mrb[0].mxu0 %v3228
        %v3230 = vpop.f32.mrb[0].mxu0
        %v3231 = vadd.f32 %v3054, %v3230
        %v3232 = vpop.f32.mrb[0].mxu0
        %3233 = vmatprep.mubr.f32.mxu0 0.0
        %v3234 = vand.u32 %v1935, 4294901760
        %3235 = vmatmul.mubr.f32.gmra.mrb[0].mxu0 %v3234
        %v3236 = vpop.f32.mrb[0].mxu0
        %v3237 = vadd.f32 %v3060, %v3236
        %v3238 = vpop.f32.mrb[0].mxu0
        %3239 = vmatprep.mubr.f32.mxu0 0.0
        %v3240 = vand.u32 %v1941, 4294901760
        %3241 = vmatmul.mubr.f32.gmra.mrb[0].mxu0 %v3240
        %v3242 = vpop.f32.mrb[0].mxu0
        %v3243 = vadd.f32 %v3066, %v3242
        %v3244 = vpop.f32.mrb[0].mxu0
        %3245 = vmatprep.mubr.f32.mxu0 0.0
        %v3246 = vand.u32 %v1947, 4294901760
        %3247 = vmatmul.mubr.f32.gmra.mrb[0].mxu0 %v3246
        %v3248 = vpop.f32.mrb[0].mxu0
        %v3249 = vadd.f32 %v3072, %v3248
        %v3250 = vpop.f32.mrb[0].mxu0
        %3251 = vmatprep.mubr.f32.mxu0 0.0
        %v3252 = vand.u32 %v1953, 4294901760
        %3253 = vmatmul.mubr.f32.gmra.mrb[0].mxu0 %v3252
        %v3254 = vpop.f32.mrb[0].mxu0
        %v3255 = vadd.f32 %v3078, %v3254
        %v3256 = vpop.f32.mrb[0].mxu0
        %3257 = vmatprep.mubr.f32.mxu0 0.0
        %v3258 = vand.u32 %v1959, 4294901760
        %3259 = vmatmul.mubr.f32.gmra.mrb[0].mxu0 %v3258
        %v3260 = vpop.f32.mrb[0].mxu0
        %v3261 = vadd.f32 %v3084, %v3260
        %v3262 = vpop.f32.mrb[0].mxu0
        %3263 = vmatprep.mubr.f32.mxu0 0.0
        %v3264 = vand.u32 %v1965, 4294901760
        %3265 = vmatmul.mubr.f32.gmra.mrb[0].mxu0 %v3264
        %v3266 = vpop.f32.mrb[0].mxu0
        %v3267 = vadd.f32 %v3090, %v3266
        %v3268 = vpop.f32.mrb[0].mxu0
        %3269 = vmatprep.mubr.f32.mxu0 0.0
        %v3270 = vand.u32 %v1971, 4294901760
        %3271 = vmatmul.mubr.f32.gmra.mrb[0].mxu0 %v3270
        %v3272 = vpop.f32.mrb[0].mxu0
        %v3273 = vadd.f32 %v3096, %v3272
        %v3274 = vpop.f32.mrb[0].mxu0
        %3275 = vmatprep.mubr.f32.mxu0 0.0
        %v3276 = vand.u32 %v1977, 4294901760
        %3277 = vmatmul.mubr.f32.gmra.mrb[0].mxu0 %v3276
        %v3278 = vpop.f32.mrb[0].mxu0
        %v3279 = vadd.f32 %v3102, %v3278
        %v3280 = vpop.f32.mrb[0].mxu0
        %3281 = vmatprep.mubr.f32.mxu0 0.0
        %v3282 = vand.u32 %v1983, 4294901760
        %3283 = vmatmul.mubr.f32.gmra.mrb[0].mxu0 %v3282
        %v3284 = vpop.f32.mrb[0].mxu0
        %v3285 = vadd.f32 %v3108, %v3284
        %v3286 = vpop.f32.mrb[0].mxu0
        %3287 = vmatprep.mubr.f32.mxu0 0.0
        %v3288 = vand.u32 %v1989, 4294901760
        %3289 = vmatmul.mubr.f32.gmra.mrb[0].mxu0 %v3288
        %v3290 = vpop.f32.mrb[0].mxu0
        %v3291 = vadd.f32 %v3114, %v3290
        %v3292 = vpop.f32.mrb[0].mxu0
        %3293 = vmatprep.mubr.f32.mxu0 0.0
        %v3294 = vand.u32 %v1995, 4294901760
        %3295 = vmatmul.mubr.f32.gmra.mrb[0].mxu0 %v3294
        %v3296 = vpop.f32.mrb[0].mxu0
        %v3297 = vadd.f32 %v3120, %v3296
        %v3298 = vpop.f32.mrb[0].mxu0
        %3299 = vmatprep.mubr.f32.mxu0 0.0
        %v3300 = vand.u32 %v2001, 4294901760
        %3301 = vmatmul.mubr.f32.gmra.mrb[0].mxu0 %v3300
        %v3302 = vpop.f32.mrb[0].mxu0
        %v3303 = vadd.f32 %v3126, %v3302
        %v3304 = vpop.f32.mrb[0].mxu0
        %3305 = vmatprep.mubr.f32.mxu0 0.0
        %v3306 = vand.u32 %v2007, 4294901760
        %3307 = vmatmul.mubr.f32.gmra.mrb[0].mxu0 %v3306
        %v3308 = vpop.f32.mrb[0].mxu0
        %v3309 = vadd.f32 %v3132, %v3308
        %v3310 = vpop.f32.mrb[0].mxu0
        %3311 = vmatprep.mubr.f32.mxu0 0.0
        %v3312 = vand.u32 %v2013, 4294901760
        %3313 = vmatmul.mubr.f32.gmra.mrb[0].mxu0 %v3312
        %v3314 = vpop.f32.mrb[0].mxu0
        %v3315 = vadd.f32 %v3138, %v3314
        %v3316 = vpop.f32.mrb[0].mxu0
        %3317 = vmatprep.mubr.f32.mxu0 0.0
        %v3318 = vand.u32 %v2019, 4294901760
        %3319 = vmatmul.mubr.f32.gmra.mrb[0].mxu0 %v3318
        %v3320 = vpop.f32.mrb[0].mxu0
        %v3321 = vadd.f32 %v3144, %v3320
        %v3322 = vpop.f32.mrb[0].mxu0
        %3323 = vdwg.mxu0
        %v3324 = vld [vmem:[%s281] sm:$0xff]
        %v3325 = vld [vmem:[%s281 + $0x8] sm:$0xff]
        %v3326 = vld [vmem:[%s281 + $0x10] sm:$0xff]
        %v3327 = vld [vmem:[%s281 + $0x18] sm:$0xff]
        %v3328 = vld [vmem:[%s281 + $0x20] sm:$0xff]
        %v3329 = vld [vmem:[%s281 + $0x28] sm:$0xff]
        %v3330 = vld [vmem:[%s281 + $0x30] sm:$0xff]
        %v3331 = vld [vmem:[%s281 + $0x38] sm:$0xff]
        %v3332 = vld [vmem:[%s281 + $0x40] sm:$0xff]
        %v3333 = vld [vmem:[%s281 + $0x48] sm:$0xff]
        %v3334 = vld [vmem:[%s281 + $0x50] sm:$0xff]
        %v3335 = vld [vmem:[%s281 + $0x58] sm:$0xff]
        %v3336 = vld [vmem:[%s281 + $0x60] sm:$0xff]
        %v3337 = vld [vmem:[%s281 + $0x68] sm:$0xff]
        %v3338 = vld [vmem:[%s281 + $0x70] sm:$0xff]
        %v3339 = vld [vmem:[%s281 + $0x78] sm:$0xff]
        %v3340 = vadd.f32 %v3324, %v3231
        %v3341 = vadd.f32 %v3325, %v3237
        %v3342 = vadd.f32 %v3326, %v3243
        %v3343 = vadd.f32 %v3327, %v3249
        %v3344 = vadd.f32 %v3328, %v3255
        %v3345 = vadd.f32 %v3329, %v3261
        %v3346 = vadd.f32 %v3330, %v3267
        %v3347 = vadd.f32 %v3331, %v3273
        %v3348 = vadd.f32 %v3332, %v3279
        %v3349 = vadd.f32 %v3333, %v3285
        %v3350 = vadd.f32 %v3334, %v3291
        %v3351 = vadd.f32 %v3335, %v3297
        %v3352 = vadd.f32 %v3336, %v3303
        %v3353 = vadd.f32 %v3337, %v3309
        %v3354 = vadd.f32 %v3338, %v3315
        %v3355 = vadd.f32 %v3339, %v3321
        %3356 = vst [vmem:[%s321] sm:$0xff] %v3340
        %3357 = vst [vmem:[%s321 + $0x8] sm:$0xff] %v3341
        %3358 = vst [vmem:[%s321 + $0x10] sm:$0xff] %v3342
        %3359 = vst [vmem:[%s321 + $0x18] sm:$0xff] %v3343
        %3360 = vst [vmem:[%s321 + $0x20] sm:$0xff] %v3344
        %3361 = vst [vmem:[%s321 + $0x28] sm:$0xff] %v3345
        %3362 = vst [vmem:[%s321 + $0x30] sm:$0xff] %v3346
        %3363 = vst [vmem:[%s321 + $0x38] sm:$0xff] %v3347
        %3364 = vst [vmem:[%s321 + $0x40] sm:$0xff] %v3348
        %3365 = vst [vmem:[%s321 + $0x48] sm:$0xff] %v3349
        %3366 = vst [vmem:[%s321 + $0x50] sm:$0xff] %v3350
        %3367 = vst [vmem:[%s321 + $0x58] sm:$0xff] %v3351
        %3368 = vst [vmem:[%s321 + $0x60] sm:$0xff] %v3352
        %3369 = vst [vmem:[%s321 + $0x68] sm:$0xff] %v3353
        %3370 = vst [vmem:[%s321 + $0x70] sm:$0xff] %v3354
        %3371 = vst [vmem:[%s321 + $0x78] sm:$0xff] %v3355
        %s3372 = sand.u32 %s147, 1
        %s3373 = scalar_lea.sflag [#allocation4], %s3372
        %s3374 = sand.u32 %s147, 1
        %s3375 = smul.addr %s3374, 128
        %s3376 = scalar_lea.vmem [#allocation11], %s3375
        // Predicated region
        $region61: #{tpu_custom_call.1} parent=39 // pred_check
          %p3377 = pneg %p157
        $region62: #{tpu_custom_call.1} parent=39 // pred_check_branch
          %3379 = sbr.rel (%p3377) target = $region64
        $region63: #{tpu_custom_call.1} parent=39 // pred_region
          %s3380 = smul.u32 16, %s24
          %s3382 = ssub.s32 2048, 2048
          %3383 = vsyncadd %s3373, %s3382
          %s3384 = smul.addr %s3380, 128
          %s3385 = scalar_lea.hbm %s5, %s3384
          %s3386 = sshll.u32 %s3376, 4
          %s3387 = int_to_ptr.vmem [resolvable:$true] %s3386
          %3392 = dma.vmem_to_hbm [thread:$0]  %s3387, 2048, %s3385, %s3373, 128, 128, 8
        $region64: #{tpu_custom_call.1} parent=39 // pred_fallthru
          _
      $region40: #{tpu_custom_call.1} parent=5 // pred_fallthru
        _
      %p3393 = scmp.le.s32.totalorder 2, %s19
      // Predicated region
      $region65: #{tpu_custom_call.1} parent=5 // pred_check
        %p3394 = pneg %p3393
      $region66: #{tpu_custom_call.1} parent=5 // pred_check_branch
        %3396 = sbr.rel (%p3394) target = $region68
      $region67: #{tpu_custom_call.1} parent=5 // pred_region
        %s3397 = ssub.s32 %s19, 2
        // Predicated region
        $region69: #{tpu_custom_call.1} parent=67 // pred_check
          %p3398 = pneg %p163
        $region70: #{tpu_custom_call.1} parent=67 // pred_check_branch
          %3400 = sbr.rel (%p3398) target = $region72
        $region71: #{tpu_custom_call.1} parent=67 // pred_region
          %s3401 = sand.u32 %s148, 1
          %s3402 = scalar_lea.sflag [#allocation4], %s3401
          %s3403 = sand.u32 %s148, 1
          %s3404 = smul.addr %s3403, 128
          %s3405 = scalar_lea.vmem [#allocation11], %s3404
          %3406 = dma.done %s3402, 2048
        $region72: #{tpu_custom_call.1} parent=67 // pred_fallthru
          _
      $region68: #{tpu_custom_call.1} parent=5 // pred_fallthru
        _
    $region6: #{tpu_custom_call.1} parent=1 // loop_footer
      %s23 = sadd.s32 1, %s19
    $region7: #{tpu_custom_call.1} parent=1 // loop_footer_branch
      %18 = sbr.rel target = $region3
    $region8: #{tpu_custom_call.1} parent=1 // loop_exit
      _
    %3407 = vsyncpa [#allocation3], 1
    %s3408 = scalar_lea.sflag [#allocation3], 1
    %3409 = vsyncpa %s3408, 1
    %3410 = vsyncpa [#allocation6], 1
    %3411 = vsyncpa [#allocation9], 1
    %s3412 = scalar_lea.sflag [#allocation9], 1
    %3413 = vsyncpa %s3412, 1
    %3414 = vsyncpa [#allocation4], 1
    %s3415 = scalar_lea.sflag [#allocation4], 1
    %3416 = vsyncpa %s3415, 1

</llo_original>
